<compile_context>
chip_gen: v7x
topology: tpu7x:2x2x1
jax: 0.10.0
libtpu: 0.0.40
codegen_flags: <defaults>
</compile_context>

<pallas_src>
import functools

import jax
import jax.numpy as jnp
from jax.experimental import pallas as pl
from jax.experimental.pallas import tpu as pltpu

LANE = 128  # lane width the feature / input-channel dims are padded to


def _round_up(x, m):
    return (x + m - 1) // m * m


# ---------------------------------------------------------------------------
# The single fused decoder kernel: grid = (num_layers,).
# ---------------------------------------------------------------------------
def _decoder_kernel(c_real, alpha, B, T, halo,
                    dils_ref,                                   # scalar prefetch (SMEM)
                    xin_ref, f_ref, m_ref, bd_ref,
                    win_ref, bin_ref,
                    ffw_ref, ffb_ref, wqk_ref, bqk_ref,
                    wv_ref, bv_ref, wo_ref, bo_ref, cw_ref, cb_ref,
                    cow_ref, cob_ref,
                    feat_ref, out_ref,
                    state_ref):
    l = pl.program_id(0)
    n_layers = pl.num_programs(0)
    Cp = f_ref.shape[-1]
    M = B * T
    tpad = T + 2 * halo
    dil = dils_ref[l]                       # runtime dilation of this layer
    m_all = m_ref[...]                      # (M, 1) f32 time mask

    # ---- layer 0: conv_in (1x1) + state init (zero halos = conv zero pad) ---
    @pl.when(l == 0)
    def _():
        state_ref[...] = jnp.zeros_like(state_ref)
        feat0 = (jnp.dot(xin_ref[...], win_ref[...],
                         preferred_element_type=jnp.float32) + bin_ref[...])
        for b in range(B):
            state_ref[pl.ds(b * tpad + halo, T), :] = feat0[b * T:(b + 1) * T, :]

    # ---- gather layer input x and its +-dil taps straight from the halo-
    #      padded state: no TxT selection matmuls, no rolls -------------------
    x_rows, cat_rows = [], []
    for b in range(B):
        base = b * tpad + halo                                   # static, 8-aligned
        xb = state_ref[pl.ds(base, T), :]                        # x[t]
        xl = state_ref[pl.ds(base - dil, T), :]                  # x[t - dil] (0-padded)
        xr = state_ref[pl.ds(base + dil, T), :]                  # x[t + dil] (0-padded)
        x_rows.append(xb)
        cat_rows.append(jnp.concatenate([xl, xb, xr], axis=1))   # (T, 3Cp)
    x = jnp.concatenate(x_rows, axis=0)                          # (M, Cp) f32
    xcat = jnp.concatenate(cat_rows, axis=0).astype(jnp.bfloat16)  # (M, 3Cp) bf16

    # ---- feed_forward: dilated Conv1d(k=3) as ONE K=3*Cp matmul + ReLU ------
    out_ff = jnp.maximum(
        jnp.dot(xcat, ffw_ref[0], preferred_element_type=jnp.float32) + ffb_ref[0],
        0.0)                                                     # (M, Cp) f32

    # ---- InstanceNorm1d per (batch, channel) over time (affine=False) -------
    o3 = out_ff.reshape(B, T, Cp)
    mu = jnp.mean(o3, axis=1, keepdims=True)
    var = jnp.mean(jnp.square(o3 - mu), axis=1, keepdims=True)
    qn = ((o3 - mu) * jax.lax.rsqrt(var + 1e-5)).reshape(M, Cp)

    # ---- Linear_Attention(q, q, fencoder, mask), sigmoid feature map --------
    qk = jax.nn.sigmoid(
        jnp.dot(qn.astype(jnp.bfloat16), wqk_ref[0],
                preferred_element_type=jnp.float32) + bqk_ref[0])    # (M, 2Cp)
    Q = qk[:, :Cp]
    K = qk[:, Cp:]
    V = (jnp.dot(f_ref[...], wv_ref[0], preferred_element_type=jnp.float32)
         + bv_ref[0])                                                # (M, Cp) f32

    bd = bd_ref[...]                                                 # (Cp,Cp) bf16 head mask
    Qb = Q.astype(jnp.bfloat16)
    Kb = K.astype(jnp.bfloat16)
    Vb = V.astype(jnp.bfloat16)

    # z denominator: (Q * sum_t K) projected onto the per-head block diagonal.
    ksum = jnp.sum(K.reshape(B, T, Cp), axis=1, keepdims=True) + 1e-6    # (B,1,Cp)
    qks = (Q.reshape(B, T, Cp) * ksum).reshape(M, Cp)
    den = jnp.dot(qks.astype(jnp.bfloat16), bd,
                  preferred_element_type=jnp.float32)                   # (M, Cp)

    # per-batch KV (heads via the block-diagonal mask, one MXU matmul each)
    num_rows = []
    for b in range(B):
        sl = slice(b * T, (b + 1) * T)
        kv_b = jax.lax.dot_general(Kb[sl], Vb[sl], (((0,), (0,)), ((), ())),
                                   preferred_element_type=jnp.float32)  # (Cp, Cp)
        kv_b = kv_b.astype(jnp.bfloat16) * bd
        num_rows.append(jnp.dot(Qb[sl], kv_b, preferred_element_type=jnp.float32))
    num = jnp.concatenate(num_rows, axis=0)                             # (M, Cp)

    lane = jax.lax.broadcasted_iota(jnp.int32, (1, Cp), 1)
    pad_one = jnp.where(lane >= c_real, 1.0, 0.0)    # keep pad lanes finite (den=0 there)
    att = num / (den + pad_one)                      # exact reciprocal (review concern)
    att = (jnp.dot(att.astype(jnp.bfloat16), wo_ref[0],
                   preferred_element_type=jnp.float32) + bo_ref[0]) * m_all

    # ---- residual + AttModule 1x1 conv_out + final time mask ----------------
    out = alpha * att + out_ff
    out = jnp.dot(out.astype(jnp.bfloat16), cw_ref[0],
                  preferred_element_type=jnp.float32) + cb_ref[0]
    new_state = (x + out) * m_all                                       # (M, Cp)

    for b in range(B):
        state_ref[pl.ds(b * tpad + halo, T), :] = new_state[b * T:(b + 1) * T, :]

    # ---- last layer: write features + fused decoder conv_out (1x1, NCT) -----
    @pl.when(l == n_layers - 1)
    def _():
        feat_ref[...] = new_state
        fb16 = new_state.astype(jnp.bfloat16)
        for b in range(B):
            ob = jax.lax.dot_general(cow_ref[...], fb16[b * T:(b + 1) * T, :],
                                     (((1,), (1,)), ((), ())),
                                     preferred_element_type=jnp.float32)  # (Coutp, T)
            out_ref[b] = (ob + cob_ref[...]).astype(out_ref.dtype)


# ---------------------------------------------------------------------------
# Parameter init (real sizes) + padding / stacking to the kernel layout.
# ---------------------------------------------------------------------------
def init_decoder_params(key, in_channel, n_features, out_channel, num_layers):
    keys = iter(jax.random.split(key, 4 + 12 * num_layers))
    scale = 0.1

    def lin(cin, cout):
        return (scale * jax.random.normal(next(keys), (cin, cout), jnp.float32),
                scale * jax.random.normal(next(keys), (1, cout), jnp.float32))

    params = {"conv_in": lin(in_channel, n_features)}
    layers = []
    for _ in range(num_layers):
        lp = {}
        lp["ff_w"] = scale * jax.random.normal(
            next(keys), (3, n_features, n_features), jnp.float32)
        lp["ff_b"] = scale * jax.random.normal(next(keys), (1, n_features), jnp.float32)
        lp["wq"], lp["bq"] = lin(n_features, n_features)
        lp["wk"], lp["bk"] = lin(n_features, n_features)
        lp["wv"], lp["bv"] = lin(n_features, n_features)
        lp["wo"], lp["bo"] = lin(n_features, n_features)
        lp["cw"], lp["cb"] = lin(n_features, n_features)
        layers.append(lp)
    params["layers"] = layers
    params["conv_out"] = lin(n_features, out_channel)
    return params


def prepare_padded_params(params, in_channel, n_features, out_channel,
                          n_heads=4, lane=LANE):
    C = n_features
    Cp = _round_up(C, lane)
    pc = Cp - C
    cin_p = _round_up(in_channel, lane)
    cout_p = _round_up(out_channel, 8)

    def padw(w):                         # (C, C) -> (Cp, Cp), zero-padded
        return jnp.pad(w, ((0, pc), (0, pc)))

    def padb(b):                         # (1, C) -> (1, Cp)
        return jnp.pad(b, ((0, 0), (0, pc)))

    w_in, b_in = params["conv_in"]
    prep = {
        "conv_in_w": jnp.pad(w_in, ((0, cin_p - in_channel), (0, pc))).astype(jnp.bfloat16),
        "conv_in_b": padb(b_in),
    }

    def stack(fn):
        return jnp.stack([fn(lp) for lp in params["layers"]])

    # fused conv weight: (3, C, C) -> (3*Cp, Cp) rows = [W_left; W_center; W_right]
    prep["ff_w"] = stack(
        lambda lp: jnp.pad(lp["ff_w"], ((0, 0), (0, pc), (0, pc))).reshape(3 * Cp, Cp)
    ).astype(jnp.bfloat16)
    prep["ff_b"] = stack(lambda lp: padb(lp["ff_b"]))
    prep["wqk"] = stack(
        lambda lp: jnp.concatenate([padw(lp["wq"]), padw(lp["wk"])], axis=1)
    ).astype(jnp.bfloat16)
    prep["bqk"] = stack(
        lambda lp: jnp.concatenate([padb(lp["bq"]), padb(lp["bk"])], axis=1))
    for nm in ("wv", "wo", "cw"):
        prep[nm] = stack(lambda lp, nm=nm: padw(lp[nm])).astype(jnp.bfloat16)
    for nm in ("bv", "bo", "cb"):
        prep[nm] = stack(lambda lp, nm=nm: padb(lp[nm]))

    # decoder conv_out in NCT layout, Cout padded to 8 sublanes
    w_out, b_out = params["conv_out"]                                   # (C, Cout), (1, Cout)
    prep["conv_out_w"] = jnp.pad(jnp.transpose(w_out),
                                 ((0, cout_p - out_channel), (0, pc))).astype(jnp.bfloat16)
    prep["conv_out_b"] = jnp.pad(jnp.transpose(b_out),
                                 ((0, cout_p - out_channel), (0, 0)))

    # block-diagonal per-head channel mask over the real channels only (bf16)
    head_dim = C // n_heads
    ch = jnp.arange(Cp)
    hid = ch // head_dim
    same = hid[:, None] == hid[None, :]
    real = (ch[:, None] < C) & (ch[None, :] < C)
    prep["bdiag"] = jnp.where(same & real, 1.0, 0.0).astype(jnp.bfloat16)
    return prep


# ---------------------------------------------------------------------------
# Full Decoder forward (single fused pallas_call).
# ---------------------------------------------------------------------------
def decoder_forward(prep, x_nct, fenc_nct, mask_n1t, *, dilations, alpha,
                    n_features, out_channel, return_padded_features=False):
    """x_nct: (B, Cin, T); fenc_nct: (B, n_features, T); mask_n1t: (B, 1, T)."""
    B, Cin, T = x_nct.shape
    if T % 8 != 0:
        raise ValueError("T must be a multiple of 8 (pad the time axis in the caller)")
    Cp = prep["wqk"].shape[1]
    cin_p = prep["conv_in_w"].shape[0]
    cout_p = prep["conv_out_w"].shape[0]
    L = len(dilations)
    M = B * T
    halo = _round_up(max(max(dilations), 1), 8)      # >= max dilation, 8-aligned
    tpad = T + 2 * halo

    # channel-last, lane-padded, flattened-to-(B*T) inputs
    x_rows = jnp.transpose(x_nct, (0, 2, 1)).reshape(M, Cin)
    x_rows = jnp.pad(x_rows, ((0, 0), (0, cin_p - Cin))).astype(jnp.bfloat16)
    f_rows = jnp.transpose(fenc_nct, (0, 2, 1)).reshape(M, n_features)
    f_rows = jnp.pad(f_rows, ((0, 0), (0, Cp - n_features))).astype(jnp.bfloat16)
    m_rows = jnp.transpose(mask_n1t, (0, 2, 1)).reshape(M, 1).astype(jnp.float32)
    dils = jnp.asarray(dilations, jnp.int32)

    kern = functools.partial(_decoder_kernel, n_features, alpha, B, T, halo)

    const2 = lambda l, d: (0, 0)
    const3 = lambda l, d: (0, 0, 0)
    perl3 = lambda l, d: (l, 0, 0)

    grid_spec = pltpu.PrefetchScalarGridSpec(
        num_scalar_prefetch=1,                       # dilation table (L,) in SMEM
        grid=(L,),
        in_specs=[
            pl.BlockSpec((M, cin_p), const2),        # conv_in input rows
            pl.BlockSpec((M, Cp), const2),           # fencoder rows
            pl.BlockSpec((M, 1), const2),            # time mask
            pl.BlockSpec((Cp, Cp), const2),          # block-diag head mask
            pl.BlockSpec((cin_p, Cp), const2),       # conv_in w
            pl.BlockSpec((1, Cp), const2),           # conv_in b
            pl.BlockSpec((1, 3 * Cp, Cp), perl3),    # fused dilated-conv w (K = 3Cp)
            pl.BlockSpec((1, 1, Cp), perl3),         # dilated-conv b
            pl.BlockSpec((1, Cp, 2 * Cp), perl3),    # Wq|Wk
            pl.BlockSpec((1, 1, 2 * Cp), perl3),     # bq|bk
            pl.BlockSpec((1, Cp, Cp), perl3),        # Wv
            pl.BlockSpec((1, 1, Cp), perl3),         # bv
            pl.BlockSpec((1, Cp, Cp), perl3),        # Wo
            pl.BlockSpec((1, 1, Cp), perl3),         # bo
            pl.BlockSpec((1, Cp, Cp), perl3),        # AttModule conv_out w
            pl.BlockSpec((1, 1, Cp), perl3),         # AttModule conv_out b
            pl.BlockSpec((cout_p, Cp), const2),      # decoder conv_out w (NCT)
            pl.BlockSpec((cout_p, 1), const2),       # decoder conv_out b
        ],
        out_specs=[
            pl.BlockSpec((M, Cp), const2),           # final features (B*T, Cp)
            pl.BlockSpec((B, cout_p, T), const3),    # logits (B, Coutp, T)
        ],
        scratch_shapes=[pltpu.VMEM((B * tpad, Cp), jnp.float32)],  # halo-padded state
    )
    feat_flat, out_p = pl.pallas_call(
        kern,
        out_shape=(jax.ShapeDtypeStruct((M, Cp), jnp.float32),
                   jax.ShapeDtypeStruct((B, cout_p, T), jnp.float32)),
        grid_spec=grid_spec,
        compiler_params=pltpu.CompilerParams(
            dimension_semantics=("arbitrary",),      # layers are sequential
            vmem_limit_bytes=48 * 1024 * 1024),
    )(dils, x_rows, f_rows, m_rows, prep["bdiag"],
      prep["conv_in_w"], prep["conv_in_b"],
      prep["ff_w"], prep["ff_b"], prep["wqk"], prep["bqk"],
      prep["wv"], prep["bv"], prep["wo"], prep["bo"],
      prep["cw"], prep["cb"], prep["conv_out_w"], prep["conv_out_b"])

    feat = feat_flat.reshape(B, T, Cp)
    out = out_p[:, :out_channel, :]                                    # (B, Cout, T)
    feature_nct = jnp.transpose(feat[:, :, :n_features], (0, 2, 1))    # (B, C, T)
    if return_padded_features:
        return out, feature_nct, feat
    return out, feature_nct


if __name__ == "__main__":
    B, T = 2, 16
    in_channel, n_features, out_channel, num_layers = 4, 32, 6, 2

    key = jax.random.PRNGKey(0)
    kp, kx, kf = jax.random.split(key, 3)
    params = init_decoder_params(kp, in_channel, n_features, out_channel, num_layers)
    prep = prepare_padded_params(params, in_channel, n_features, out_channel, n_heads=4)

    x = jax.random.normal(kx, (B, in_channel, T), jnp.float32)          # (B, C_in, T)
    fencoder = jax.random.normal(kf, (B, n_features, T), jnp.float32)   # (B, F, T)
    valid_len = jnp.array([T, 12])
    mask = (jnp.arange(T)[None, None, :] < valid_len[:, None, None]).astype(jnp.float32)
    dilations = tuple(2 ** i for i in range(num_layers))                # static per-layer dil

    fwd = jax.jit(functools.partial(
        decoder_forward, dilations=dilations, alpha=1.0,
        n_features=n_features, out_channel=out_channel,
        return_padded_features=True))
    out, feature, feat_padded = fwd(prep, x, fencoder, mask)
    out, feature, feat_padded = jax.block_until_ready((out, feature, feat_padded))

    assert out.shape == (B, out_channel, T)
    assert feature.shape == (B, n_features, T)
    assert bool(jnp.all(jnp.isfinite(out))) and bool(jnp.all(jnp.isfinite(feature)))
    # pad-channel invariant (review request): lanes >= n_features stay exactly 0
    assert bool(jnp.all(feat_padded[:, :, n_features:] == 0.0))
    print("KERNEL_OK")
</pallas_src>

<mosaic_0001>
module attributes {stable_mosaic.version = 11 : i64} {
  func.func @_decoder_kernel(%arg0: i32, %arg1: memref<2xi32, #tpu.memory_space<smem>>, %arg2: memref<32x128xbf16, #tpu.memory_space<vmem>>, %arg3: memref<32x128xbf16, #tpu.memory_space<vmem>>, %arg4: memref<32x1xf32, #tpu.memory_space<vmem>>, %arg5: memref<128x128xbf16, #tpu.memory_space<vmem>>, %arg6: memref<128x128xbf16, #tpu.memory_space<vmem>>, %arg7: memref<1x128xf32, #tpu.memory_space<vmem>>, %arg8: memref<1x384x128xbf16, #tpu.memory_space<vmem>>, %arg9: memref<1x1x128xf32, #tpu.memory_space<vmem>>, %arg10: memref<1x128x256xbf16, #tpu.memory_space<vmem>>, %arg11: memref<1x1x256xf32, #tpu.memory_space<vmem>>, %arg12: memref<1x128x128xbf16, #tpu.memory_space<vmem>>, %arg13: memref<1x1x128xf32, #tpu.memory_space<vmem>>, %arg14: memref<1x128x128xbf16, #tpu.memory_space<vmem>>, %arg15: memref<1x1x128xf32, #tpu.memory_space<vmem>>, %arg16: memref<1x128x128xbf16, #tpu.memory_space<vmem>>, %arg17: memref<1x1x128xf32, #tpu.memory_space<vmem>>, %arg18: memref<8x128xbf16, #tpu.memory_space<vmem>>, %arg19: memref<8x1xf32, #tpu.memory_space<vmem>>, %arg20: memref<32x128xf32, #tpu.memory_space<vmem>>, %arg21: memref<2x8x16xf32, #tpu.memory_space<vmem>>, %arg22: memref<64x128xf32, #tpu.memory_space<vmem>>) attributes {dimension_semantics = [#tpu.dimension_semantics<arbitrary>], iteration_bounds = array<i64: 2>, scalar_prefetch = 1 : i64, scratch_operands = 1 : i64, tpu.core_type = #tpu.core_type<tc>, window_params = [{pipeline_mode = #tpu.pipeline_mode<synchronous>, transform_indices = @transform_0, window_bounds = array<i64: 32, 128>}, {pipeline_mode = #tpu.pipeline_mode<synchronous>, transform_indices = @transform_1, window_bounds = array<i64: 32, 128>}, {pipeline_mode = #tpu.pipeline_mode<synchronous>, transform_indices = @transform_2, window_bounds = array<i64: 32, 1>}, {pipeline_mode = #tpu.pipeline_mode<synchronous>, transform_indices = @transform_3, window_bounds = array<i64: 128, 128>}, {pipeline_mode = #tpu.pipeline_mode<synchronous>, transform_indices = @transform_4, window_bounds = array<i64: 128, 128>}, {pipeline_mode = #tpu.pipeline_mode<synchronous>, transform_indices = @transform_5, window_bounds = array<i64: 1, 128>}, {transform_indices = @transform_6, window_bounds = array<i64: 1, 384, 128>}, {transform_indices = @transform_7, window_bounds = array<i64: 1, 1, 128>}, {transform_indices = @transform_8, window_bounds = array<i64: 1, 128, 256>}, {transform_indices = @transform_9, window_bounds = array<i64: 1, 1, 256>}, {transform_indices = @transform_10, window_bounds = array<i64: 1, 128, 128>}, {transform_indices = @transform_11, window_bounds = array<i64: 1, 1, 128>}, {transform_indices = @transform_12, window_bounds = array<i64: 1, 128, 128>}, {transform_indices = @transform_13, window_bounds = array<i64: 1, 1, 128>}, {transform_indices = @transform_14, window_bounds = array<i64: 1, 128, 128>}, {transform_indices = @transform_15, window_bounds = array<i64: 1, 1, 128>}, {pipeline_mode = #tpu.pipeline_mode<synchronous>, transform_indices = @transform_16, window_bounds = array<i64: 8, 128>}, {pipeline_mode = #tpu.pipeline_mode<synchronous>, transform_indices = @transform_17, window_bounds = array<i64: 8, 1>}, {pipeline_mode = #tpu.pipeline_mode<synchronous>, transform_indices = @transform_18, window_bounds = array<i64: 32, 128>}, {pipeline_mode = #tpu.pipeline_mode<synchronous>, transform_indices = @transform_19, window_bounds = array<i64: 2, 8, 16>}]} {
    %0 = arith.index_cast %arg0 : i32 to index
    %1 = memref.load %arg1[%0] : memref<2xi32, #tpu.memory_space<smem>>
    %c0 = arith.constant 0 : index
    %c0_0 = arith.constant 0 : index
    %2 = vector.load %arg4[%c0, %c0_0] : memref<32x1xf32, #tpu.memory_space<vmem>>, vector<32x1xf32>
    %c0_i32 = arith.constant 0 : i32
    %3 = arith.cmpi eq, %arg0, %c0_i32 : i32
    %4 = arith.extui %3 : i1 to i32
    %c0_i32_1 = arith.constant 0 : i32
    %5 = arith.cmpi ne, %4, %c0_i32_1 : i32
    scf.if %5 {
      %cst_70 = arith.constant 0.000000e+00 : f32
      %147 = vector.broadcast %cst_70 : f32 to vector<64x128xf32>
      %c0_71 = arith.constant 0 : index
      %c0_72 = arith.constant 0 : index
      %148 = vector.load %arg22[%c0_71, %c0_72] : memref<64x128xf32, #tpu.memory_space<vmem>>, vector<64x128xf32>
      tpu.vector_store %arg22[%c0_71, %c0_72], %147 {strides = array<i32>} : memref<64x128xf32, #tpu.memory_space<vmem>>, vector<64x128xf32>,
      %c0_73 = arith.constant 0 : index
      %c0_74 = arith.constant 0 : index
      %149 = vector.load %arg2[%c0_73, %c0_74] : memref<32x128xbf16, #tpu.memory_space<vmem>>, vector<32x128xbf16>
      %c0_75 = arith.constant 0 : index
      %c0_76 = arith.constant 0 : index
      %150 = vector.load %arg6[%c0_75, %c0_76] : memref<128x128xbf16, #tpu.memory_space<vmem>>, vector<128x128xbf16>
      %cst_77 = arith.constant dense<0.000000e+00> : vector<32x128xf32>
      %151 = tpu.matmul %149, %150, %cst_77 {dimension_numbers = #tpu.dot_dimension_numbers<[1], [0], [0], [1], [0, 0, 1, 1], [], []>} : vector<32x128xbf16>, vector<128x128xbf16>, vector<32x128xf32> -> vector<32x128xf32>
      %c0_78 = arith.constant 0 : index
      %c0_79 = arith.constant 0 : index
      %152 = vector.load %arg7[%c0_78, %c0_79] : memref<1x128xf32, #tpu.memory_space<vmem>>, vector<1x128xf32>
      %153 = vector.broadcast %152 : vector<1x128xf32> to vector<32x128xf32>
      %154 = arith.addf %151, %153 : vector<32x128xf32>
      %155 = vector.extract_strided_slice %154 {offsets = [0, 0], sizes = [16, 128], strides = [1, 1]} : vector<32x128xf32> to vector<16x128xf32>
      %c8_80 = arith.constant 8 : index
      %c0_81 = arith.constant 0 : index
      %156 = vector.load %arg22[%c8_80, %c0_81] : memref<64x128xf32, #tpu.memory_space<vmem>>, vector<16x128xf32>
      tpu.vector_store %arg22[%c8_80, %c0_81], %155 {strides = array<i32>} : memref<64x128xf32, #tpu.memory_space<vmem>>, vector<16x128xf32>,
      %157 = vector.extract_strided_slice %154 {offsets = [16, 0], sizes = [16, 128], strides = [1, 1]} : vector<32x128xf32> to vector<16x128xf32>
      %c40_82 = arith.constant 40 : index
      %c0_83 = arith.constant 0 : index
      %158 = vector.load %arg22[%c40_82, %c0_83] : memref<64x128xf32, #tpu.memory_space<vmem>>, vector<16x128xf32>
      tpu.vector_store %arg22[%c40_82, %c0_83], %157 {strides = array<i32>} : memref<64x128xf32, #tpu.memory_space<vmem>>, vector<16x128xf32>,
    } else {
    }
    %c8 = arith.constant 8 : index
    %c0_2 = arith.constant 0 : index
    %6 = vector.load %arg22[%c8, %c0_2] : memref<64x128xf32, #tpu.memory_space<vmem>>, vector<16x128xf32>
    %c8_i32 = arith.constant 8 : i32
    %7 = arith.subi %c8_i32, %1 : i32
    %8 = arith.index_cast %7 : i32 to index
    %c0_3 = arith.constant 0 : index
    %9 = vector.load %arg22[%8, %c0_3] : memref<64x128xf32, #tpu.memory_space<vmem>>, vector<16x128xf32>
    %c8_i32_4 = arith.constant 8 : i32
    %10 = arith.addi %c8_i32_4, %1 : i32
    %11 = arith.index_cast %10 : i32 to index
    %c0_5 = arith.constant 0 : index
    %12 = vector.load %arg22[%11, %c0_5] : memref<64x128xf32, #tpu.memory_space<vmem>>, vector<16x128xf32>
    %13 = tpu.concatenate %9, %6, %12 in 1 : vector<16x128xf32>, vector<16x128xf32>, vector<16x128xf32> -> vector<16x384xf32>
    %c40 = arith.constant 40 : index
    %c0_6 = arith.constant 0 : index
    %14 = vector.load %arg22[%c40, %c0_6] : memref<64x128xf32, #tpu.memory_space<vmem>>, vector<16x128xf32>
    %c40_i32 = arith.constant 40 : i32
    %15 = arith.subi %c40_i32, %1 : i32
    %16 = arith.index_cast %15 : i32 to index
    %c0_7 = arith.constant 0 : index
    %17 = vector.load %arg22[%16, %c0_7] : memref<64x128xf32, #tpu.memory_space<vmem>>, vector<16x128xf32>
    %c40_i32_8 = arith.constant 40 : i32
    %18 = arith.addi %c40_i32_8, %1 : i32
    %19 = arith.index_cast %18 : i32 to index
    %c0_9 = arith.constant 0 : index
    %20 = vector.load %arg22[%19, %c0_9] : memref<64x128xf32, #tpu.memory_space<vmem>>, vector<16x128xf32>
    %21 = tpu.concatenate %17, %14, %20 in 1 : vector<16x128xf32>, vector<16x128xf32>, vector<16x128xf32> -> vector<16x384xf32>
    %22 = tpu.concatenate %6, %14 in 0 : vector<16x128xf32>, vector<16x128xf32> -> vector<32x128xf32>
    %23 = tpu.concatenate %13, %21 in 0 : vector<16x384xf32>, vector<16x384xf32> -> vector<32x384xf32>
    %24 = arith.truncf %23 : vector<32x384xf32> to vector<32x384xbf16>
    %c0_10 = arith.constant 0 : index
    %c0_11 = arith.constant 0 : index
    %c0_12 = arith.constant 0 : index
    %25 = vector.load %arg8[%c0_10, %c0_11, %c0_12] : memref<1x384x128xbf16, #tpu.memory_space<vmem>>, vector<1x384x128xbf16>
    %26 = vector.shape_cast %25 : vector<1x384x128xbf16> to vector<384x128xbf16>
    %cst = arith.constant dense<0.000000e+00> : vector<32x128xf32>
    %27 = tpu.matmul %24, %26, %cst {dimension_numbers = #tpu.dot_dimension_numbers<[1], [0], [0], [1], [0, 0, 1, 1], [], []>} : vector<32x384xbf16>, vector<384x128xbf16>, vector<32x128xf32> -> vector<32x128xf32>
    %c0_13 = arith.constant 0 : index
    %c0_14 = arith.constant 0 : index
    %c0_15 = arith.constant 0 : index
    %28 = vector.load %arg9[%c0_13, %c0_14, %c0_15] : memref<1x1x128xf32, #tpu.memory_space<vmem>>, vector<1x1x128xf32>
    %29 = vector.shape_cast %28 : vector<1x1x128xf32> to vector<1x128xf32>
    %30 = vector.broadcast %29 : vector<1x128xf32> to vector<32x128xf32>
    %31 = arith.addf %27, %30 : vector<32x128xf32>
    %cst_16 = arith.constant 0.000000e+00 : f32
    %32 = vector.broadcast %cst_16 : f32 to vector<32x128xf32>
    %33 = arith.maximumf %31, %32 : vector<32x128xf32>
    %34 = vector.shape_cast %33 : vector<32x128xf32> to vector<2x16x128xf32>
    %cst_17 = arith.constant dense<0.000000e+00> : vector<2x128xf32>
    %35 = vector.multi_reduction <add>, %34, %cst_17 [1] : vector<2x16x128xf32> to vector<2x128xf32>
    %36 = vector.shape_cast %35 : vector<2x128xf32> to vector<2x1x128xf32>
    %cst_18 = arith.constant 1.600000e+01 : f32
    %37 = vector.broadcast %cst_18 : f32 to vector<2x1x128xf32>
    %38 = arith.divf %36, %37 : vector<2x1x128xf32>
    %39 = vector.broadcast %38 : vector<2x1x128xf32> to vector<2x16x128xf32>
    %40 = arith.subf %34, %39 : vector<2x16x128xf32>
    %41 = arith.mulf %40, %40 : vector<2x16x128xf32>
    %cst_19 = arith.constant dense<0.000000e+00> : vector<2x128xf32>
    %42 = vector.multi_reduction <add>, %41, %cst_19 [1] : vector<2x16x128xf32> to vector<2x128xf32>
    %43 = vector.shape_cast %42 : vector<2x128xf32> to vector<2x1x128xf32>
    %cst_20 = arith.constant 1.600000e+01 : f32
    %44 = vector.broadcast %cst_20 : f32 to vector<2x1x128xf32>
    %45 = arith.divf %43, %44 : vector<2x1x128xf32>
    %46 = vector.broadcast %38 : vector<2x1x128xf32> to vector<2x16x128xf32>
    %47 = arith.subf %34, %46 : vector<2x16x128xf32>
    %cst_21 = arith.constant 9.99999974E-6 : f32
    %48 = vector.broadcast %cst_21 : f32 to vector<2x1x128xf32>
    %49 = arith.addf %45, %48 : vector<2x1x128xf32>
    %50 = math.rsqrt %49 : vector<2x1x128xf32>
    %51 = vector.broadcast %50 : vector<2x1x128xf32> to vector<2x16x128xf32>
    %52 = arith.mulf %47, %51 : vector<2x16x128xf32>
    %53 = vector.shape_cast %52 : vector<2x16x128xf32> to vector<32x128xf32>
    %54 = arith.truncf %53 : vector<32x128xf32> to vector<32x128xbf16>
    %c0_22 = arith.constant 0 : index
    %c0_23 = arith.constant 0 : index
    %c0_24 = arith.constant 0 : index
    %55 = vector.load %arg10[%c0_22, %c0_23, %c0_24] : memref<1x128x256xbf16, #tpu.memory_space<vmem>>, vector<1x128x256xbf16>
    %56 = vector.shape_cast %55 : vector<1x128x256xbf16> to vector<128x256xbf16>
    %cst_25 = arith.constant dense<0.000000e+00> : vector<32x256xf32>
    %57 = tpu.matmul %54, %56, %cst_25 {dimension_numbers = #tpu.dot_dimension_numbers<[1], [0], [0], [1], [0, 0, 1, 1], [], []>} : vector<32x128xbf16>, vector<128x256xbf16>, vector<32x256xf32> -> vector<32x256xf32>
    %c0_26 = arith.constant 0 : index
    %c0_27 = arith.constant 0 : index
    %c0_28 = arith.constant 0 : index
    %58 = vector.load %arg11[%c0_26, %c0_27, %c0_28] : memref<1x1x256xf32, #tpu.memory_space<vmem>>, vector<1x1x256xf32>
    %59 = vector.shape_cast %58 : vector<1x1x256xf32> to vector<1x256xf32>
    %60 = vector.broadcast %59 : vector<1x256xf32> to vector<32x256xf32>
    %61 = arith.addf %57, %60 : vector<32x256xf32>
    %62 = arith.negf %61 : vector<32x256xf32>
    %63 = math.exp %62 : vector<32x256xf32>
    %cst_29 = arith.constant 1.000000e+00 : f32
    %64 = vector.broadcast %cst_29 : f32 to vector<32x256xf32>
    %65 = arith.addf %64, %63 : vector<32x256xf32>
    %66 = arith.divf %64, %65 : vector<32x256xf32>
    %67 = vector.extract_strided_slice %66 {offsets = [0, 0], sizes = [32, 128], strides = [1, 1]} : vector<32x256xf32> to vector<32x128xf32>
    %68 = vector.extract_strided_slice %66 {offsets = [0, 128], sizes = [32, 128], strides = [1, 1]} : vector<32x256xf32> to vector<32x128xf32>
    %c0_30 = arith.constant 0 : index
    %c0_31 = arith.constant 0 : index
    %69 = vector.load %arg3[%c0_30, %c0_31] : memref<32x128xbf16, #tpu.memory_space<vmem>>, vector<32x128xbf16>
    %c0_32 = arith.constant 0 : index
    %c0_33 = arith.constant 0 : index
    %c0_34 = arith.constant 0 : index
    %70 = vector.load %arg12[%c0_32, %c0_33, %c0_34] : memref<1x128x128xbf16, #tpu.memory_space<vmem>>, vector<1x128x128xbf16>
    %71 = vector.shape_cast %70 : vector<1x128x128xbf16> to vector<128x128xbf16>
    %cst_35 = arith.constant dense<0.000000e+00> : vector<32x128xf32>
    %72 = tpu.matmul %69, %71, %cst_35 {dimension_numbers = #tpu.dot_dimension_numbers<[1], [0], [0], [1], [0, 0, 1, 1], [], []>} : vector<32x128xbf16>, vector<128x128xbf16>, vector<32x128xf32> -> vector<32x128xf32>
    %c0_36 = arith.constant 0 : index
    %c0_37 = arith.constant 0 : index
    %c0_38 = arith.constant 0 : index
    %73 = vector.load %arg13[%c0_36, %c0_37, %c0_38] : memref<1x1x128xf32, #tpu.memory_space<vmem>>, vector<1x1x128xf32>
    %74 = vector.shape_cast %73 : vector<1x1x128xf32> to vector<1x128xf32>
    %75 = vector.broadcast %74 : vector<1x128xf32> to vector<32x128xf32>
    %76 = arith.addf %72, %75 : vector<32x128xf32>
    %c0_39 = arith.constant 0 : index
    %c0_40 = arith.constant 0 : index
    %77 = vector.load %arg5[%c0_39, %c0_40] : memref<128x128xbf16, #tpu.memory_space<vmem>>, vector<128x128xbf16>
    %78 = arith.truncf %67 : vector<32x128xf32> to vector<32x128xbf16>
    %79 = arith.truncf %68 : vector<32x128xf32> to vector<32x128xbf16>
    %80 = arith.truncf %76 : vector<32x128xf32> to vector<32x128xbf16>
    %81 = vector.shape_cast %68 : vector<32x128xf32> to vector<2x16x128xf32>
    %cst_41 = arith.constant dense<0.000000e+00> : vector<2x128xf32>
    %82 = vector.multi_reduction <add>, %81, %cst_41 [1] : vector<2x16x128xf32> to vector<2x128xf32>
    %83 = vector.shape_cast %82 : vector<2x128xf32> to vector<2x1x128xf32>
    %cst_42 = arith.constant 9.99999997E-7 : f32
    %84 = vector.broadcast %cst_42 : f32 to vector<2x1x128xf32>
    %85 = arith.addf %83, %84 : vector<2x1x128xf32>
    %86 = vector.shape_cast %67 : vector<32x128xf32> to vector<2x16x128xf32>
    %87 = vector.broadcast %85 : vector<2x1x128xf32> to vector<2x16x128xf32>
    %88 = arith.mulf %86, %87 : vector<2x16x128xf32>
    %89 = vector.shape_cast %88 : vector<2x16x128xf32> to vector<32x128xf32>
    %90 = arith.truncf %89 : vector<32x128xf32> to vector<32x128xbf16>
    %cst_43 = arith.constant dense<0.000000e+00> : vector<32x128xf32>
    %91 = tpu.matmul %90, %77, %cst_43 {dimension_numbers = #tpu.dot_dimension_numbers<[1], [0], [0], [1], [0, 0, 1, 1], [], []>} : vector<32x128xbf16>, vector<128x128xbf16>, vector<32x128xf32> -> vector<32x128xf32>
    %92 = vector.extract_strided_slice %79 {offsets = [0, 0], sizes = [16, 128], strides = [1, 1]} : vector<32x128xbf16> to vector<16x128xbf16>
    %93 = vector.extract_strided_slice %80 {offsets = [0, 0], sizes = [16, 128], strides = [1, 1]} : vector<32x128xbf16> to vector<16x128xbf16>
    %cst_44 = arith.constant dense<0.000000e+00> : vector<128x128xf32>
    %94 = tpu.matmul %92, %93, %cst_44 {dimension_numbers = #tpu.dot_dimension_numbers<[0], [0], [1], [1], [0, 1, 1, 1], [], []>} : vector<16x128xbf16>, vector<16x128xbf16>, vector<128x128xf32> -> vector<128x128xf32>
    %95 = arith.truncf %94 : vector<128x128xf32> to vector<128x128xbf16>
    %96 = arith.mulf %95, %77 : vector<128x128xbf16>
    %97 = vector.extract_strided_slice %78 {offsets = [0, 0], sizes = [16, 128], strides = [1, 1]} : vector<32x128xbf16> to vector<16x128xbf16>
    %cst_45 = arith.constant dense<0.000000e+00> : vector<16x128xf32>
    %98 = tpu.matmul %97, %96, %cst_45 {dimension_numbers = #tpu.dot_dimension_numbers<[1], [0], [0], [1], [0, 0, 1, 1], [], []>} : vector<16x128xbf16>, vector<128x128xbf16>, vector<16x128xf32> -> vector<16x128xf32>
    %99 = vector.extract_strided_slice %79 {offsets = [16, 0], sizes = [16, 128], strides = [1, 1]} : vector<32x128xbf16> to vector<16x128xbf16>
    %100 = vector.extract_strided_slice %80 {offsets = [16, 0], sizes = [16, 128], strides = [1, 1]} : vector<32x128xbf16> to vector<16x128xbf16>
    %cst_46 = arith.constant dense<0.000000e+00> : vector<128x128xf32>
    %101 = tpu.matmul %99, %100, %cst_46 {dimension_numbers = #tpu.dot_dimension_numbers<[0], [0], [1], [1], [0, 1, 1, 1], [], []>} : vector<16x128xbf16>, vector<16x128xbf16>, vector<128x128xf32> -> vector<128x128xf32>
    %102 = arith.truncf %101 : vector<128x128xf32> to vector<128x128xbf16>
    %103 = arith.mulf %102, %77 : vector<128x128xbf16>
    %104 = vector.extract_strided_slice %78 {offsets = [16, 0], sizes = [16, 128], strides = [1, 1]} : vector<32x128xbf16> to vector<16x128xbf16>
    %cst_47 = arith.constant dense<0.000000e+00> : vector<16x128xf32>
    %105 = tpu.matmul %104, %103, %cst_47 {dimension_numbers = #tpu.dot_dimension_numbers<[1], [0], [0], [1], [0, 0, 1, 1], [], []>} : vector<16x128xbf16>, vector<128x128xbf16>, vector<16x128xf32> -> vector<16x128xf32>
    %106 = tpu.concatenate %98, %105 in 0 : vector<16x128xf32>, vector<16x128xf32> -> vector<32x128xf32>
    %107 = tpu.iota {dimensions = array<i32: 1>} : vector<1x128xi32>
    %c32_i32 = arith.constant 32 : i32
    %108 = vector.broadcast %c32_i32 : i32 to vector<1x128xi32>
    %109 = arith.cmpi sge, %107, %108 : vector<1x128xi32>
    %cst_48 = arith.constant 1.000000e+00 : f32
    %cst_49 = arith.constant 0.000000e+00 : f32
    %110 = vector.broadcast %cst_48 : f32 to vector<1x128xf32>
    %111 = vector.broadcast %cst_49 : f32 to vector<1x128xf32>
    %112 = arith.select %109, %110, %111 : vector<1x128xi1>, vector<1x128xf32>
    %113 = vector.broadcast %112 : vector<1x128xf32> to vector<32x128xf32>
    %114 = arith.addf %91, %113 : vector<32x128xf32>
    %115 = arith.divf %106, %114 : vector<32x128xf32>
    %116 = arith.truncf %115 : vector<32x128xf32> to vector<32x128xbf16>
    %c0_50 = arith.constant 0 : index
    %c0_51 = arith.constant 0 : index
    %c0_52 = arith.constant 0 : index
    %117 = vector.load %arg14[%c0_50, %c0_51, %c0_52] : memref<1x128x128xbf16, #tpu.memory_space<vmem>>, vector<1x128x128xbf16>
    %118 = vector.shape_cast %117 : vector<1x128x128xbf16> to vector<128x128xbf16>
    %cst_53 = arith.constant dense<0.000000e+00> : vector<32x128xf32>
    %119 = tpu.matmul %116, %118, %cst_53 {dimension_numbers = #tpu.dot_dimension_numbers<[1], [0], [0], [1], [0, 0, 1, 1], [], []>} : vector<32x128xbf16>, vector<128x128xbf16>, vector<32x128xf32> -> vector<32x128xf32>
    %c0_54 = arith.constant 0 : index
    %c0_55 = arith.constant 0 : index
    %c0_56 = arith.constant 0 : index
    %120 = vector.load %arg15[%c0_54, %c0_55, %c0_56] : memref<1x1x128xf32, #tpu.memory_space<vmem>>, vector<1x1x128xf32>
    %121 = vector.shape_cast %120 : vector<1x1x128xf32> to vector<1x128xf32>
    %122 = vector.broadcast %121 : vector<1x128xf32> to vector<32x128xf32>
    %123 = arith.addf %119, %122 : vector<32x128xf32>
    %124 = vector.broadcast %2 : vector<32x1xf32> to vector<32x128xf32>
    %125 = arith.mulf %123, %124 : vector<32x128xf32>
    %cst_57 = arith.constant 1.000000e+00 : f32
    %126 = vector.broadcast %cst_57 : f32 to vector<32x128xf32>
    %127 = arith.mulf %126, %125 : vector<32x128xf32>
    %128 = arith.addf %127, %33 : vector<32x128xf32>
    %129 = arith.truncf %128 : vector<32x128xf32> to vector<32x128xbf16>
    %c0_58 = arith.constant 0 : index
    %c0_59 = arith.constant 0 : index
    %c0_60 = arith.constant 0 : index
    %130 = vector.load %arg16[%c0_58, %c0_59, %c0_60] : memref<1x128x128xbf16, #tpu.memory_space<vmem>>, vector<1x128x128xbf16>
    %131 = vector.shape_cast %130 : vector<1x128x128xbf16> to vector<128x128xbf16>
    %cst_61 = arith.constant dense<0.000000e+00> : vector<32x128xf32>
    %132 = tpu.matmul %129, %131, %cst_61 {dimension_numbers = #tpu.dot_dimension_numbers<[1], [0], [0], [1], [0, 0, 1, 1], [], []>} : vector<32x128xbf16>, vector<128x128xbf16>, vector<32x128xf32> -> vector<32x128xf32>
    %c0_62 = arith.constant 0 : index
    %c0_63 = arith.constant 0 : index
    %c0_64 = arith.constant 0 : index
    %133 = vector.load %arg17[%c0_62, %c0_63, %c0_64] : memref<1x1x128xf32, #tpu.memory_space<vmem>>, vector<1x1x128xf32>
    %134 = vector.shape_cast %133 : vector<1x1x128xf32> to vector<1x128xf32>
    %135 = vector.broadcast %134 : vector<1x128xf32> to vector<32x128xf32>
    %136 = arith.addf %132, %135 : vector<32x128xf32>
    %137 = arith.addf %22, %136 : vector<32x128xf32>
    %138 = vector.broadcast %2 : vector<32x1xf32> to vector<32x128xf32>
    %139 = arith.mulf %137, %138 : vector<32x128xf32>
    %140 = vector.extract_strided_slice %139 {offsets = [0, 0], sizes = [16, 128], strides = [1, 1]} : vector<32x128xf32> to vector<16x128xf32>
    %c8_65 = arith.constant 8 : index
    %c0_66 = arith.constant 0 : index
    %141 = vector.load %arg22[%c8_65, %c0_66] : memref<64x128xf32, #tpu.memory_space<vmem>>, vector<16x128xf32>
    tpu.vector_store %arg22[%c8_65, %c0_66], %140 {strides = array<i32>} : memref<64x128xf32, #tpu.memory_space<vmem>>, vector<16x128xf32>,
    %142 = vector.extract_strided_slice %139 {offsets = [16, 0], sizes = [16, 128], strides = [1, 1]} : vector<32x128xf32> to vector<16x128xf32>
    %c40_67 = arith.constant 40 : index
    %c0_68 = arith.constant 0 : index
    %143 = vector.load %arg22[%c40_67, %c0_68] : memref<64x128xf32, #tpu.memory_space<vmem>>, vector<16x128xf32>
    tpu.vector_store %arg22[%c40_67, %c0_68], %142 {strides = array<i32>} : memref<64x128xf32, #tpu.memory_space<vmem>>, vector<16x128xf32>,
    %c1_i32 = arith.constant 1 : i32
    %144 = arith.cmpi eq, %arg0, %c1_i32 : i32
    %145 = arith.extui %144 : i1 to i32
    %c0_i32_69 = arith.constant 0 : i32
    %146 = arith.cmpi ne, %145, %c0_i32_69 : i32
    scf.if %146 {
      %c0_70 = arith.constant 0 : index
      %c0_71 = arith.constant 0 : index
      %147 = vector.load %arg20[%c0_70, %c0_71] : memref<32x128xf32, #tpu.memory_space<vmem>>, vector<32x128xf32>
      tpu.vector_store %arg20[%c0_70, %c0_71], %139 {strides = array<i32>} : memref<32x128xf32, #tpu.memory_space<vmem>>, vector<32x128xf32>,
      %148 = arith.truncf %139 : vector<32x128xf32> to vector<32x128xbf16>
      %c0_72 = arith.constant 0 : index
      %c0_73 = arith.constant 0 : index
      %149 = vector.load %arg18[%c0_72, %c0_73] : memref<8x128xbf16, #tpu.memory_space<vmem>>, vector<8x128xbf16>
      %150 = vector.extract_strided_slice %148 {offsets = [0, 0], sizes = [16, 128], strides = [1, 1]} : vector<32x128xbf16> to vector<16x128xbf16>
      %cst_74 = arith.constant dense<0.000000e+00> : vector<8x16xf32>
      %151 = tpu.matmul %149, %150, %cst_74 {dimension_numbers = #tpu.dot_dimension_numbers<[1], [1], [0], [0], [0, 0, 1, 0], [], []>} : vector<8x128xbf16>, vector<16x128xbf16>, vector<8x16xf32> -> vector<8x16xf32>
      %c0_75 = arith.constant 0 : index
      %c0_76 = arith.constant 0 : index
      %152 = vector.load %arg19[%c0_75, %c0_76] : memref<8x1xf32, #tpu.memory_space<vmem>>, vector<8x1xf32>
      %153 = vector.broadcast %152 : vector<8x1xf32> to vector<8x16xf32>
      %154 = arith.addf %151, %153 : vector<8x16xf32>
      %c0_77 = arith.constant 0 : index
      %c0_78 = arith.constant 0 : index
      %c0_79 = arith.constant 0 : index
      %155 = vector.load %arg21[%c0_77, %c0_78, %c0_79] : memref<2x8x16xf32, #tpu.memory_space<vmem>>, vector<1x8x16xf32>
      %156 = vector.shape_cast %155 : vector<1x8x16xf32> to vector<8x16xf32>
      %157 = vector.shape_cast %154 : vector<8x16xf32> to vector<1x8x16xf32>
      tpu.vector_store %arg21[%c0_77, %c0_78, %c0_79], %157 {strides = array<i32>} : memref<2x8x16xf32, #tpu.memory_space<vmem>>, vector<1x8x16xf32>,
      %c0_80 = arith.constant 0 : index
      %c0_81 = arith.constant 0 : index
      %158 = vector.load %arg18[%c0_80, %c0_81] : memref<8x128xbf16, #tpu.memory_space<vmem>>, vector<8x128xbf16>
      %159 = vector.extract_strided_slice %148 {offsets = [16, 0], sizes = [16, 128], strides = [1, 1]} : vector<32x128xbf16> to vector<16x128xbf16>
      %cst_82 = arith.constant dense<0.000000e+00> : vector<8x16xf32>
      %160 = tpu.matmul %158, %159, %cst_82 {dimension_numbers = #tpu.dot_dimension_numbers<[1], [1], [0], [0], [0, 0, 1, 0], [], []>} : vector<8x128xbf16>, vector<16x128xbf16>, vector<8x16xf32> -> vector<8x16xf32>
      %c0_83 = arith.constant 0 : index
      %c0_84 = arith.constant 0 : index
      %161 = vector.load %arg19[%c0_83, %c0_84] : memref<8x1xf32, #tpu.memory_space<vmem>>, vector<8x1xf32>
      %162 = vector.broadcast %161 : vector<8x1xf32> to vector<8x16xf32>
      %163 = arith.addf %160, %162 : vector<8x16xf32>
      %c1 = arith.constant 1 : index
      %c0_85 = arith.constant 0 : index
      %c0_86 = arith.constant 0 : index
      %164 = vector.load %arg21[%c1, %c0_85, %c0_86] : memref<2x8x16xf32, #tpu.memory_space<vmem>>, vector<1x8x16xf32>
      %165 = vector.shape_cast %164 : vector<1x8x16xf32> to vector<8x16xf32>
      %166 = vector.shape_cast %163 : vector<8x16xf32> to vector<1x8x16xf32>
      tpu.vector_store %arg21[%c1, %c0_85, %c0_86], %166 {strides = array<i32>} : memref<2x8x16xf32, #tpu.memory_space<vmem>>, vector<1x8x16xf32>,
    } else {
    }
    return
  }
  func.func @transform_0(%arg0: i32, %arg1: memref<2xi32, #tpu.memory_space<smem>>) -> (i32, i32) {
    %c0_i32 = arith.constant 0 : i32
    %c0_i32_0 = arith.constant 0 : i32
    %c0_i32_1 = arith.constant 0 : i32
    return %c0_i32, %c0_i32_0 : i32, i32
  }
  func.func @transform_1(%arg0: i32, %arg1: memref<2xi32, #tpu.memory_space<smem>>) -> (i32, i32) {
    %c0_i32 = arith.constant 0 : i32
    %c0_i32_0 = arith.constant 0 : i32
    %c0_i32_1 = arith.constant 0 : i32
    return %c0_i32, %c0_i32_0 : i32, i32
  }
  func.func @transform_2(%arg0: i32, %arg1: memref<2xi32, #tpu.memory_space<smem>>) -> (i32, i32) {
    %c0_i32 = arith.constant 0 : i32
    %c0_i32_0 = arith.constant 0 : i32
    %c0_i32_1 = arith.constant 0 : i32
    return %c0_i32, %c0_i32_0 : i32, i32
  }
  func.func @transform_3(%arg0: i32, %arg1: memref<2xi32, #tpu.memory_space<smem>>) -> (i32, i32) {
    %c0_i32 = arith.constant 0 : i32
    %c0_i32_0 = arith.constant 0 : i32
    %c0_i32_1 = arith.constant 0 : i32
    return %c0_i32, %c0_i32_0 : i32, i32
  }
  func.func @transform_4(%arg0: i32, %arg1: memref<2xi32, #tpu.memory_space<smem>>) -> (i32, i32) {
    %c0_i32 = arith.constant 0 : i32
    %c0_i32_0 = arith.constant 0 : i32
    %c0_i32_1 = arith.constant 0 : i32
    return %c0_i32, %c0_i32_0 : i32, i32
  }
  func.func @transform_5(%arg0: i32, %arg1: memref<2xi32, #tpu.memory_space<smem>>) -> (i32, i32) {
    %c0_i32 = arith.constant 0 : i32
    %c0_i32_0 = arith.constant 0 : i32
    %c0_i32_1 = arith.constant 0 : i32
    return %c0_i32, %c0_i32_0 : i32, i32
  }
  func.func @transform_6(%arg0: i32, %arg1: memref<2xi32, #tpu.memory_space<smem>>) -> (i32, i32, i32) {
    %c0_i32 = arith.constant 0 : i32
    %c0_i32_0 = arith.constant 0 : i32
    %c0_i32_1 = arith.constant 0 : i32
    return %arg0, %c0_i32, %c0_i32_0 : i32, i32, i32
  }
  func.func @transform_7(%arg0: i32, %arg1: memref<2xi32, #tpu.memory_space<smem>>) -> (i32, i32, i32) {
    %c0_i32 = arith.constant 0 : i32
    %c0_i32_0 = arith.constant 0 : i32
    %c0_i32_1 = arith.constant 0 : i32
    return %arg0, %c0_i32, %c0_i32_0 : i32, i32, i32
  }
  func.func @transform_8(%arg0: i32, %arg1: memref<2xi32, #tpu.memory_space<smem>>) -> (i32, i32, i32) {
    %c0_i32 = arith.constant 0 : i32
    %c0_i32_0 = arith.constant 0 : i32
    %c0_i32_1 = arith.constant 0 : i32
    return %arg0, %c0_i32, %c0_i32_0 : i32, i32, i32
  }
  func.func @transform_9(%arg0: i32, %arg1: memref<2xi32, #tpu.memory_space<smem>>) -> (i32, i32, i32) {
    %c0_i32 = arith.constant 0 : i32
    %c0_i32_0 = arith.constant 0 : i32
    %c0_i32_1 = arith.constant 0 : i32
    return %arg0, %c0_i32, %c0_i32_0 : i32, i32, i32
  }
  func.func @transform_10(%arg0: i32, %arg1: memref<2xi32, #tpu.memory_space<smem>>) -> (i32, i32, i32) {
    %c0_i32 = arith.constant 0 : i32
    %c0_i32_0 = arith.constant 0 : i32
    %c0_i32_1 = arith.constant 0 : i32
    return %arg0, %c0_i32, %c0_i32_0 : i32, i32, i32
  }
  func.func @transform_11(%arg0: i32, %arg1: memref<2xi32, #tpu.memory_space<smem>>) -> (i32, i32, i32) {
    %c0_i32 = arith.constant 0 : i32
    %c0_i32_0 = arith.constant 0 : i32
    %c0_i32_1 = arith.constant 0 : i32
    return %arg0, %c0_i32, %c0_i32_0 : i32, i32, i32
  }
  func.func @transform_12(%arg0: i32, %arg1: memref<2xi32, #tpu.memory_space<smem>>) -> (i32, i32, i32) {
    %c0_i32 = arith.constant 0 : i32
    %c0_i32_0 = arith.constant 0 : i32
    %c0_i32_1 = arith.constant 0 : i32
    return %arg0, %c0_i32, %c0_i32_0 : i32, i32, i32
  }
  func.func @transform_13(%arg0: i32, %arg1: memref<2xi32, #tpu.memory_space<smem>>) -> (i32, i32, i32) {
    %c0_i32 = arith.constant 0 : i32
    %c0_i32_0 = arith.constant 0 : i32
    %c0_i32_1 = arith.constant 0 : i32
    return %arg0, %c0_i32, %c0_i32_0 : i32, i32, i32
  }
  func.func @transform_14(%arg0: i32, %arg1: memref<2xi32, #tpu.memory_space<smem>>) -> (i32, i32, i32) {
    %c0_i32 = arith.constant 0 : i32
    %c0_i32_0 = arith.constant 0 : i32
    %c0_i32_1 = arith.constant 0 : i32
    return %arg0, %c0_i32, %c0_i32_0 : i32, i32, i32
  }
  func.func @transform_15(%arg0: i32, %arg1: memref<2xi32, #tpu.memory_space<smem>>) -> (i32, i32, i32) {
    %c0_i32 = arith.constant 0 : i32
    %c0_i32_0 = arith.constant 0 : i32
    %c0_i32_1 = arith.constant 0 : i32
    return %arg0, %c0_i32, %c0_i32_0 : i32, i32, i32
  }
  func.func @transform_16(%arg0: i32, %arg1: memref<2xi32, #tpu.memory_space<smem>>) -> (i32, i32) {
    %c0_i32 = arith.constant 0 : i32
    %c0_i32_0 = arith.constant 0 : i32
    %c0_i32_1 = arith.constant 0 : i32
    return %c0_i32, %c0_i32_0 : i32, i32
  }
  func.func @transform_17(%arg0: i32, %arg1: memref<2xi32, #tpu.memory_space<smem>>) -> (i32, i32) {
    %c0_i32 = arith.constant 0 : i32
    %c0_i32_0 = arith.constant 0 : i32
    %c0_i32_1 = arith.constant 0 : i32
    return %c0_i32, %c0_i32_0 : i32, i32
  }
  func.func @transform_18(%arg0: i32, %arg1: memref<2xi32, #tpu.memory_space<smem>>) -> (i32, i32) {
    %c0_i32 = arith.constant 0 : i32
    %c0_i32_0 = arith.constant 0 : i32
    %c0_i32_1 = arith.constant 0 : i32
    return %c0_i32, %c0_i32_0 : i32, i32
  }
  func.func @transform_19(%arg0: i32, %arg1: memref<2xi32, #tpu.memory_space<smem>>) -> (i32, i32, i32) {
    %c0_i32 = arith.constant 0 : i32
    %c0_i32_0 = arith.constant 0 : i32
    %c0_i32_1 = arith.constant 0 : i32
    %c0_i32_2 = arith.constant 0 : i32
    return %c0_i32, %c0_i32_0, %c0_i32_1 : i32, i32, i32
  }
}

</mosaic_0001>

<llo_original>
// kernel: decoder_forward.1
$region0: #{decoder_forward.1}
  #allocation0 [shape = 'u32[]', space=smem, size = 0x4, offset = 0x4, fixed_abs, tag = 'smem constant byte address 0x4 - core index']
  #allocation1 [shape = 'u32[144,128]{1,0:T(1,128)}', space=vmem, size = 0x12000, scoped, tag = 'internal scratch']
  #allocation2 [shape = 'f32[64,128]{1,0:T(8,128)}', space=vmem, size = 0x8000, scoped, tag = 'scratch operand']
  #allocation3 [shape = 's32[1]{0}', space=sflag, size = 0x4, scoped, tag = 'scoped memory for decoder_forward.1']
  #allocation4 [shape = 'u8[512]{0}', space=smem, size = 0x200, scoped, tag = 'prefetched SMEM operand 0']
  %s0 = inlined_call_operand.vmem [shape: s32[2], index: 0, kind: input, shape index: {}]
  %s1 = inlined_call_operand.vmem [shape: bf16[32,128], index: 1, kind: input, shape index: {}]
  %s2 = inlined_call_operand.vmem [shape: bf16[32,128], index: 2, kind: input, shape index: {}]
  %s3 = inlined_call_operand.vmem [shape: f32[32,1], index: 3, kind: input, shape index: {}]
  %s4 = inlined_call_operand.vmem [shape: bf16[128,128], index: 4, kind: input, shape index: {}]
  %s5 = inlined_call_operand.hbm [shape: bf16[128,128], index: 5, kind: input, shape index: {}]
  %s6 = inlined_call_operand.vmem [shape: f32[1,128], index: 6, kind: input, shape index: {}]
  %s7 = inlined_call_operand.hbm [shape: bf16[2,384,128], index: 7, kind: input, shape index: {}]
  %s8 = inlined_call_operand.vmem [shape: f32[2,1,128], index: 8, kind: input, shape index: {}]
  %s9 = inlined_call_operand.hbm [shape: bf16[2,128,256], index: 9, kind: input, shape index: {}]
  %s10 = inlined_call_operand.vmem [shape: f32[2,1,256], index: 10, kind: input, shape index: {}]
  %s11 = inlined_call_operand.vmem [shape: bf16[2,128,128], index: 11, kind: input, shape index: {}]
  %s12 = inlined_call_operand.vmem [shape: f32[2,1,128], index: 12, kind: input, shape index: {}]
  %s13 = inlined_call_operand.hbm [shape: bf16[2,128,128], index: 13, kind: input, shape index: {}]
  %s14 = inlined_call_operand.vmem [shape: f32[2,1,128], index: 14, kind: input, shape index: {}]
  %s15 = inlined_call_operand.hbm [shape: bf16[2,128,128], index: 15, kind: input, shape index: {}]
  %s16 = inlined_call_operand.vmem [shape: f32[2,1,128], index: 16, kind: input, shape index: {}]
  %s17 = inlined_call_operand.vmem [shape: bf16[8,128], index: 17, kind: input, shape index: {}]
  %s18 = inlined_call_operand.vmem [shape: f32[8,1], index: 18, kind: input, shape index: {}]
  %s19 = inlined_call_operand.vmem [shape: f32[32,128], index: 19, kind: output, shape index: {0}]
  %s20 = inlined_call_operand.vmem [shape: f32[2,8,16], index: 20, kind: output, shape index: {1}]
  %21 = xla_tuple %s19, %s20
  %s22 = sld [smem:[#allocation0]]
  $region141: #{decoder_forward.1} parent=0
    _
  %s24 = ssub.s32 1, %s22
  %s25 = scalar_select 0, %s24, %s22
  %s26 = sshll.u32 %s0, 4
  %s27 = int_to_ptr.vmem [resolvable:$true] %s26
  %29 = dma.vmem_to_smem %s27, 16, [#allocation4], [#allocation3]
  %30 = dma.done [#allocation3], 16
  %31 = sfence
  $region1: #{decoder_forward.1} parent=0
    #allocation5 [shape = 'u8[32768]{0}', space=vmem, size = 0x8000, scoped, tag = 'input window, operand 5, single buffered']
    #allocation6 [shape = 's32[2]{0}', space=sflag, size = 0x8, scoped, tag = 'scoped memory for decoder_forward.1']
    #allocation7 [shape = 'u8[196608]{0}', space=vmem, size = 0x30000, scoped, tag = 'input window, operand 7']
    #allocation8 [shape = 's32[2]{0}', space=sflag, size = 0x8, scoped, tag = 'scoped memory for decoder_forward.1']
    #allocation9 [shape = 'u8[131072]{0}', space=vmem, size = 0x20000, scoped, tag = 'input window, operand 9']
    #allocation10 [shape = 'u8[65536]{0}', space=vmem, size = 0x10000, scoped, tag = 'input window, operand 13']
    #allocation11 [shape = 's32[2]{0}', space=sflag, size = 0x8, scoped, tag = 'scoped memory for decoder_forward.1']
    #allocation12 [shape = 'u8[65536]{0}', space=vmem, size = 0x10000, scoped, tag = 'input window, operand 15']
    %32 = vsyncpa [#allocation6], 0
    %33 = vsyncpa [#allocation8], 0
    %s34 = scalar_lea.sflag [#allocation8], 1
    %35 = vsyncpa %s34, 0
    %36 = vsyncpa [#allocation11], 0
    %s37 = scalar_lea.sflag [#allocation11], 1
    %38 = vsyncpa %s37, 0
    loop: start=0, step=1, limit=4
    $region2: #{decoder_forward.1} parent=1 // loop_pre_header
      _
    $region3: #{decoder_forward.1} parent=1 // loop_header
      %s40 = sphi 0, %s44
      %p41 = scmp.ge.s32.totalorder %s40, 4
      %s48 = sphi 0, %s48
      %s50 = sphi 0, %s48
      %s51 = sphi 0, %s50
      %s65 = sphi 0, %s51
      %s69 = sphi 0, %s69
      %s71 = sphi 0, %s69
      %s72 = sphi 0, %s71
      %s86 = sphi 0, %s72
      %s90 = sphi 0, %s90
      %s92 = sphi 0, %s90
      %s93 = sphi 0, %s92
      %s107 = sphi 0, %s93
      %s111 = sphi 0, %s111
      %s113 = sphi 0, %s111
      %s114 = sphi 0, %s113
      %s128 = sphi 0, %s114
      %s132 = sphi 0, %s132
      %s134 = sphi 0, %s132
      %s135 = sphi 0, %s134
      %s149 = sphi 0, %s135
      %s153 = sphi 0, %s153
      %s155 = sphi 0, %s153
      %s156 = sphi 0, %s155
      %s170 = sphi 0, %s156
      %s176 = sphi 0, %s178
      %s179 = sphi 0, %s176
      %s180 = sphi 0, %s179
      %s196 = sphi 0, %s180
      %s202 = sphi 0, %s204
      %s205 = sphi 0, %s202
      %s206 = sphi 0, %s205
      %s222 = sphi 0, %s206
      %s228 = sphi 0, %s230
      %s231 = sphi 0, %s228
      %s232 = sphi 0, %s231
      %s248 = sphi 0, %s232
      %s254 = sphi 0, %s256
      %s257 = sphi 0, %s254
      %s258 = sphi 0, %s257
      %s274 = sphi 0, %s258
      %s280 = sphi 0, %s282
      %s283 = sphi 0, %s280
      %s284 = sphi 0, %s283
      %s300 = sphi 0, %s284
      %s306 = sphi 0, %s308
      %s309 = sphi 0, %s306
      %s310 = sphi 0, %s309
      %s326 = sphi 0, %s310
      %s332 = sphi 0, %s334
      %s335 = sphi 0, %s332
      %s336 = sphi 0, %s335
      %s352 = sphi 0, %s336
      %s358 = sphi 0, %s360
      %s361 = sphi 0, %s358
      %s362 = sphi 0, %s361
      %s378 = sphi 0, %s362
      %s384 = sphi 0, %s386
      %s387 = sphi 0, %s384
      %s388 = sphi 0, %s387
      %s404 = sphi 0, %s388
      %s410 = sphi 0, %s412
      %s413 = sphi 0, %s410
      %s414 = sphi 0, %s413
      %s430 = sphi 0, %s414
      %s434 = sphi 0, %s434
      %s436 = sphi 0, %s434
      %s437 = sphi 0, %s436
      %s451 = sphi 0, %s437
      %s455 = sphi 0, %s455
      %s457 = sphi 0, %s455
      %s458 = sphi 0, %s457
      %s472 = sphi 0, %s458
      %s476 = sphi 0, %s476
      %s478 = sphi 0, %s476
      %s479 = sphi 0, %s478
      %s493 = sphi 0, %s479
      %s497 = sphi 0, %s497
      %s499 = sphi 0, %s497
      %s500 = sphi 0, %s499
      %s514 = sphi 0, %s500
    $region4: #{decoder_forward.1} parent=1 // loop_header_branch
      %43 = sbr.rel (%p41) target = $region8
    $region5: #{decoder_forward.1} parent=1 // loop_body
      %s45 = ssub.s32 %s40, 1
      %s46 = ssub.s32 %s40, 2
      %s47 = sadd.s32 %s40, 1
      %s49 = sadd.s32 %s48, 1
      %p52 = scmp.eq.s32.totalorder %s40, 1
      %p53 = scmp.ne.s32.totalorder %s48, %s50
      %p54 = scmp.eq.s32.totalorder %s40, 0
      %p55 = por %p53, %p54
      %p56 = scmp.ne.s32.totalorder %s48, %s50
      %p57 = scmp.eq.s32.totalorder %s45, 1
      %p58 = por %p56, %p57
      %p59 = scmp.ne.s32.totalorder %s50, %s51
      %p60 = scmp.eq.s32.totalorder %s45, 0
      %p61 = por %p59, %p60
      %p62 = scmp.ne.s32.totalorder %s50, %s51
      %p63 = scmp.eq.s32.totalorder %s46, 1
      %p64 = por %p62, %p63
      %p66 = scmp.ne.s32.totalorder %s51, %s65
      %p67 = scmp.eq.s32.totalorder %s46, 0
      %p68 = por %p66, %p67
      %s70 = sadd.s32 %s69, 1
      %p73 = scmp.eq.s32.totalorder %s40, 1
      %p74 = scmp.ne.s32.totalorder %s69, %s71
      %p75 = scmp.eq.s32.totalorder %s40, 0
      %p76 = por %p74, %p75
      %p77 = scmp.ne.s32.totalorder %s69, %s71
      %p78 = scmp.eq.s32.totalorder %s45, 1
      %p79 = por %p77, %p78
      %p80 = scmp.ne.s32.totalorder %s71, %s72
      %p81 = scmp.eq.s32.totalorder %s45, 0
      %p82 = por %p80, %p81
      %p83 = scmp.ne.s32.totalorder %s71, %s72
      %p84 = scmp.eq.s32.totalorder %s46, 1
      %p85 = por %p83, %p84
      %p87 = scmp.ne.s32.totalorder %s72, %s86
      %p88 = scmp.eq.s32.totalorder %s46, 0
      %p89 = por %p87, %p88
      %s91 = sadd.s32 %s90, 1
      %p94 = scmp.eq.s32.totalorder %s40, 1
      %p95 = scmp.ne.s32.totalorder %s90, %s92
      %p96 = scmp.eq.s32.totalorder %s40, 0
      %p97 = por %p95, %p96
      %p98 = scmp.ne.s32.totalorder %s90, %s92
      %p99 = scmp.eq.s32.totalorder %s45, 1
      %p100 = por %p98, %p99
      %p101 = scmp.ne.s32.totalorder %s92, %s93
      %p102 = scmp.eq.s32.totalorder %s45, 0
      %p103 = por %p101, %p102
      %p104 = scmp.ne.s32.totalorder %s92, %s93
      %p105 = scmp.eq.s32.totalorder %s46, 1
      %p106 = por %p104, %p105
      %p108 = scmp.ne.s32.totalorder %s93, %s107
      %p109 = scmp.eq.s32.totalorder %s46, 0
      %p110 = por %p108, %p109
      %s112 = sadd.s32 %s111, 1
      %p115 = scmp.eq.s32.totalorder %s40, 1
      %p116 = scmp.ne.s32.totalorder %s111, %s113
      %p117 = scmp.eq.s32.totalorder %s40, 0
      %p118 = por %p116, %p117
      %p119 = scmp.ne.s32.totalorder %s111, %s113
      %p120 = scmp.eq.s32.totalorder %s45, 1
      %p121 = por %p119, %p120
      %p122 = scmp.ne.s32.totalorder %s113, %s114
      %p123 = scmp.eq.s32.totalorder %s45, 0
      %p124 = por %p122, %p123
      %p125 = scmp.ne.s32.totalorder %s113, %s114
      %p126 = scmp.eq.s32.totalorder %s46, 1
      %p127 = por %p125, %p126
      %p129 = scmp.ne.s32.totalorder %s114, %s128
      %p130 = scmp.eq.s32.totalorder %s46, 0
      %p131 = por %p129, %p130
      %s133 = sadd.s32 %s132, 1
      %p136 = scmp.eq.s32.totalorder %s40, 1
      %p137 = scmp.ne.s32.totalorder %s132, %s134
      %p138 = scmp.eq.s32.totalorder %s40, 0
      %p139 = por %p137, %p138
      %p140 = scmp.ne.s32.totalorder %s132, %s134
      %p141 = scmp.eq.s32.totalorder %s45, 1
      %p142 = por %p140, %p141
      %p143 = scmp.ne.s32.totalorder %s134, %s135
      %p144 = scmp.eq.s32.totalorder %s45, 0
      %p145 = por %p143, %p144
      %p146 = scmp.ne.s32.totalorder %s134, %s135
      %p147 = scmp.eq.s32.totalorder %s46, 1
      %p148 = por %p146, %p147
      %p150 = scmp.ne.s32.totalorder %s135, %s149
      %p151 = scmp.eq.s32.totalorder %s46, 0
      %p152 = por %p150, %p151
      %s154 = sadd.s32 %s153, 1
      %p157 = scmp.eq.s32.totalorder %s40, 1
      %p158 = scmp.ne.s32.totalorder %s153, %s155
      %p159 = scmp.eq.s32.totalorder %s40, 0
      %p160 = por %p158, %p159
      %p161 = scmp.ne.s32.totalorder %s153, %s155
      %p162 = scmp.eq.s32.totalorder %s45, 1
      %p163 = por %p161, %p162
      %p164 = scmp.ne.s32.totalorder %s155, %s156
      %p165 = scmp.eq.s32.totalorder %s45, 0
      %p166 = por %p164, %p165
      %p167 = scmp.ne.s32.totalorder %s155, %s156
      %p168 = scmp.eq.s32.totalorder %s46, 1
      %p169 = por %p167, %p168
      %p171 = scmp.ne.s32.totalorder %s156, %s170
      %p172 = scmp.eq.s32.totalorder %s46, 0
      %p173 = por %p171, %p172
      %s174 = ssub.s32 %s40, %s47
      %p175 = scmp.eq.s32.totalorder %s174, 0
      %s177 = sadd.s32 %s176, 1
      %s178 = scalar_select %p175, %s176, %s177
      %p181 = pneg %p175
      %p182 = scmp.eq.s32.totalorder %s40, 1
      %p183 = por %p181, %p182
      %p184 = scmp.ne.s32.totalorder %s176, %s179
      %p185 = scmp.eq.s32.totalorder %s40, 0
      %p186 = por %p184, %p185
      %p187 = scmp.ne.s32.totalorder %s176, %s179
      %p188 = scmp.eq.s32.totalorder %s45, 1
      %p189 = por %p187, %p188
      %p190 = scmp.ne.s32.totalorder %s179, %s180
      %p191 = scmp.eq.s32.totalorder %s45, 0
      %p192 = por %p190, %p191
      %p193 = scmp.ne.s32.totalorder %s179, %s180
      %p194 = scmp.eq.s32.totalorder %s46, 1
      %p195 = por %p193, %p194
      %p197 = scmp.ne.s32.totalorder %s180, %s196
      %p198 = scmp.eq.s32.totalorder %s46, 0
      %p199 = por %p197, %p198
      %s200 = ssub.s32 %s40, %s47
      %p201 = scmp.eq.s32.totalorder %s200, 0
      %s203 = sadd.s32 %s202, 1
      %s204 = scalar_select %p201, %s202, %s203
      %p207 = pneg %p201
      %p208 = scmp.eq.s32.totalorder %s40, 1
      %p209 = por %p207, %p208
      %p210 = scmp.ne.s32.totalorder %s202, %s205
      %p211 = scmp.eq.s32.totalorder %s40, 0
      %p212 = por %p210, %p211
      %p213 = scmp.ne.s32.totalorder %s202, %s205
      %p214 = scmp.eq.s32.totalorder %s45, 1
      %p215 = por %p213, %p214
      %p216 = scmp.ne.s32.totalorder %s205, %s206
      %p217 = scmp.eq.s32.totalorder %s45, 0
      %p218 = por %p216, %p217
      %p219 = scmp.ne.s32.totalorder %s205, %s206
      %p220 = scmp.eq.s32.totalorder %s46, 1
      %p221 = por %p219, %p220
      %p223 = scmp.ne.s32.totalorder %s206, %s222
      %p224 = scmp.eq.s32.totalorder %s46, 0
      %p225 = por %p223, %p224
      %s226 = ssub.s32 %s40, %s47
      %p227 = scmp.eq.s32.totalorder %s226, 0
      %s229 = sadd.s32 %s228, 1
      %s230 = scalar_select %p227, %s228, %s229
      %p233 = pneg %p227
      %p234 = scmp.eq.s32.totalorder %s40, 1
      %p235 = por %p233, %p234
      %p236 = scmp.ne.s32.totalorder %s228, %s231
      %p237 = scmp.eq.s32.totalorder %s40, 0
      %p238 = por %p236, %p237
      %p239 = scmp.ne.s32.totalorder %s228, %s231
      %p240 = scmp.eq.s32.totalorder %s45, 1
      %p241 = por %p239, %p240
      %p242 = scmp.ne.s32.totalorder %s231, %s232
      %p243 = scmp.eq.s32.totalorder %s45, 0
      %p244 = por %p242, %p243
      %p245 = scmp.ne.s32.totalorder %s231, %s232
      %p246 = scmp.eq.s32.totalorder %s46, 1
      %p247 = por %p245, %p246
      %p249 = scmp.ne.s32.totalorder %s232, %s248
      %p250 = scmp.eq.s32.totalorder %s46, 0
      %p251 = por %p249, %p250
      %s252 = ssub.s32 %s40, %s47
      %p253 = scmp.eq.s32.totalorder %s252, 0
      %s255 = sadd.s32 %s254, 1
      %s256 = scalar_select %p253, %s254, %s255
      %p259 = pneg %p253
      %p260 = scmp.eq.s32.totalorder %s40, 1
      %p261 = por %p259, %p260
      %p262 = scmp.ne.s32.totalorder %s254, %s257
      %p263 = scmp.eq.s32.totalorder %s40, 0
      %p264 = por %p262, %p263
      %p265 = scmp.ne.s32.totalorder %s254, %s257
      %p266 = scmp.eq.s32.totalorder %s45, 1
      %p267 = por %p265, %p266
      %p268 = scmp.ne.s32.totalorder %s257, %s258
      %p269 = scmp.eq.s32.totalorder %s45, 0
      %p270 = por %p268, %p269
      %p271 = scmp.ne.s32.totalorder %s257, %s258
      %p272 = scmp.eq.s32.totalorder %s46, 1
      %p273 = por %p271, %p272
      %p275 = scmp.ne.s32.totalorder %s258, %s274
      %p276 = scmp.eq.s32.totalorder %s46, 0
      %p277 = por %p275, %p276
      %s278 = ssub.s32 %s40, %s47
      %p279 = scmp.eq.s32.totalorder %s278, 0
      %s281 = sadd.s32 %s280, 1
      %s282 = scalar_select %p279, %s280, %s281
      %p285 = pneg %p279
      %p286 = scmp.eq.s32.totalorder %s40, 1
      %p287 = por %p285, %p286
      %p288 = scmp.ne.s32.totalorder %s280, %s283
      %p289 = scmp.eq.s32.totalorder %s40, 0
      %p290 = por %p288, %p289
      %p291 = scmp.ne.s32.totalorder %s280, %s283
      %p292 = scmp.eq.s32.totalorder %s45, 1
      %p293 = por %p291, %p292
      %p294 = scmp.ne.s32.totalorder %s283, %s284
      %p295 = scmp.eq.s32.totalorder %s45, 0
      %p296 = por %p294, %p295
      %p297 = scmp.ne.s32.totalorder %s283, %s284
      %p298 = scmp.eq.s32.totalorder %s46, 1
      %p299 = por %p297, %p298
      %p301 = scmp.ne.s32.totalorder %s284, %s300
      %p302 = scmp.eq.s32.totalorder %s46, 0
      %p303 = por %p301, %p302
      %s304 = ssub.s32 %s40, %s47
      %p305 = scmp.eq.s32.totalorder %s304, 0
      %s307 = sadd.s32 %s306, 1
      %s308 = scalar_select %p305, %s306, %s307
      %p311 = pneg %p305
      %p312 = scmp.eq.s32.totalorder %s40, 1
      %p313 = por %p311, %p312
      %p314 = scmp.ne.s32.totalorder %s306, %s309
      %p315 = scmp.eq.s32.totalorder %s40, 0
      %p316 = por %p314, %p315
      %p317 = scmp.ne.s32.totalorder %s306, %s309
      %p318 = scmp.eq.s32.totalorder %s45, 1
      %p319 = por %p317, %p318
      %p320 = scmp.ne.s32.totalorder %s309, %s310
      %p321 = scmp.eq.s32.totalorder %s45, 0
      %p322 = por %p320, %p321
      %p323 = scmp.ne.s32.totalorder %s309, %s310
      %p324 = scmp.eq.s32.totalorder %s46, 1
      %p325 = por %p323, %p324
      %p327 = scmp.ne.s32.totalorder %s310, %s326
      %p328 = scmp.eq.s32.totalorder %s46, 0
      %p329 = por %p327, %p328
      %s330 = ssub.s32 %s40, %s47
      %p331 = scmp.eq.s32.totalorder %s330, 0
      %s333 = sadd.s32 %s332, 1
      %s334 = scalar_select %p331, %s332, %s333
      %p337 = pneg %p331
      %p338 = scmp.eq.s32.totalorder %s40, 1
      %p339 = por %p337, %p338
      %p340 = scmp.ne.s32.totalorder %s332, %s335
      %p341 = scmp.eq.s32.totalorder %s40, 0
      %p342 = por %p340, %p341
      %p343 = scmp.ne.s32.totalorder %s332, %s335
      %p344 = scmp.eq.s32.totalorder %s45, 1
      %p345 = por %p343, %p344
      %p346 = scmp.ne.s32.totalorder %s335, %s336
      %p347 = scmp.eq.s32.totalorder %s45, 0
      %p348 = por %p346, %p347
      %p349 = scmp.ne.s32.totalorder %s335, %s336
      %p350 = scmp.eq.s32.totalorder %s46, 1
      %p351 = por %p349, %p350
      %p353 = scmp.ne.s32.totalorder %s336, %s352
      %p354 = scmp.eq.s32.totalorder %s46, 0
      %p355 = por %p353, %p354
      %s356 = ssub.s32 %s40, %s47
      %p357 = scmp.eq.s32.totalorder %s356, 0
      %s359 = sadd.s32 %s358, 1
      %s360 = scalar_select %p357, %s358, %s359
      %p363 = pneg %p357
      %p364 = scmp.eq.s32.totalorder %s40, 1
      %p365 = por %p363, %p364
      %p366 = scmp.ne.s32.totalorder %s358, %s361
      %p367 = scmp.eq.s32.totalorder %s40, 0
      %p368 = por %p366, %p367
      %p369 = scmp.ne.s32.totalorder %s358, %s361
      %p370 = scmp.eq.s32.totalorder %s45, 1
      %p371 = por %p369, %p370
      %p372 = scmp.ne.s32.totalorder %s361, %s362
      %p373 = scmp.eq.s32.totalorder %s45, 0
      %p374 = por %p372, %p373
      %p375 = scmp.ne.s32.totalorder %s361, %s362
      %p376 = scmp.eq.s32.totalorder %s46, 1
      %p377 = por %p375, %p376
      %p379 = scmp.ne.s32.totalorder %s362, %s378
      %p380 = scmp.eq.s32.totalorder %s46, 0
      %p381 = por %p379, %p380
      %s382 = ssub.s32 %s40, %s47
      %p383 = scmp.eq.s32.totalorder %s382, 0
      %s385 = sadd.s32 %s384, 1
      %s386 = scalar_select %p383, %s384, %s385
      %p389 = pneg %p383
      %p390 = scmp.eq.s32.totalorder %s40, 1
      %p391 = por %p389, %p390
      %p392 = scmp.ne.s32.totalorder %s384, %s387
      %p393 = scmp.eq.s32.totalorder %s40, 0
      %p394 = por %p392, %p393
      %p395 = scmp.ne.s32.totalorder %s384, %s387
      %p396 = scmp.eq.s32.totalorder %s45, 1
      %p397 = por %p395, %p396
      %p398 = scmp.ne.s32.totalorder %s387, %s388
      %p399 = scmp.eq.s32.totalorder %s45, 0
      %p400 = por %p398, %p399
      %p401 = scmp.ne.s32.totalorder %s387, %s388
      %p402 = scmp.eq.s32.totalorder %s46, 1
      %p403 = por %p401, %p402
      %p405 = scmp.ne.s32.totalorder %s388, %s404
      %p406 = scmp.eq.s32.totalorder %s46, 0
      %p407 = por %p405, %p406
      %s408 = ssub.s32 %s40, %s47
      %p409 = scmp.eq.s32.totalorder %s408, 0
      %s411 = sadd.s32 %s410, 1
      %s412 = scalar_select %p409, %s410, %s411
      %p415 = pneg %p409
      %p416 = scmp.eq.s32.totalorder %s40, 1
      %p417 = por %p415, %p416
      %p418 = scmp.ne.s32.totalorder %s410, %s413
      %p419 = scmp.eq.s32.totalorder %s40, 0
      %p420 = por %p418, %p419
      %p421 = scmp.ne.s32.totalorder %s410, %s413
      %p422 = scmp.eq.s32.totalorder %s45, 1
      %p423 = por %p421, %p422
      %p424 = scmp.ne.s32.totalorder %s413, %s414
      %p425 = scmp.eq.s32.totalorder %s45, 0
      %p426 = por %p424, %p425
      %p427 = scmp.ne.s32.totalorder %s413, %s414
      %p428 = scmp.eq.s32.totalorder %s46, 1
      %p429 = por %p427, %p428
      %p431 = scmp.ne.s32.totalorder %s414, %s430
      %p432 = scmp.eq.s32.totalorder %s46, 0
      %p433 = por %p431, %p432
      %s435 = sadd.s32 %s434, 1
      %p438 = scmp.eq.s32.totalorder %s40, 1
      %p439 = scmp.ne.s32.totalorder %s434, %s436
      %p440 = scmp.eq.s32.totalorder %s40, 0
      %p441 = por %p439, %p440
      %p442 = scmp.ne.s32.totalorder %s434, %s436
      %p443 = scmp.eq.s32.totalorder %s45, 1
      %p444 = por %p442, %p443
      %p445 = scmp.ne.s32.totalorder %s436, %s437
      %p446 = scmp.eq.s32.totalorder %s45, 0
      %p447 = por %p445, %p446
      %p448 = scmp.ne.s32.totalorder %s436, %s437
      %p449 = scmp.eq.s32.totalorder %s46, 1
      %p450 = por %p448, %p449
      %p452 = scmp.ne.s32.totalorder %s437, %s451
      %p453 = scmp.eq.s32.totalorder %s46, 0
      %p454 = por %p452, %p453
      %s456 = sadd.s32 %s455, 1
      %p459 = scmp.eq.s32.totalorder %s40, 1
      %p460 = scmp.ne.s32.totalorder %s455, %s457
      %p461 = scmp.eq.s32.totalorder %s40, 0
      %p462 = por %p460, %p461
      %p463 = scmp.ne.s32.totalorder %s455, %s457
      %p464 = scmp.eq.s32.totalorder %s45, 1
      %p465 = por %p463, %p464
      %p466 = scmp.ne.s32.totalorder %s457, %s458
      %p467 = scmp.eq.s32.totalorder %s45, 0
      %p468 = por %p466, %p467
      %p469 = scmp.ne.s32.totalorder %s457, %s458
      %p470 = scmp.eq.s32.totalorder %s46, 1
      %p471 = por %p469, %p470
      %p473 = scmp.ne.s32.totalorder %s458, %s472
      %p474 = scmp.eq.s32.totalorder %s46, 0
      %p475 = por %p473, %p474
      %s477 = sadd.s32 %s476, 1
      %p480 = scmp.eq.s32.totalorder %s40, 1
      %p481 = scmp.ne.s32.totalorder %s476, %s478
      %p482 = scmp.eq.s32.totalorder %s40, 0
      %p483 = por %p481, %p482
      %p484 = scmp.ne.s32.totalorder %s476, %s478
      %p485 = scmp.eq.s32.totalorder %s45, 1
      %p486 = por %p484, %p485
      %p487 = scmp.ne.s32.totalorder %s478, %s479
      %p488 = scmp.eq.s32.totalorder %s45, 0
      %p489 = por %p487, %p488
      %p490 = scmp.ne.s32.totalorder %s478, %s479
      %p491 = scmp.eq.s32.totalorder %s46, 1
      %p492 = por %p490, %p491
      %p494 = scmp.ne.s32.totalorder %s479, %s493
      %p495 = scmp.eq.s32.totalorder %s46, 0
      %p496 = por %p494, %p495
      %s498 = sadd.s32 %s497, 1
      %p501 = scmp.eq.s32.totalorder %s40, 1
      %p502 = scmp.ne.s32.totalorder %s497, %s499
      %p503 = scmp.eq.s32.totalorder %s40, 0
      %p504 = por %p502, %p503
      %p505 = scmp.ne.s32.totalorder %s497, %s499
      %p506 = scmp.eq.s32.totalorder %s45, 1
      %p507 = por %p505, %p506
      %p508 = scmp.ne.s32.totalorder %s499, %s500
      %p509 = scmp.eq.s32.totalorder %s45, 0
      %p510 = por %p508, %p509
      %p511 = scmp.ne.s32.totalorder %s499, %s500
      %p512 = scmp.eq.s32.totalorder %s46, 1
      %p513 = por %p511, %p512
      %p515 = scmp.ne.s32.totalorder %s500, %s514
      %p516 = scmp.eq.s32.totalorder %s46, 0
      %p517 = por %p515, %p516
      %p518 = scmp.le.s32.totalorder 1, %s40
      %p519 = scmp.lt.s32.totalorder %s40, 3
      %p520 = pnand %p518, %p519
      %p521 = pneg %p520
      // Predicated region
      $region9: #{decoder_forward.1} parent=5 // pred_check
        _
      $region10: #{decoder_forward.1} parent=5 // pred_check_branch
        %523 = sbr.rel (%p520) target = $region12
      $region11: #{decoder_forward.1} parent=5 // pred_region
        %s524 = ssub.s32 %s40, 1
        // Predicated region
        $region13: #{decoder_forward.1} parent=11 // pred_check
          %p525 = pneg %p61
        $region14: #{decoder_forward.1} parent=11 // pred_check_branch
          %527 = sbr.rel (%p525) target = $region16
        $region15: #{decoder_forward.1} parent=11 // pred_region
          _
        $region16: #{decoder_forward.1} parent=11 // pred_fallthru
          _
        // Predicated region
        $region17: #{decoder_forward.1} parent=11 // pred_check
          %p528 = pneg %p82
        $region18: #{decoder_forward.1} parent=11 // pred_check_branch
          %530 = sbr.rel (%p528) target = $region20
        $region19: #{decoder_forward.1} parent=11 // pred_region
          _
        $region20: #{decoder_forward.1} parent=11 // pred_fallthru
          _
        // Predicated region
        $region21: #{decoder_forward.1} parent=11 // pred_check
          %p531 = pneg %p103
        $region22: #{decoder_forward.1} parent=11 // pred_check_branch
          %533 = sbr.rel (%p531) target = $region24
        $region23: #{decoder_forward.1} parent=11 // pred_region
          _
        $region24: #{decoder_forward.1} parent=11 // pred_fallthru
          _
        // Predicated region
        $region25: #{decoder_forward.1} parent=11 // pred_check
          %p534 = pneg %p124
        $region26: #{decoder_forward.1} parent=11 // pred_check_branch
          %536 = sbr.rel (%p534) target = $region28
        $region27: #{decoder_forward.1} parent=11 // pred_region
          _
        $region28: #{decoder_forward.1} parent=11 // pred_fallthru
          _
        // Predicated region
        $region29: #{decoder_forward.1} parent=11 // pred_check
          %p537 = pneg %p145
        $region30: #{decoder_forward.1} parent=11 // pred_check_branch
          %539 = sbr.rel (%p537) target = $region32
        $region31: #{decoder_forward.1} parent=11 // pred_region
          %s541 = ssub.s32 1024, 1024
          %542 = vsyncadd [#allocation6], %s541
          %s543 = sshll.u32 [#allocation5], 4
          %s544 = int_to_ptr.vmem [resolvable:$true] %s543
          %549 = dma.hbm_to_vmem [thread:$0]  %s5, 1024, %s544, [#allocation6], 64, 64, 4
        $region32: #{decoder_forward.1} parent=11 // pred_fallthru
          _
        // Predicated region
        $region33: #{decoder_forward.1} parent=11 // pred_check
          %p550 = pneg %p166
        $region34: #{decoder_forward.1} parent=11 // pred_check_branch
          %552 = sbr.rel (%p550) target = $region36
        $region35: #{decoder_forward.1} parent=11 // pred_region
          _
        $region36: #{decoder_forward.1} parent=11 // pred_fallthru
          _
        // Predicated region
        $region37: #{decoder_forward.1} parent=11 // pred_check
          %p553 = pneg %p447
        $region38: #{decoder_forward.1} parent=11 // pred_check_branch
          %555 = sbr.rel (%p553) target = $region40
        $region39: #{decoder_forward.1} parent=11 // pred_region
          _
        $region40: #{decoder_forward.1} parent=11 // pred_fallthru
          _
        // Predicated region
        $region41: #{decoder_forward.1} parent=11 // pred_check
          %p556 = pneg %p468
        $region42: #{decoder_forward.1} parent=11 // pred_check_branch
          %558 = sbr.rel (%p556) target = $region44
        $region43: #{decoder_forward.1} parent=11 // pred_region
          _
        $region44: #{decoder_forward.1} parent=11 // pred_fallthru
          _
      $region12: #{decoder_forward.1} parent=5 // pred_fallthru
        _
      %p559 = scmp.lt.s32.totalorder %s40, 2
      // Predicated region
      $region45: #{decoder_forward.1} parent=5 // pred_check
        %p560 = pneg %p559
      $region46: #{decoder_forward.1} parent=5 // pred_check_branch
        %562 = sbr.rel (%p560) target = $region48
      $region47: #{decoder_forward.1} parent=5 // pred_region
        // Predicated region
        $region49: #{decoder_forward.1} parent=47 // pred_check
          %p563 = pneg %p186
        $region50: #{decoder_forward.1} parent=47 // pred_check_branch
          %565 = sbr.rel (%p563) target = $region52
        $region51: #{decoder_forward.1} parent=47 // pred_region
          %s566 = sand.u32 %s40, 1
          %s567 = scalar_lea.sflag [#allocation8], %s566
          %s568 = sand.u32 %s176, 1
          %s569 = smul.addr %s568, 192
          %s570 = scalar_lea.vmem [#allocation7], %s569
          %s572 = ssub.s32 3072, 3072
          %573 = vsyncadd %s567, %s572
          %s574 = smul.addr %s40, 48
          %s575 = smul.addr %s574, 64
          %s576 = scalar_lea.hbm %s7, %s575
          %s577 = sshll.u32 %s570, 4
          %s578 = int_to_ptr.vmem [resolvable:$true] %s577
          %583 = dma.hbm_to_vmem [thread:$0]  %s576, 3072, %s578, %s567, 64, 64, 4
        $region52: #{decoder_forward.1} parent=47 // pred_fallthru
          _
        // Predicated region
        $region53: #{decoder_forward.1} parent=47 // pred_check
          %p584 = pneg %p212
        $region54: #{decoder_forward.1} parent=47 // pred_check_branch
          %586 = sbr.rel (%p584) target = $region56
        $region55: #{decoder_forward.1} parent=47 // pred_region
          %p587 = scmp.lt.s32.totalorder %s40, 1
          %s588 = scalar_select %p587, %s40, 1
          %s589 = scalar_lea.vmem %s8, %s588
        $region56: #{decoder_forward.1} parent=47 // pred_fallthru
          _
        // Predicated region
        $region57: #{decoder_forward.1} parent=47 // pred_check
          %p590 = pneg %p238
        $region58: #{decoder_forward.1} parent=47 // pred_check_branch
          %592 = sbr.rel (%p590) target = $region60
        $region59: #{decoder_forward.1} parent=47 // pred_region
          %s593 = sand.u32 %s40, 1
          %s594 = scalar_lea.sflag [#allocation8], %s593
          %s595 = sand.u32 %s228, 1
          %s596 = smul.addr %s595, 128
          %s597 = scalar_lea.vmem [#allocation9], %s596
          %s599 = ssub.s32 2048, 2048
          %600 = vsyncadd %s594, %s599
          %s601 = smul.addr %s40, 32
          %s602 = smul.addr %s601, 64
          %s603 = scalar_lea.hbm %s9, %s602
          %s604 = sshll.u32 %s597, 4
          %s605 = int_to_ptr.vmem [resolvable:$true] %s604
          %610 = dma.hbm_to_vmem [thread:$0]  %s603, 2048, %s605, %s594, 128, 128, 8
        $region60: #{decoder_forward.1} parent=47 // pred_fallthru
          _
        // Predicated region
        $region61: #{decoder_forward.1} parent=47 // pred_check
          %p611 = pneg %p264
        $region62: #{decoder_forward.1} parent=47 // pred_check_branch
          %613 = sbr.rel (%p611) target = $region64
        $region63: #{decoder_forward.1} parent=47 // pred_region
          %p614 = scmp.lt.s32.totalorder %s40, 1
          %s615 = scalar_select %p614, %s40, 1
          %s616 = smul.addr %s615, 2
          %s617 = scalar_lea.vmem %s10, %s616
        $region64: #{decoder_forward.1} parent=47 // pred_fallthru
          _
        // Predicated region
        $region65: #{decoder_forward.1} parent=47 // pred_check
          %p618 = pneg %p290
        $region66: #{decoder_forward.1} parent=47 // pred_check_branch
          %620 = sbr.rel (%p618) target = $region68
        $region67: #{decoder_forward.1} parent=47 // pred_region
          %p621 = scmp.lt.s32.totalorder %s40, 1
          %s622 = scalar_select %p621, %s40, 1
          %s623 = smul.addr %s622, 16
          %s624 = smul.addr %s623, 4
          %s625 = scalar_lea.vmem %s11, %s624
        $region68: #{decoder_forward.1} parent=47 // pred_fallthru
          _
        // Predicated region
        $region69: #{decoder_forward.1} parent=47 // pred_check
          %p626 = pneg %p316
        $region70: #{decoder_forward.1} parent=47 // pred_check_branch
          %628 = sbr.rel (%p626) target = $region72
        $region71: #{decoder_forward.1} parent=47 // pred_region
          %p629 = scmp.lt.s32.totalorder %s40, 1
          %s630 = scalar_select %p629, %s40, 1
          %s631 = scalar_lea.vmem %s12, %s630
        $region72: #{decoder_forward.1} parent=47 // pred_fallthru
          _
        // Predicated region
        $region73: #{decoder_forward.1} parent=47 // pred_check
          %p632 = pneg %p342
        $region74: #{decoder_forward.1} parent=47 // pred_check_branch
          %634 = sbr.rel (%p632) target = $region76
        $region75: #{decoder_forward.1} parent=47 // pred_region
          %s635 = sand.u32 %s40, 1
          %s636 = scalar_lea.sflag [#allocation11], %s635
          %s637 = sand.u32 %s332, 1
          %s638 = smul.addr %s637, 64
          %s639 = scalar_lea.vmem [#allocation10], %s638
          %s641 = ssub.s32 1024, 1024
          %642 = vsyncadd %s636, %s641
          %s643 = smul.addr %s40, 16
          %s644 = smul.addr %s643, 64
          %s645 = scalar_lea.hbm %s13, %s644
          %s646 = sshll.u32 %s639, 4
          %s647 = int_to_ptr.vmem [resolvable:$true] %s646
          %652 = dma.hbm_to_vmem [thread:$0]  %s645, 1024, %s647, %s636, 64, 64, 4
        $region76: #{decoder_forward.1} parent=47 // pred_fallthru
          _
        // Predicated region
        $region77: #{decoder_forward.1} parent=47 // pred_check
          %p653 = pneg %p368
        $region78: #{decoder_forward.1} parent=47 // pred_check_branch
          %655 = sbr.rel (%p653) target = $region80
        $region79: #{decoder_forward.1} parent=47 // pred_region
          %p656 = scmp.lt.s32.totalorder %s40, 1
          %s657 = scalar_select %p656, %s40, 1
          %s658 = scalar_lea.vmem %s14, %s657
        $region80: #{decoder_forward.1} parent=47 // pred_fallthru
          _
        // Predicated region
        $region81: #{decoder_forward.1} parent=47 // pred_check
          %p659 = pneg %p394
        $region82: #{decoder_forward.1} parent=47 // pred_check_branch
          %661 = sbr.rel (%p659) target = $region84
        $region83: #{decoder_forward.1} parent=47 // pred_region
          %s662 = sand.u32 %s40, 1
          %s663 = scalar_lea.sflag [#allocation11], %s662
          %s664 = sand.u32 %s384, 1
          %s665 = smul.addr %s664, 64
          %s666 = scalar_lea.vmem [#allocation12], %s665
          %s668 = ssub.s32 1024, 1024
          %669 = vsyncadd %s663, %s668
          %s670 = smul.addr %s40, 16
          %s671 = smul.addr %s670, 64
          %s672 = scalar_lea.hbm %s15, %s671
          %s673 = sshll.u32 %s666, 4
          %s674 = int_to_ptr.vmem [resolvable:$true] %s673
          %679 = dma.hbm_to_vmem [thread:$0]  %s672, 1024, %s674, %s663, 64, 64, 4
        $region84: #{decoder_forward.1} parent=47 // pred_fallthru
          _
        // Predicated region
        $region85: #{decoder_forward.1} parent=47 // pred_check
          %p680 = pneg %p420
        $region86: #{decoder_forward.1} parent=47 // pred_check_branch
          %682 = sbr.rel (%p680) target = $region88
        $region87: #{decoder_forward.1} parent=47 // pred_region
          %p683 = scmp.lt.s32.totalorder %s40, 1
          %s684 = scalar_select %p683, %s40, 1
          %s685 = scalar_lea.vmem %s16, %s684
        $region88: #{decoder_forward.1} parent=47 // pred_fallthru
          _
      $region48: #{decoder_forward.1} parent=5 // pred_fallthru
        _
      %p686 = scmp.le.s32.totalorder 1, %s40
      %p687 = scmp.lt.s32.totalorder %s40, 3
      %p688 = pnand %p686, %p687
      %p689 = pneg %p688
      // Predicated region
      $region89: #{decoder_forward.1} parent=5 // pred_check
        _
      $region90: #{decoder_forward.1} parent=5 // pred_check_branch
        %691 = sbr.rel (%p688) target = $region92
      $region91: #{decoder_forward.1} parent=5 // pred_region
        %s692 = ssub.s32 %s40, 1
        // Predicated region
        $region93: #{decoder_forward.1} parent=91 // pred_check
          %p693 = pneg %p145
        $region94: #{decoder_forward.1} parent=91 // pred_check_branch
          %695 = sbr.rel (%p693) target = $region96
        $region95: #{decoder_forward.1} parent=91 // pred_region
          %696 = dma.done [#allocation6], 1024
        $region96: #{decoder_forward.1} parent=91 // pred_fallthru
          _
        %s697 = sand.u32 %s45, 1
        %s698 = scalar_lea.sflag [#allocation8], %s697
        %s699 = sand.u32 %s179, 1
        %s700 = smul.addr %s699, 192
        %s701 = scalar_lea.vmem [#allocation7], %s700
        // Predicated region
        $region97: #{decoder_forward.1} parent=91 // pred_check
          %p702 = pneg %p192
        $region98: #{decoder_forward.1} parent=91 // pred_check_branch
          %704 = sbr.rel (%p702) target = $region100
        $region99: #{decoder_forward.1} parent=91 // pred_region
          %705 = dma.done %s698, 3072
        $region100: #{decoder_forward.1} parent=91 // pred_fallthru
          _
        %s706 = sand.u32 %s45, 1
        %s707 = scalar_lea.sflag [#allocation8], %s706
        %s708 = sand.u32 %s231, 1
        %s709 = smul.addr %s708, 128
        %s710 = scalar_lea.vmem [#allocation9], %s709
        // Predicated region
        $region101: #{decoder_forward.1} parent=91 // pred_check
          %p711 = pneg %p244
        $region102: #{decoder_forward.1} parent=91 // pred_check_branch
          %713 = sbr.rel (%p711) target = $region104
        $region103: #{decoder_forward.1} parent=91 // pred_region
          %714 = dma.done %s707, 2048
        $region104: #{decoder_forward.1} parent=91 // pred_fallthru
          _
        %s715 = sand.u32 %s45, 1
        %s716 = scalar_lea.sflag [#allocation11], %s715
        %s717 = sand.u32 %s335, 1
        %s718 = smul.addr %s717, 64
        %s719 = scalar_lea.vmem [#allocation10], %s718
        // Predicated region
        $region105: #{decoder_forward.1} parent=91 // pred_check
          %p720 = pneg %p348
        $region106: #{decoder_forward.1} parent=91 // pred_check_branch
          %722 = sbr.rel (%p720) target = $region108
        $region107: #{decoder_forward.1} parent=91 // pred_region
          %723 = dma.done %s716, 1024
        $region108: #{decoder_forward.1} parent=91 // pred_fallthru
          _
        %s724 = sand.u32 %s45, 1
        %s725 = scalar_lea.sflag [#allocation11], %s724
        %s726 = sand.u32 %s387, 1
        %s727 = smul.addr %s726, 64
        %s728 = scalar_lea.vmem [#allocation12], %s727
        // Predicated region
        $region109: #{decoder_forward.1} parent=91 // pred_check
          %p729 = pneg %p400
        $region110: #{decoder_forward.1} parent=91 // pred_check_branch
          %731 = sbr.rel (%p729) target = $region112
        $region111: #{decoder_forward.1} parent=91 // pred_region
          %732 = dma.done %s725, 1024
        $region112: #{decoder_forward.1} parent=91 // pred_fallthru
          _
        %p733 = pneg %p61
        %p734 = pneg %p58
        %p735 = pneg %p82
        %p736 = pneg %p79
        %p737 = pneg %p103
        %p738 = pneg %p100
        %p739 = pneg %p124
        %p740 = pneg %p121
        %p741 = pneg %p145
        %p742 = pneg %p142
        %p743 = pneg %p166
        %p744 = pneg %p163
        %s745 = sand.u32 %s45, 1
        %s746 = scalar_lea.sflag [#allocation8], %s745
        %s747 = sand.u32 %s179, 1
        %s748 = smul.addr %s747, 192
        %s749 = scalar_lea.vmem [#allocation7], %s748
        %p750 = pneg %p192
        %p751 = pneg %p189
        %p752 = scmp.lt.s32.totalorder %s45, 1
        %s753 = scalar_select %p752, %s45, 1
        %s754 = scalar_lea.vmem %s8, %s753
        %p755 = pneg %p218
        %p756 = pneg %p215
        %s757 = sand.u32 %s45, 1
        %s758 = scalar_lea.sflag [#allocation8], %s757
        %s759 = sand.u32 %s231, 1
        %s760 = smul.addr %s759, 128
        %s761 = scalar_lea.vmem [#allocation9], %s760
        %p762 = pneg %p244
        %p763 = pneg %p241
        %p764 = scmp.lt.s32.totalorder %s45, 1
        %s765 = scalar_select %p764, %s45, 1
        %s766 = smul.addr %s765, 2
        %s767 = scalar_lea.vmem %s10, %s766
        %p768 = pneg %p270
        %p769 = pneg %p267
        %p770 = scmp.lt.s32.totalorder %s45, 1
        %s771 = scalar_select %p770, %s45, 1
        %s772 = smul.addr %s771, 16
        %s773 = smul.addr %s772, 4
        %s774 = scalar_lea.vmem %s11, %s773
        %p775 = pneg %p296
        %p776 = pneg %p293
        %p777 = scmp.lt.s32.totalorder %s45, 1
        %s778 = scalar_select %p777, %s45, 1
        %s779 = scalar_lea.vmem %s12, %s778
        %p780 = pneg %p322
        %p781 = pneg %p319
        %s782 = sand.u32 %s45, 1
        %s783 = scalar_lea.sflag [#allocation11], %s782
        %s784 = sand.u32 %s335, 1
        %s785 = smul.addr %s784, 64
        %s786 = scalar_lea.vmem [#allocation10], %s785
        %p787 = pneg %p348
        %p788 = pneg %p345
        %p789 = scmp.lt.s32.totalorder %s45, 1
        %s790 = scalar_select %p789, %s45, 1
        %s791 = scalar_lea.vmem %s14, %s790
        %p792 = pneg %p374
        %p793 = pneg %p371
        %s794 = sand.u32 %s45, 1
        %s795 = scalar_lea.sflag [#allocation11], %s794
        %s796 = sand.u32 %s387, 1
        %s797 = smul.addr %s796, 64
        %s798 = scalar_lea.vmem [#allocation12], %s797
        %p799 = pneg %p400
        %p800 = pneg %p397
        %p801 = scmp.lt.s32.totalorder %s45, 1
        %s802 = scalar_select %p801, %s45, 1
        %s803 = scalar_lea.vmem %s16, %s802
        %p804 = pneg %p426
        %p805 = pneg %p423
        %p806 = pneg %p447
        %p807 = pneg %p444
        %p808 = pneg %p468
        %p809 = pneg %p465
        %p810 = pneg %p489
        %p811 = pneg %p486
        %p812 = pneg %p510
        %p813 = pneg %p507
        %p814 = scmp.lt.s32.totalorder %s45, 1
        %s815 = scalar_select %p814, %s45, 1
        %s816 = scalar_lea.vmem %s8, %s815
        %p817 = scmp.lt.s32.totalorder %s45, 1
        %s818 = scalar_select %p817, %s45, 1
        %s819 = smul.addr %s818, 2
        %s820 = scalar_lea.vmem %s10, %s819
        %p821 = scmp.lt.s32.totalorder %s45, 1
        %s822 = scalar_select %p821, %s45, 1
        %s823 = smul.addr %s822, 16
        %s824 = smul.addr %s823, 4
        %s825 = scalar_lea.vmem %s11, %s824
        %p826 = scmp.lt.s32.totalorder %s45, 1
        %s827 = scalar_select %p826, %s45, 1
        %s828 = scalar_lea.vmem %s12, %s827
        %p829 = scmp.lt.s32.totalorder %s45, 1
        %s830 = scalar_select %p829, %s45, 1
        %s831 = scalar_lea.vmem %s14, %s830
        %p832 = scmp.lt.s32.totalorder %s45, 1
        %s833 = scalar_select %p832, %s45, 1
        %s834 = scalar_lea.vmem %s16, %s833
        %s836 = sld [smem:[#allocation4 + %s45]]
        %v837 = vld [vmem:[%s3] sm:$0xff]
        %v838 = vld [vmem:[%s3 + $0x8] sm:$0xff]
        %v839 = vld [vmem:[%s3 + $0x10] sm:$0xff]
        %v840 = vld [vmem:[%s3 + $0x18] sm:$0xff]
        %p841 = scmp.eq.s32.totalorder %s45, 0
        // Predicated region
        $region113: #{decoder_forward.1} parent=91 // pred_check
          %p842 = pneg %p841
        $region114: #{decoder_forward.1} parent=91 // pred_check_branch
          %844 = sbr.rel (%p842) target = $region116
        $region115: #{decoder_forward.1} parent=91 // pred_region
          %845 = vst [vmem:[#allocation2] sm:$0xff] 0.0
          %846 = vst [vmem:[#allocation2 + $0x8] sm:$0xff] 0.0
          %847 = vst [vmem:[#allocation2 + $0x10] sm:$0xff] 0.0
          %848 = vst [vmem:[#allocation2 + $0x18] sm:$0xff] 0.0
          %849 = vst [vmem:[#allocation2 + $0x20] sm:$0xff] 0.0
          %850 = vst [vmem:[#allocation2 + $0x28] sm:$0xff] 0.0
          %851 = vst [vmem:[#allocation2 + $0x30] sm:$0xff] 0.0
          %852 = vst [vmem:[#allocation2 + $0x38] sm:$0xff] 0.0
          %v853 = vld [vmem:[%s1] sm:$0xf]
          %v854 = vld [vmem:[%s1 + $0x4] sm:$0xf]
          %v855 = vld [vmem:[%s1 + $0x8] sm:$0xf]
          %v856 = vld [vmem:[%s1 + $0xc] sm:$0xf]
          %v857 = vld [vmem:[#allocation5] sm:$0xf]
          %v858 = vld [vmem:[#allocation5 + $0x4] sm:$0xf]
          %v859 = vld [vmem:[#allocation5 + $0x8] sm:$0xf]
          %v860 = vld [vmem:[#allocation5 + $0xc] sm:$0xf]
          %v861 = vld [vmem:[#allocation5 + $0x10] sm:$0xf]
          %v862 = vld [vmem:[#allocation5 + $0x14] sm:$0xf]
          %v863 = vld [vmem:[#allocation5 + $0x18] sm:$0xf]
          %v864 = vld [vmem:[#allocation5 + $0x1c] sm:$0xf]
          %v865 = vld [vmem:[#allocation5 + $0x20] sm:$0xf]
          %v866 = vld [vmem:[#allocation5 + $0x24] sm:$0xf]
          %v867 = vld [vmem:[#allocation5 + $0x28] sm:$0xf]
          %v868 = vld [vmem:[#allocation5 + $0x2c] sm:$0xf]
          %v869 = vld [vmem:[#allocation5 + $0x30] sm:$0xf]
          %v870 = vld [vmem:[#allocation5 + $0x34] sm:$0xf]
          %v871 = vld [vmem:[#allocation5 + $0x38] sm:$0xf]
          %v872 = vld [vmem:[#allocation5 + $0x3c] sm:$0xf]
          %v873 = vld [vmem:[%s6] sm:$0x1]
          %v875 = vlaneseq
          %v876 = vshrl.u32 %v875, 7
          %v877 = vsub.s32 0, %v876
          %v878 = vrot.slane %v873, %v877
          %v884 = vunpack.c.l.b16 %v853
          %v885 = vunpack.c.l.b16 %v854
          %v886 = vunpack.c.l.b16 %v855
          %v887 = vunpack.c.l.b16 %v856
          %v888 = vpack.c.b16 %v885, %v884
          %v889 = vpack.c.b16 %v887, %v886
          %v908 = vunpack.c.l.b16 %v857
          %v909 = vunpack.c.l.b16 %v858
          %v910 = vunpack.c.l.b16 %v859
          %v911 = vunpack.c.l.b16 %v860
          %v912 = vunpack.c.l.b16 %v861
          %v913 = vunpack.c.l.b16 %v862
          %v914 = vunpack.c.l.b16 %v863
          %v915 = vunpack.c.l.b16 %v864
          %v916 = vunpack.c.l.b16 %v865
          %v917 = vunpack.c.l.b16 %v866
          %v918 = vunpack.c.l.b16 %v867
          %v919 = vunpack.c.l.b16 %v868
          %v920 = vunpack.c.l.b16 %v869
          %v921 = vunpack.c.l.b16 %v870
          %v922 = vunpack.c.l.b16 %v871
          %v923 = vunpack.c.l.b16 %v872
          %v924 = vpack.c.b16 %v909, %v908
          %v925 = vpack.c.b16 %v911, %v910
          %v926 = vpack.c.b16 %v913, %v912
          %v927 = vpack.c.b16 %v915, %v914
          %v928 = vpack.c.b16 %v917, %v916
          %v929 = vpack.c.b16 %v919, %v918
          %v930 = vpack.c.b16 %v921, %v920
          %v931 = vpack.c.b16 %v923, %v922
          %940 = vmatprep.subr.bf16.mxu0 0
          %941 = vmatpush1.bf16.msra.mxu0 %v924
          %942 = vmatprep.subr.bf16.mxu0 0
          %943 = vmatpush1.bf16.msra.mxu0 %v925
          %944 = vmatprep.subr.bf16.mxu0 0
          %945 = vmatpush1.bf16.msra.mxu0 %v926
          %946 = vmatprep.subr.bf16.mxu0 0
          %947 = vmatpush1.bf16.msra.mxu0 %v927
          %948 = vmatprep.subr.bf16.mxu0 0
          %949 = vmatpush1.bf16.msra.mxu0 %v928
          %950 = vmatprep.subr.bf16.mxu0 0
          %951 = vmatpush1.bf16.msra.mxu0 %v929
          %952 = vmatprep.subr.bf16.mxu0 0
          %953 = vmatpush1.bf16.msra.mxu0 %v930
          %954 = vmatprep.subr.bf16.mxu0 0
          %955 = vmatpush1.bf16.msra.mxu0 %v931
          %956 = vmatprep.subr.bf16.mxu0 0
          %957 = vmatpush1.bf16.msra.mxu0 0
          %958 = vmatprep.subr.bf16.mxu0 0
          %959 = vmatpush1.bf16.msra.mxu0 0
          %960 = vmatprep.subr.bf16.mxu0 0
          %961 = vmatpush1.bf16.msra.mxu0 0
          %962 = vmatprep.subr.bf16.mxu0 0
          %963 = vmatpush1.bf16.msra.mxu0 0
          %964 = vmatprep.subr.bf16.mxu0 0
          %965 = vmatpush1.bf16.msra.mxu0 0
          %966 = vmatprep.subr.bf16.mxu0 0
          %967 = vmatpush1.bf16.msra.mxu0 0
          %968 = vmatprep.subr.bf16.mxu0 0
          %969 = vmatpush1.bf16.msra.mxu0 0
          %970 = vmatprep.subr.bf16.mxu0 0
          %971 = vmatpush1.bf16.msra.mxu0 0
          %972 = vmatprep.mubr.bf16.mxu0 0
          %973 = vmatmul.mubr.bf16.gmra.mrb[0].mxu0 %v888
          %v974 = vpop.f32.mrb[0].mxu0
          %v975 = vadd.f32 %v878, %v974
          %v976 = vpop.f32.mrb[0].mxu0
          %v977 = vpop.f32.mrb[0].mxu0
          %v978 = vadd.f32 %v878, %v977
          %v979 = vpop.f32.mrb[0].mxu0
          %980 = vmatprep.mubr.bf16.mxu0 0
          %981 = vmatmul.mubr.bf16.gmra.mrb[0].mxu0 %v889
          %v982 = vpop.f32.mrb[0].mxu0
          %v983 = vadd.f32 %v878, %v982
          %v984 = vpop.f32.mrb[0].mxu0
          %v985 = vpop.f32.mrb[0].mxu0
          %v986 = vadd.f32 %v878, %v985
          %v987 = vpop.f32.mrb[0].mxu0
          %988 = vdwg.mxu0
          %989 = vst [vmem:[#allocation2 + $0x8] sm:$0xff] %v975
          %990 = vst [vmem:[#allocation2 + $0x10] sm:$0xff] %v978
          %991 = vst [vmem:[#allocation2 + $0x28] sm:$0xff] %v983
          %992 = vst [vmem:[#allocation2 + $0x30] sm:$0xff] %v986
        $region116: #{decoder_forward.1} parent=91 // pred_fallthru
          _
        %v993 = vld [vmem:[#allocation2 + $0x8] sm:$0xff]
        %v994 = vld [vmem:[#allocation2 + $0x10] sm:$0xff]
        %s995 = ssub.s32 8, %s836
        %s996 = scalar_lea.vmem [#allocation2], %s995
        %v997 = vld [vmem:[%s996] sm:$0xff]
        %v998 = vld [vmem:[%s996 + $0x8] sm:$0xff]
        %s999 = sadd.s32 %s836, 8
        %s1000 = scalar_lea.vmem [#allocation2], %s999
        %v1001 = vld [vmem:[%s1000] sm:$0xff]
        %v1002 = vld [vmem:[%s1000 + $0x8] sm:$0xff]
        %v1003 = vld [vmem:[#allocation2 + $0x28] sm:$0xff]
        %v1004 = vld [vmem:[#allocation2 + $0x30] sm:$0xff]
        %s1005 = ssub.s32 40, %s836
        %s1006 = scalar_lea.vmem [#allocation2], %s1005
        %v1007 = vld [vmem:[%s1006] sm:$0xff]
        %v1008 = vld [vmem:[%s1006 + $0x8] sm:$0xff]
        %s1009 = sadd.s32 %s836, 40
        %s1010 = scalar_lea.vmem [#allocation2], %s1009
        %v1011 = vld [vmem:[%s1010] sm:$0xff]
        %v1012 = vld [vmem:[%s1010 + $0x8] sm:$0xff]
        %v1013 = vpack.c.bf16 %v998, %v997
        %v1014 = vpack.c.bf16 %v994, %v993
        %v1015 = vpack.c.bf16 %v1002, %v1001
        %v1016 = vpack.c.bf16 %v1008, %v1007
        %v1017 = vpack.c.bf16 %v1004, %v1003
        %v1018 = vpack.c.bf16 %v1012, %v1011
        %v1019 = vld [vmem:[%s701] sm:$0xf]
        %v1020 = vld [vmem:[%s701 + $0x4] sm:$0xf]
        %v1021 = vld [vmem:[%s701 + $0x8] sm:$0xf]
        %v1022 = vld [vmem:[%s701 + $0xc] sm:$0xf]
        %v1023 = vld [vmem:[%s701 + $0x10] sm:$0xf]
        %v1024 = vld [vmem:[%s701 + $0x14] sm:$0xf]
        %v1025 = vld [vmem:[%s701 + $0x18] sm:$0xf]
        %v1026 = vld [vmem:[%s701 + $0x1c] sm:$0xf]
        %v1027 = vld [vmem:[%s701 + $0x20] sm:$0xf]
        %v1028 = vld [vmem:[%s701 + $0x24] sm:$0xf]
        %v1029 = vld [vmem:[%s701 + $0x28] sm:$0xf]
        %v1030 = vld [vmem:[%s701 + $0x2c] sm:$0xf]
        %v1031 = vld [vmem:[%s701 + $0x30] sm:$0xf]
        %v1032 = vld [vmem:[%s701 + $0x34] sm:$0xf]
        %v1033 = vld [vmem:[%s701 + $0x38] sm:$0xf]
        %v1034 = vld [vmem:[%s701 + $0x3c] sm:$0xf]
        %v1035 = vld [vmem:[%s701 + $0x40] sm:$0xf]
        %v1036 = vld [vmem:[%s701 + $0x44] sm:$0xf]
        %v1037 = vld [vmem:[%s701 + $0x48] sm:$0xf]
        %v1038 = vld [vmem:[%s701 + $0x4c] sm:$0xf]
        %v1039 = vld [vmem:[%s701 + $0x50] sm:$0xf]
        %v1040 = vld [vmem:[%s701 + $0x54] sm:$0xf]
        %v1041 = vld [vmem:[%s701 + $0x58] sm:$0xf]
        %v1042 = vld [vmem:[%s701 + $0x5c] sm:$0xf]
        %v1043 = vld [vmem:[%s701 + $0x60] sm:$0xf]
        %v1044 = vld [vmem:[%s701 + $0x64] sm:$0xf]
        %v1045 = vld [vmem:[%s701 + $0x68] sm:$0xf]
        %v1046 = vld [vmem:[%s701 + $0x6c] sm:$0xf]
        %v1047 = vld [vmem:[%s701 + $0x70] sm:$0xf]
        %v1048 = vld [vmem:[%s701 + $0x74] sm:$0xf]
        %v1049 = vld [vmem:[%s701 + $0x78] sm:$0xf]
        %v1050 = vld [vmem:[%s701 + $0x7c] sm:$0xf]
        %v1051 = vld [vmem:[%s701 + $0x80] sm:$0xf]
        %v1052 = vld [vmem:[%s701 + $0x84] sm:$0xf]
        %v1053 = vld [vmem:[%s701 + $0x88] sm:$0xf]
        %v1054 = vld [vmem:[%s701 + $0x8c] sm:$0xf]
        %v1055 = vld [vmem:[%s701 + $0x90] sm:$0xf]
        %v1056 = vld [vmem:[%s701 + $0x94] sm:$0xf]
        %v1057 = vld [vmem:[%s701 + $0x98] sm:$0xf]
        %v1058 = vld [vmem:[%s701 + $0x9c] sm:$0xf]
        %v1059 = vld [vmem:[%s701 + $0xa0] sm:$0xf]
        %v1060 = vld [vmem:[%s701 + $0xa4] sm:$0xf]
        %v1061 = vld [vmem:[%s701 + $0xa8] sm:$0xf]
        %v1062 = vld [vmem:[%s701 + $0xac] sm:$0xf]
        %v1063 = vld [vmem:[%s701 + $0xb0] sm:$0xf]
        %v1064 = vld [vmem:[%s701 + $0xb4] sm:$0xf]
        %v1065 = vld [vmem:[%s701 + $0xb8] sm:$0xf]
        %v1066 = vld [vmem:[%s701 + $0xbc] sm:$0xf]
        %v1067 = vld [vmem:[%s816] sm:$0x1]
        %v1069 = vlaneseq
        %v1070 = vshrl.u32 %v1069, 7
        %v1071 = vsub.s32 0, %v1070
        %v1072 = vrot.slane %v1067, %v1071
        %v1122 = vunpack.c.l.b16 %v1019
        %v1123 = vunpack.c.l.b16 %v1020
        %v1124 = vunpack.c.l.b16 %v1021
        %v1125 = vunpack.c.l.b16 %v1022
        %v1126 = vunpack.c.l.b16 %v1023
        %v1127 = vunpack.c.l.b16 %v1024
        %v1128 = vunpack.c.l.b16 %v1025
        %v1129 = vunpack.c.l.b16 %v1026
        %v1130 = vunpack.c.l.b16 %v1027
        %v1131 = vunpack.c.l.b16 %v1028
        %v1132 = vunpack.c.l.b16 %v1029
        %v1133 = vunpack.c.l.b16 %v1030
        %v1134 = vunpack.c.l.b16 %v1031
        %v1135 = vunpack.c.l.b16 %v1032
        %v1136 = vunpack.c.l.b16 %v1033
        %v1137 = vunpack.c.l.b16 %v1034
        %v1138 = vunpack.c.l.b16 %v1035
        %v1139 = vunpack.c.l.b16 %v1036
        %v1140 = vunpack.c.l.b16 %v1037
        %v1141 = vunpack.c.l.b16 %v1038
        %v1142 = vunpack.c.l.b16 %v1039
        %v1143 = vunpack.c.l.b16 %v1040
        %v1144 = vunpack.c.l.b16 %v1041
        %v1145 = vunpack.c.l.b16 %v1042
        %v1146 = vunpack.c.l.b16 %v1043
        %v1147 = vunpack.c.l.b16 %v1044
        %v1148 = vunpack.c.l.b16 %v1045
        %v1149 = vunpack.c.l.b16 %v1046
        %v1150 = vunpack.c.l.b16 %v1047
        %v1151 = vunpack.c.l.b16 %v1048
        %v1152 = vunpack.c.l.b16 %v1049
        %v1153 = vunpack.c.l.b16 %v1050
        %v1154 = vunpack.c.l.b16 %v1051
        %v1155 = vunpack.c.l.b16 %v1052
        %v1156 = vunpack.c.l.b16 %v1053
        %v1157 = vunpack.c.l.b16 %v1054
        %v1158 = vunpack.c.l.b16 %v1055
        %v1159 = vunpack.c.l.b16 %v1056
        %v1160 = vunpack.c.l.b16 %v1057
        %v1161 = vunpack.c.l.b16 %v1058
        %v1162 = vunpack.c.l.b16 %v1059
        %v1163 = vunpack.c.l.b16 %v1060
        %v1164 = vunpack.c.l.b16 %v1061
        %v1165 = vunpack.c.l.b16 %v1062
        %v1166 = vunpack.c.l.b16 %v1063
        %v1167 = vunpack.c.l.b16 %v1064
        %v1168 = vunpack.c.l.b16 %v1065
        %v1169 = vunpack.c.l.b16 %v1066
        %v1170 = vpack.c.b16 %v1123, %v1122
        %v1171 = vpack.c.b16 %v1125, %v1124
        %v1172 = vpack.c.b16 %v1127, %v1126
        %v1173 = vpack.c.b16 %v1129, %v1128
        %v1174 = vpack.c.b16 %v1131, %v1130
        %v1175 = vpack.c.b16 %v1133, %v1132
        %v1176 = vpack.c.b16 %v1135, %v1134
        %v1177 = vpack.c.b16 %v1137, %v1136
        %v1178 = vpack.c.b16 %v1139, %v1138
        %v1179 = vpack.c.b16 %v1141, %v1140
        %v1180 = vpack.c.b16 %v1143, %v1142
        %v1181 = vpack.c.b16 %v1145, %v1144
        %v1182 = vpack.c.b16 %v1147, %v1146
        %v1183 = vpack.c.b16 %v1149, %v1148
        %v1184 = vpack.c.b16 %v1151, %v1150
        %v1185 = vpack.c.b16 %v1153, %v1152
        %v1186 = vpack.c.b16 %v1155, %v1154
        %v1187 = vpack.c.b16 %v1157, %v1156
        %v1188 = vpack.c.b16 %v1159, %v1158
        %v1189 = vpack.c.b16 %v1161, %v1160
        %v1190 = vpack.c.b16 %v1163, %v1162
        %v1191 = vpack.c.b16 %v1165, %v1164
        %v1192 = vpack.c.b16 %v1167, %v1166
        %v1193 = vpack.c.b16 %v1169, %v1168
        %1218 = vmatprep.subr.bf16.mxu0 0
        %1219 = vmatpush1.bf16.msra.mxu0 %v1170
        %1220 = vmatprep.subr.bf16.mxu0 0
        %1221 = vmatpush1.bf16.msra.mxu0 %v1171
        %1222 = vmatprep.subr.bf16.mxu0 0
        %1223 = vmatpush1.bf16.msra.mxu0 %v1172
        %1224 = vmatprep.subr.bf16.mxu0 0
        %1225 = vmatpush1.bf16.msra.mxu0 %v1173
        %1226 = vmatprep.subr.bf16.mxu0 0
        %1227 = vmatpush1.bf16.msra.mxu0 %v1174
        %1228 = vmatprep.subr.bf16.mxu0 0
        %1229 = vmatpush1.bf16.msra.mxu0 %v1175
        %1230 = vmatprep.subr.bf16.mxu0 0
        %1231 = vmatpush1.bf16.msra.mxu0 %v1176
        %1232 = vmatprep.subr.bf16.mxu0 0
        %1233 = vmatpush1.bf16.msra.mxu0 %v1177
        %1234 = vmatprep.subr.bf16.mxu0 0
        %1235 = vmatpush1.bf16.msra.mxu0 %v1178
        %1236 = vmatprep.subr.bf16.mxu0 0
        %1237 = vmatpush1.bf16.msra.mxu0 %v1179
        %1238 = vmatprep.subr.bf16.mxu0 0
        %1239 = vmatpush1.bf16.msra.mxu0 %v1180
        %1240 = vmatprep.subr.bf16.mxu0 0
        %1241 = vmatpush1.bf16.msra.mxu0 %v1181
        %1242 = vmatprep.subr.bf16.mxu0 0
        %1243 = vmatpush1.bf16.msra.mxu0 %v1182
        %1244 = vmatprep.subr.bf16.mxu0 0
        %1245 = vmatpush1.bf16.msra.mxu0 %v1183
        %1246 = vmatprep.subr.bf16.mxu0 0
        %1247 = vmatpush1.bf16.msra.mxu0 %v1184
        %1248 = vmatprep.subr.bf16.mxu0 0
        %1249 = vmatpush1.bf16.msra.mxu0 %v1185
        %1250 = vmatprep.mubr.bf16.mxu0 %v1014
        %1251 = vmatmul.mubr.bf16.gmra.mrb[0].mxu0 %v1013
        %v1252 = vpop.f32.mrb[0].mxu0
        %v1253 = vadd.f32 %v1072, %v1252
        %v1254 = vpop.f32.mrb[0].mxu0
        %v1255 = vpop.f32.mrb[0].mxu0
        %v1256 = vadd.f32 %v1072, %v1255
        %v1257 = vpop.f32.mrb[0].mxu0
        %1258 = vmatprep.mubr.bf16.mxu0 %v1017
        %1259 = vmatmul.mubr.bf16.gmra.mrb[0].mxu0 %v1016
        %v1260 = vpop.f32.mrb[0].mxu0
        %v1261 = vadd.f32 %v1072, %v1260
        %v1262 = vpop.f32.mrb[0].mxu0
        %v1263 = vpop.f32.mrb[0].mxu0
        %v1264 = vadd.f32 %v1072, %v1263
        %v1265 = vpop.f32.mrb[0].mxu0
        %1266 = vdwg.mxu0
        %1267 = vmatprep.subr.bf16.mxu0 0
        %1268 = vmatpush1.bf16.msra.mxu0 %v1186
        %1269 = vmatprep.subr.bf16.mxu0 0
        %1270 = vmatpush1.bf16.msra.mxu0 %v1187
        %1271 = vmatprep.subr.bf16.mxu0 0
        %1272 = vmatpush1.bf16.msra.mxu0 %v1188
        %1273 = vmatprep.subr.bf16.mxu0 0
        %1274 = vmatpush1.bf16.msra.mxu0 %v1189
        %1275 = vmatprep.subr.bf16.mxu0 0
        %1276 = vmatpush1.bf16.msra.mxu0 %v1190
        %1277 = vmatprep.subr.bf16.mxu0 0
        %1278 = vmatpush1.bf16.msra.mxu0 %v1191
        %1279 = vmatprep.subr.bf16.mxu0 0
        %1280 = vmatpush1.bf16.msra.mxu0 %v1192
        %1281 = vmatprep.subr.bf16.mxu0 0
        %1282 = vmatpush1.bf16.msra.mxu0 %v1193
        %1283 = vmatprep.subr.bf16.mxu0 0
        %1284 = vmatpush1.bf16.msra.mxu0 0
        %1285 = vmatprep.subr.bf16.mxu0 0
        %1286 = vmatpush1.bf16.msra.mxu0 0
        %1287 = vmatprep.subr.bf16.mxu0 0
        %1288 = vmatpush1.bf16.msra.mxu0 0
        %1289 = vmatprep.subr.bf16.mxu0 0
        %1290 = vmatpush1.bf16.msra.mxu0 0
        %1291 = vmatprep.subr.bf16.mxu0 0
        %1292 = vmatpush1.bf16.msra.mxu0 0
        %1293 = vmatprep.subr.bf16.mxu0 0
        %1294 = vmatpush1.bf16.msra.mxu0 0
        %1295 = vmatprep.subr.bf16.mxu0 0
        %1296 = vmatpush1.bf16.msra.mxu0 0
        %1297 = vmatprep.subr.bf16.mxu0 0
        %1298 = vmatpush1.bf16.msra.mxu0 0
        %1299 = vmatprep.mubr.bf16.mxu0 0
        %1300 = vmatmul.mubr.bf16.gmra.mrb[0].mxu0 %v1015
        %v1301 = vpop.f32.mrb[0].mxu0
        %v1302 = vadd.f32 %v1253, %v1301
        %v1303 = vpop.f32.mrb[0].mxu0
        %v1304 = vpop.f32.mrb[0].mxu0
        %v1305 = vadd.f32 %v1256, %v1304
        %v1306 = vpop.f32.mrb[0].mxu0
        %1307 = vmatprep.mubr.bf16.mxu0 0
        %1308 = vmatmul.mubr.bf16.gmra.mrb[0].mxu0 %v1018
        %v1309 = vpop.f32.mrb[0].mxu0
        %v1310 = vadd.f32 %v1261, %v1309
        %v1311 = vpop.f32.mrb[0].mxu0
        %v1312 = vpop.f32.mrb[0].mxu0
        %v1313 = vadd.f32 %v1264, %v1312
        %v1314 = vpop.f32.mrb[0].mxu0
        %1315 = vdwg.mxu0
        %v1316 = vmax.f32 %v1302, 0.0
        %v1317 = vmax.f32 %v1305, 0.0
        %v1318 = vmax.f32 %v1310, 0.0
        %v1319 = vmax.f32 %v1313, 0.0
        %v1320 = vadd.f32 %v1316, %v1317
        %v1321 = vrot.slane %v1320, 4
        %v1322 = vadd.f32 %v1320, %v1321
        %v1323 = vrot.slane %v1322, 2
        %v1324 = vadd.f32 %v1322, %v1323
        %v1325 = vrot.slane %v1324, 1
        %v1326 = vadd.f32 %v1324, %v1325
        %v1327 = vadd.f32 %v1318, %v1319
        %v1328 = vrot.slane %v1327, 4
        %v1329 = vadd.f32 %v1327, %v1328
        %v1330 = vrot.slane %v1329, 2
        %v1331 = vadd.f32 %v1329, %v1330
        %v1332 = vrot.slane %v1331, 1
        %v1333 = vadd.f32 %v1331, %v1332
        %v1334 = vrcp.pop 16.0
        %v1335 = vmul.f32 %v1326, %v1334
        %v1336 = vmul.f32 %v1333, %v1334
        %v1337 = vsub.f32 %v1316, %v1335
        %v1338 = vsub.f32 %v1317, %v1335
        %v1339 = vsub.f32 %v1318, %v1336
        %v1340 = vsub.f32 %v1319, %v1336
        %v1341 = vmul.f32 %v1337, %v1337
        %v1342 = vmul.f32 %v1338, %v1338
        %v1343 = vmul.f32 %v1339, %v1339
        %v1344 = vmul.f32 %v1340, %v1340
        %v1345 = vadd.f32 %v1341, %v1342
        %v1346 = vrot.slane %v1345, 4
        %v1347 = vadd.f32 %v1345, %v1346
        %v1348 = vrot.slane %v1347, 2
        %v1349 = vadd.f32 %v1347, %v1348
        %v1350 = vrot.slane %v1349, 1
        %v1351 = vadd.f32 %v1349, %v1350
        %v1352 = vadd.f32 %v1343, %v1344
        %v1353 = vrot.slane %v1352, 4
        %v1354 = vadd.f32 %v1352, %v1353
        %v1355 = vrot.slane %v1354, 2
        %v1356 = vadd.f32 %v1354, %v1355
        %v1357 = vrot.slane %v1356, 1
        %v1358 = vadd.f32 %v1356, %v1357
        %v1359 = vmul.f32 %v1351, %v1334
        %v1360 = vmul.f32 %v1358, %v1334
        %v1361 = vadd.f32 %v1359, 1e-05
        %v1362 = vadd.f32 %v1360, 1e-05
        %v1363 = vrsqrt.pop %v1361
        %v1364 = vrsqrt.pop %v1362
        %v1365 = vmul.f32 %v1337, %v1363
        %v1366 = vmul.f32 %v1338, %v1363
        %v1367 = vmul.f32 %v1339, %v1364
        %v1368 = vmul.f32 %v1340, %v1364
        %v1369 = vpack.c.bf16 %v1366, %v1365
        %v1370 = vpack.c.bf16 %v1368, %v1367
        %v1371 = vld [vmem:[%s710] sm:$0xff]
        %v1372 = vld [vmem:[%s710 + $0x8] sm:$0xff]
        %v1373 = vld [vmem:[%s710 + $0x10] sm:$0xff]
        %v1374 = vld [vmem:[%s710 + $0x18] sm:$0xff]
        %v1375 = vld [vmem:[%s710 + $0x20] sm:$0xff]
        %v1376 = vld [vmem:[%s710 + $0x28] sm:$0xff]
        %v1377 = vld [vmem:[%s710 + $0x30] sm:$0xff]
        %v1378 = vld [vmem:[%s710 + $0x38] sm:$0xff]
        %v1379 = vld [vmem:[%s710 + $0x40] sm:$0xff]
        %v1380 = vld [vmem:[%s710 + $0x48] sm:$0xff]
        %v1381 = vld [vmem:[%s710 + $0x50] sm:$0xff]
        %v1382 = vld [vmem:[%s710 + $0x58] sm:$0xff]
        %v1383 = vld [vmem:[%s710 + $0x60] sm:$0xff]
        %v1384 = vld [vmem:[%s710 + $0x68] sm:$0xff]
        %v1385 = vld [vmem:[%s710 + $0x70] sm:$0xff]
        %v1386 = vld [vmem:[%s710 + $0x78] sm:$0xff]
        %v1387 = vld [vmem:[%s820] sm:$0x3]
        %v1389 = vlaneseq
        %v1390 = vshrl.u32 %v1389, 7
        %v1391 = vsub.s32 0, %v1390
        %v1392 = vrot.slane %v1387, %v1391
        %v1393 = vlaneseq
        %v1394 = vshrl.u32 %v1393, 7
        %v1395 = vsub.s32 1, %v1394
        %v1396 = vrot.slane %v1387, %v1395
        %v1415 = vunpack.c.l.b16 %v1371
        %v1416 = vunpack.c.h.b16 %v1371
        %v1417 = vunpack.c.l.b16 %v1372
        %v1418 = vunpack.c.h.b16 %v1372
        %v1419 = vunpack.c.l.b16 %v1373
        %v1420 = vunpack.c.h.b16 %v1373
        %v1421 = vunpack.c.l.b16 %v1374
        %v1422 = vunpack.c.h.b16 %v1374
        %v1423 = vunpack.c.l.b16 %v1375
        %v1424 = vunpack.c.h.b16 %v1375
        %v1425 = vunpack.c.l.b16 %v1376
        %v1426 = vunpack.c.h.b16 %v1376
        %v1427 = vunpack.c.l.b16 %v1377
        %v1428 = vunpack.c.h.b16 %v1377
        %v1429 = vunpack.c.l.b16 %v1378
        %v1430 = vunpack.c.h.b16 %v1378
        %v1431 = vunpack.c.l.b16 %v1379
        %v1432 = vunpack.c.h.b16 %v1379
        %v1433 = vunpack.c.l.b16 %v1380
        %v1434 = vunpack.c.h.b16 %v1380
        %v1435 = vunpack.c.l.b16 %v1381
        %v1436 = vunpack.c.h.b16 %v1381
        %v1437 = vunpack.c.l.b16 %v1382
        %v1438 = vunpack.c.h.b16 %v1382
        %v1439 = vunpack.c.l.b16 %v1383
        %v1440 = vunpack.c.h.b16 %v1383
        %v1441 = vunpack.c.l.b16 %v1384
        %v1442 = vunpack.c.h.b16 %v1384
        %v1443 = vunpack.c.l.b16 %v1385
        %v1444 = vunpack.c.h.b16 %v1385
        %v1445 = vunpack.c.l.b16 %v1386
        %v1446 = vunpack.c.h.b16 %v1386
        %v1447 = vpack.c.b16 %v1417, %v1415
        %v1448 = vpack.c.b16 %v1418, %v1416
        %v1449 = vpack.c.b16 %v1421, %v1419
        %v1450 = vpack.c.b16 %v1422, %v1420
        %v1451 = vpack.c.b16 %v1425, %v1423
        %v1452 = vpack.c.b16 %v1426, %v1424
        %v1453 = vpack.c.b16 %v1429, %v1427
        %v1454 = vpack.c.b16 %v1430, %v1428
        %v1455 = vpack.c.b16 %v1433, %v1431
        %v1456 = vpack.c.b16 %v1434, %v1432
        %v1457 = vpack.c.b16 %v1437, %v1435
        %v1458 = vpack.c.b16 %v1438, %v1436
        %v1459 = vpack.c.b16 %v1441, %v1439
        %v1460 = vpack.c.b16 %v1442, %v1440
        %v1461 = vpack.c.b16 %v1445, %v1443
        %v1462 = vpack.c.b16 %v1446, %v1444
        %1479 = vmatprep.subr.bf16.mxu0 %v1448
        %1480 = vmatpush1.bf16.msra.mxu0 %v1447
        %1481 = vmatprep.subr.bf16.mxu0 %v1450
        %1482 = vmatpush1.bf16.msra.mxu0 %v1449
        %1483 = vmatprep.subr.bf16.mxu0 %v1452
        %1484 = vmatpush1.bf16.msra.mxu0 %v1451
        %1485 = vmatprep.subr.bf16.mxu0 %v1454
        %1486 = vmatpush1.bf16.msra.mxu0 %v1453
        %1487 = vmatprep.subr.bf16.mxu0 %v1456
        %1488 = vmatpush1.bf16.msra.mxu0 %v1455
        %1489 = vmatprep.subr.bf16.mxu0 %v1458
        %1490 = vmatpush1.bf16.msra.mxu0 %v1457
        %1491 = vmatprep.subr.bf16.mxu0 %v1460
        %1492 = vmatpush1.bf16.msra.mxu0 %v1459
        %1493 = vmatprep.subr.bf16.mxu0 %v1462
        %1494 = vmatpush1.bf16.msra.mxu0 %v1461
        %1495 = vmatprep.subr.bf16.mxu0 0
        %1496 = vmatpush1.bf16.msra.mxu0 0
        %1497 = vmatprep.subr.bf16.mxu0 0
        %1498 = vmatpush1.bf16.msra.mxu0 0
        %1499 = vmatprep.subr.bf16.mxu0 0
        %1500 = vmatpush1.bf16.msra.mxu0 0
        %1501 = vmatprep.subr.bf16.mxu0 0
        %1502 = vmatpush1.bf16.msra.mxu0 0
        %1503 = vmatprep.subr.bf16.mxu0 0
        %1504 = vmatpush1.bf16.msra.mxu0 0
        %1505 = vmatprep.subr.bf16.mxu0 0
        %1506 = vmatpush1.bf16.msra.mxu0 0
        %1507 = vmatprep.subr.bf16.mxu0 0
        %1508 = vmatpush1.bf16.msra.mxu0 0
        %1509 = vmatprep.subr.bf16.mxu0 0
        %1510 = vmatpush1.bf16.msra.mxu0 0
        %1511 = vmatprep.mubr.bf16.mxu0 0
        %1512 = vmatmul.mubr.bf16.gmra.mrb[0].mxu0 %v1369
        %v1513 = vpop.f32.mrb[0].mxu0
        %v1514 = vadd.f32 %v1392, %v1513
        %v1515 = vpop.f32.mrb[0].mxu0
        %v1516 = vadd.f32 %v1396, %v1515
        %v1517 = vpop.f32.mrb[0].mxu0
        %v1518 = vadd.f32 %v1392, %v1517
        %v1519 = vpop.f32.mrb[0].mxu0
        %v1520 = vadd.f32 %v1396, %v1519
        %1521 = vmatprep.mubr.bf16.mxu0 0
        %1522 = vmatmul.mubr.bf16.gmra.mrb[0].mxu0 %v1370
        %v1523 = vpop.f32.mrb[0].mxu0
        %v1524 = vadd.f32 %v1392, %v1523
        %v1525 = vpop.f32.mrb[0].mxu0
        %v1526 = vadd.f32 %v1396, %v1525
        %v1527 = vpop.f32.mrb[0].mxu0
        %v1528 = vadd.f32 %v1392, %v1527
        %v1529 = vpop.f32.mrb[0].mxu0
        %v1530 = vadd.f32 %v1396, %v1529
        %1531 = vdwg.mxu0
        %v1532 = vxor.u32 %v1514, 2147483648
        %v1533 = vxor.u32 %v1516, 2147483648
        %v1534 = vxor.u32 %v1518, 2147483648
        %v1535 = vxor.u32 %v1520, 2147483648
        %v1536 = vxor.u32 %v1524, 2147483648
        %v1537 = vxor.u32 %v1526, 2147483648
        %v1538 = vxor.u32 %v1528, 2147483648
        %v1539 = vxor.u32 %v1530, 2147483648
        %v1540 = vmul.f32 %v1532, 1.442695
        %v1541 = vpow.pop %v1540
        %v1542 = vmul.f32 %v1533, 1.442695
        %v1543 = vpow.pop %v1542
        %v1544 = vmul.f32 %v1534, 1.442695
        %v1545 = vpow.pop %v1544
        %v1546 = vmul.f32 %v1535, 1.442695
        %v1547 = vpow.pop %v1546
        %v1548 = vmul.f32 %v1536, 1.442695
        %v1549 = vpow.pop %v1548
        %v1550 = vmul.f32 %v1537, 1.442695
        %v1551 = vpow.pop %v1550
        %v1552 = vmul.f32 %v1538, 1.442695
        %v1553 = vpow.pop %v1552
        %v1554 = vmul.f32 %v1539, 1.442695
        %v1555 = vpow.pop %v1554
        %v1556 = vadd.f32 %v1541, 1.0
        %v1557 = vadd.f32 %v1543, 1.0
        %v1558 = vadd.f32 %v1545, 1.0
        %v1559 = vadd.f32 %v1547, 1.0
        %v1560 = vadd.f32 %v1549, 1.0
        %v1561 = vadd.f32 %v1551, 1.0
        %v1562 = vadd.f32 %v1553, 1.0
        %v1563 = vadd.f32 %v1555, 1.0
        %v1564 = vrcp.pop %v1556
        %v1565 = vmul.f32 1.0, %v1564
        %v1566 = vrcp.pop %v1557
        %v1567 = vmul.f32 1.0, %v1566
        %v1568 = vrcp.pop %v1558
        %v1569 = vmul.f32 1.0, %v1568
        %v1570 = vrcp.pop %v1559
        %v1571 = vmul.f32 1.0, %v1570
        %v1572 = vrcp.pop %v1560
        %v1573 = vmul.f32 1.0, %v1572
        %v1574 = vrcp.pop %v1561
        %v1575 = vmul.f32 1.0, %v1574
        %v1576 = vrcp.pop %v1562
        %v1577 = vmul.f32 1.0, %v1576
        %v1578 = vrcp.pop %v1563
        %v1579 = vmul.f32 1.0, %v1578
        %v1580 = vld [vmem:[%s2] sm:$0xf]
        %v1581 = vld [vmem:[%s2 + $0x4] sm:$0xf]
        %v1582 = vld [vmem:[%s2 + $0x8] sm:$0xf]
        %v1583 = vld [vmem:[%s2 + $0xc] sm:$0xf]
        %v1584 = vld [vmem:[%s825] sm:$0xf]
        %v1585 = vld [vmem:[%s825 + $0x4] sm:$0xf]
        %v1586 = vld [vmem:[%s825 + $0x8] sm:$0xf]
        %v1587 = vld [vmem:[%s825 + $0xc] sm:$0xf]
        %v1588 = vld [vmem:[%s825 + $0x10] sm:$0xf]
        %v1589 = vld [vmem:[%s825 + $0x14] sm:$0xf]
        %v1590 = vld [vmem:[%s825 + $0x18] sm:$0xf]
        %v1591 = vld [vmem:[%s825 + $0x1c] sm:$0xf]
        %v1592 = vld [vmem:[%s825 + $0x20] sm:$0xf]
        %v1593 = vld [vmem:[%s825 + $0x24] sm:$0xf]
        %v1594 = vld [vmem:[%s825 + $0x28] sm:$0xf]
        %v1595 = vld [vmem:[%s825 + $0x2c] sm:$0xf]
        %v1596 = vld [vmem:[%s825 + $0x30] sm:$0xf]
        %v1597 = vld [vmem:[%s825 + $0x34] sm:$0xf]
        %v1598 = vld [vmem:[%s825 + $0x38] sm:$0xf]
        %v1599 = vld [vmem:[%s825 + $0x3c] sm:$0xf]
        %v1600 = vld [vmem:[%s828] sm:$0x1]
        %v1602 = vlaneseq
        %v1603 = vshrl.u32 %v1602, 7
        %v1604 = vsub.s32 0, %v1603
        %v1605 = vrot.slane %v1600, %v1604
        %v1611 = vunpack.c.l.b16 %v1580
        %v1612 = vunpack.c.l.b16 %v1581
        %v1613 = vunpack.c.l.b16 %v1582
        %v1614 = vunpack.c.l.b16 %v1583
        %v1615 = vpack.c.b16 %v1612, %v1611
        %v1616 = vpack.c.b16 %v1614, %v1613
        %v1635 = vunpack.c.l.b16 %v1584
        %v1636 = vunpack.c.l.b16 %v1585
        %v1637 = vunpack.c.l.b16 %v1586
        %v1638 = vunpack.c.l.b16 %v1587
        %v1639 = vunpack.c.l.b16 %v1588
        %v1640 = vunpack.c.l.b16 %v1589
        %v1641 = vunpack.c.l.b16 %v1590
        %v1642 = vunpack.c.l.b16 %v1591
        %v1643 = vunpack.c.l.b16 %v1592
        %v1644 = vunpack.c.l.b16 %v1593
        %v1645 = vunpack.c.l.b16 %v1594
        %v1646 = vunpack.c.l.b16 %v1595
        %v1647 = vunpack.c.l.b16 %v1596
        %v1648 = vunpack.c.l.b16 %v1597
        %v1649 = vunpack.c.l.b16 %v1598
        %v1650 = vunpack.c.l.b16 %v1599
        %v1651 = vpack.c.b16 %v1636, %v1635
        %v1652 = vpack.c.b16 %v1638, %v1637
        %v1653 = vpack.c.b16 %v1640, %v1639
        %v1654 = vpack.c.b16 %v1642, %v1641
        %v1655 = vpack.c.b16 %v1644, %v1643
        %v1656 = vpack.c.b16 %v1646, %v1645
        %v1657 = vpack.c.b16 %v1648, %v1647
        %v1658 = vpack.c.b16 %v1650, %v1649
        %1667 = vmatprep.subr.bf16.mxu0 0
        %1668 = vmatpush1.bf16.msra.mxu0 %v1651
        %1669 = vmatprep.subr.bf16.mxu0 0
        %1670 = vmatpush1.bf16.msra.mxu0 %v1652
        %1671 = vmatprep.subr.bf16.mxu0 0
        %1672 = vmatpush1.bf16.msra.mxu0 %v1653
        %1673 = vmatprep.subr.bf16.mxu0 0
        %1674 = vmatpush1.bf16.msra.mxu0 %v1654
        %1675 = vmatprep.subr.bf16.mxu0 0
        %1676 = vmatpush1.bf16.msra.mxu0 %v1655
        %1677 = vmatprep.subr.bf16.mxu0 0
        %1678 = vmatpush1.bf16.msra.mxu0 %v1656
        %1679 = vmatprep.subr.bf16.mxu0 0
        %1680 = vmatpush1.bf16.msra.mxu0 %v1657
        %1681 = vmatprep.subr.bf16.mxu0 0
        %1682 = vmatpush1.bf16.msra.mxu0 %v1658
        %1683 = vmatprep.subr.bf16.mxu0 0
        %1684 = vmatpush1.bf16.msra.mxu0 0
        %1685 = vmatprep.subr.bf16.mxu0 0
        %1686 = vmatpush1.bf16.msra.mxu0 0
        %1687 = vmatprep.subr.bf16.mxu0 0
        %1688 = vmatpush1.bf16.msra.mxu0 0
        %1689 = vmatprep.subr.bf16.mxu0 0
        %1690 = vmatpush1.bf16.msra.mxu0 0
        %1691 = vmatprep.subr.bf16.mxu0 0
        %1692 = vmatpush1.bf16.msra.mxu0 0
        %1693 = vmatprep.subr.bf16.mxu0 0
        %1694 = vmatpush1.bf16.msra.mxu0 0
        %1695 = vmatprep.subr.bf16.mxu0 0
        %1696 = vmatpush1.bf16.msra.mxu0 0
        %1697 = vmatprep.subr.bf16.mxu0 0
        %1698 = vmatpush1.bf16.msra.mxu0 0
        %1699 = vmatprep.mubr.bf16.mxu0 0
        %1700 = vmatmul.mubr.bf16.gmra.mrb[0].mxu0 %v1615
        %v1701 = vpop.f32.mrb[0].mxu0
        %v1702 = vadd.f32 %v1605, %v1701
        %v1703 = vpop.f32.mrb[0].mxu0
        %v1704 = vpop.f32.mrb[0].mxu0
        %v1705 = vadd.f32 %v1605, %v1704
        %v1706 = vpop.f32.mrb[0].mxu0
        %1707 = vmatprep.mubr.bf16.mxu0 0
        %1708 = vmatmul.mubr.bf16.gmra.mrb[0].mxu0 %v1616
        %v1709 = vpop.f32.mrb[0].mxu0
        %v1710 = vadd.f32 %v1605, %v1709
        %v1711 = vpop.f32.mrb[0].mxu0
        %v1712 = vpop.f32.mrb[0].mxu0
        %v1713 = vadd.f32 %v1605, %v1712
        %v1714 = vpop.f32.mrb[0].mxu0
        %1715 = vdwg.mxu0
        %v1716 = vld [vmem:[%s4] sm:$0xf]
        %v1717 = vld [vmem:[%s4 + $0x4] sm:$0xf]
        %v1718 = vld [vmem:[%s4 + $0x8] sm:$0xf]
        %v1719 = vld [vmem:[%s4 + $0xc] sm:$0xf]
        %v1720 = vld [vmem:[%s4 + $0x10] sm:$0xf]
        %v1721 = vld [vmem:[%s4 + $0x14] sm:$0xf]
        %v1722 = vld [vmem:[%s4 + $0x18] sm:$0xf]
        %v1723 = vld [vmem:[%s4 + $0x1c] sm:$0xf]
        %v1724 = vld [vmem:[%s4 + $0x20] sm:$0xf]
        %v1725 = vld [vmem:[%s4 + $0x24] sm:$0xf]
        %v1726 = vld [vmem:[%s4 + $0x28] sm:$0xf]
        %v1727 = vld [vmem:[%s4 + $0x2c] sm:$0xf]
        %v1728 = vld [vmem:[%s4 + $0x30] sm:$0xf]
        %v1729 = vld [vmem:[%s4 + $0x34] sm:$0xf]
        %v1730 = vld [vmem:[%s4 + $0x38] sm:$0xf]
        %v1731 = vld [vmem:[%s4 + $0x3c] sm:$0xf]
        %v1732 = vpack.c.bf16 %v1569, %v1565
        %v1733 = vpack.c.bf16 %v1577, %v1573
        %v1734 = vpack.c.bf16 %v1571, %v1567
        %v1735 = vpack.c.bf16 %v1579, %v1575
        %v1736 = vpack.c.bf16 %v1705, %v1702
        %v1737 = vpack.c.bf16 %v1713, %v1710
        %v1738 = vadd.f32 %v1567, %v1571
        %v1739 = vrot.slane %v1738, 4
        %v1740 = vadd.f32 %v1738, %v1739
        %v1741 = vrot.slane %v1740, 2
        %v1742 = vadd.f32 %v1740, %v1741
        %v1743 = vrot.slane %v1742, 1
        %v1744 = vadd.f32 %v1742, %v1743
        %v1745 = vadd.f32 %v1575, %v1579
        %v1746 = vrot.slane %v1745, 4
        %v1747 = vadd.f32 %v1745, %v1746
        %v1748 = vrot.slane %v1747, 2
        %v1749 = vadd.f32 %v1747, %v1748
        %v1750 = vrot.slane %v1749, 1
        %v1751 = vadd.f32 %v1749, %v1750
        %v1752 = vadd.f32 %v1744, 1e-06
        %v1753 = vadd.f32 %v1751, 1e-06
        %v1754 = vmul.f32 %v1565, %v1752
        %v1755 = vmul.f32 %v1569, %v1752
        %v1756 = vmul.f32 %v1573, %v1753
        %v1757 = vmul.f32 %v1577, %v1753
        %v1758 = vpack.c.bf16 %v1755, %v1754
        %v1759 = vpack.c.bf16 %v1757, %v1756
        %1760 = vxpose.xlu0.c.b16.start [1/8] %v1734, 128
        %1761 = vxpose.xlu0.c.b16.cont [2/8] 0, 128
        %1762 = vxpose.xlu0.c.b16.cont [3/8] 0, 128
        %1763 = vxpose.xlu0.c.b16.cont [4/8] 0, 128
        %1764 = vxpose.xlu0.c.b16.cont [5/8] 0, 128
        %1765 = vxpose.xlu0.c.b16.cont [6/8] 0, 128
        %1766 = vxpose.xlu0.c.b16.cont [7/8] 0, 128
        %1767 = vxpose.xlu0.c.b16.end [8/8] 0, 128
        %v1768 = vpop.trf.xlu0
        %v1769 = vpop.trf.xlu0
        %v1770 = vpop.trf.xlu0
        %v1771 = vpop.trf.xlu0
        %v1772 = vpop.trf.xlu0
        %v1773 = vpop.trf.xlu0
        %v1774 = vpop.trf.xlu0
        %v1775 = vpop.trf.xlu0
        %vm1776 = vcmask 130048
        %v1778 = vsel %vm1776, %v1768, 0
        %v1781 = vsel %vm1776, %v1769, 0
        %v1784 = vsel %vm1776, %v1770, 0
        %v1787 = vsel %vm1776, %v1771, 0
        %v1790 = vsel %vm1776, %v1772, 0
        %v1793 = vsel %vm1776, %v1773, 0
        %v1796 = vsel %vm1776, %v1774, 0
        %v1799 = vsel %vm1776, %v1775, 0
        %1801 = vmatprep.subr.bf16.mxu0 0
        %1802 = vmatpush1.bf16.msra.mxu0 %v1736
        %1803 = vmatprep.subr.bf16.mxu0 0
        %1804 = vmatpush1.bf16.msra.mxu0 0
        %1805 = vmatprep.subr.bf16.mxu0 0
        %1806 = vmatpush1.bf16.msra.mxu0 0
        %1807 = vmatprep.subr.bf16.mxu0 0
        %1808 = vmatpush1.bf16.msra.mxu0 0
        %1809 = vmatprep.subr.bf16.mxu0 0
        %1810 = vmatpush1.bf16.msra.mxu0 0
        %1811 = vmatprep.subr.bf16.mxu0 0
        %1812 = vmatpush1.bf16.msra.mxu0 0
        %1813 = vmatprep.subr.bf16.mxu0 0
        %1814 = vmatpush1.bf16.msra.mxu0 0
        %1815 = vmatprep.subr.bf16.mxu0 0
        %1816 = vmatpush1.bf16.msra.mxu0 0
        %1817 = vmatprep.subr.bf16.mxu0 0
        %1818 = vmatpush1.bf16.msra.mxu0 0
        %1819 = vmatprep.subr.bf16.mxu0 0
        %1820 = vmatpush1.bf16.msra.mxu0 0
        %1821 = vmatprep.subr.bf16.mxu0 0
        %1822 = vmatpush1.bf16.msra.mxu0 0
        %1823 = vmatprep.subr.bf16.mxu0 0
        %1824 = vmatpush1.bf16.msra.mxu0 0
        %1825 = vmatprep.subr.bf16.mxu0 0
        %1826 = vmatpush1.bf16.msra.mxu0 0
        %1827 = vmatprep.subr.bf16.mxu0 0
        %1828 = vmatpush1.bf16.msra.mxu0 0
        %1829 = vmatprep.subr.bf16.mxu0 0
        %1830 = vmatpush1.bf16.msra.mxu0 0
        %1831 = vmatprep.subr.bf16.mxu0 0
        %1832 = vmatpush1.bf16.msra.mxu0 0
        %1833 = vmatprep.mubr.bf16.mxu0 0
        %1834 = vmatmul.mubr.bf16.gmra.mrb[0].mxu0 %v1778
        %v1835 = vpop.f32.mrb[0].mxu0
        %v1836 = vadd.f32 0.0, %v1835
        %v1837 = vpop.f32.mrb[0].mxu0
        %v1838 = vpop.f32.mrb[0].mxu0
        %v1839 = vadd.f32 0.0, %v1838
        %v1840 = vpop.f32.mrb[0].mxu0
        %1841 = vmatprep.mubr.bf16.mxu0 0
        %1842 = vmatmul.mubr.bf16.gmra.mrb[0].mxu0 %v1781
        %v1843 = vpop.f32.mrb[0].mxu0
        %v1844 = vadd.f32 0.0, %v1843
        %v1845 = vpop.f32.mrb[0].mxu0
        %v1846 = vpop.f32.mrb[0].mxu0
        %v1847 = vadd.f32 0.0, %v1846
        %v1848 = vpop.f32.mrb[0].mxu0
        %1849 = vmatprep.mubr.bf16.mxu0 0
        %1850 = vmatmul.mubr.bf16.gmra.mrb[0].mxu0 %v1784
        %v1851 = vpop.f32.mrb[0].mxu0
        %v1852 = vadd.f32 0.0, %v1851
        %v1853 = vpop.f32.mrb[0].mxu0
        %v1854 = vpop.f32.mrb[0].mxu0
        %v1855 = vadd.f32 0.0, %v1854
        %v1856 = vpop.f32.mrb[0].mxu0
        %1857 = vmatprep.mubr.bf16.mxu0 0
        %1858 = vmatmul.mubr.bf16.gmra.mrb[0].mxu0 %v1787
        %v1859 = vpop.f32.mrb[0].mxu0
        %v1860 = vadd.f32 0.0, %v1859
        %v1861 = vpop.f32.mrb[0].mxu0
        %v1862 = vpop.f32.mrb[0].mxu0
        %v1863 = vadd.f32 0.0, %v1862
        %v1864 = vpop.f32.mrb[0].mxu0
        %1865 = vmatprep.mubr.bf16.mxu0 0
        %1866 = vmatmul.mubr.bf16.gmra.mrb[0].mxu0 %v1790
        %v1867 = vpop.f32.mrb[0].mxu0
        %v1868 = vadd.f32 0.0, %v1867
        %v1869 = vpop.f32.mrb[0].mxu0
        %v1870 = vpop.f32.mrb[0].mxu0
        %v1871 = vadd.f32 0.0, %v1870
        %v1872 = vpop.f32.mrb[0].mxu0
        %1873 = vmatprep.mubr.bf16.mxu0 0
        %1874 = vmatmul.mubr.bf16.gmra.mrb[0].mxu0 %v1793
        %v1875 = vpop.f32.mrb[0].mxu0
        %v1876 = vadd.f32 0.0, %v1875
        %v1877 = vpop.f32.mrb[0].mxu0
        %v1878 = vpop.f32.mrb[0].mxu0
        %v1879 = vadd.f32 0.0, %v1878
        %v1880 = vpop.f32.mrb[0].mxu0
        %1881 = vmatprep.mubr.bf16.mxu0 0
        %1882 = vmatmul.mubr.bf16.gmra.mrb[0].mxu0 %v1796
        %v1883 = vpop.f32.mrb[0].mxu0
        %v1884 = vadd.f32 0.0, %v1883
        %v1885 = vpop.f32.mrb[0].mxu0
        %v1886 = vpop.f32.mrb[0].mxu0
        %v1887 = vadd.f32 0.0, %v1886
        %v1888 = vpop.f32.mrb[0].mxu0
        %1889 = vmatprep.mubr.bf16.mxu0 0
        %1890 = vmatmul.mubr.bf16.gmra.mrb[0].mxu0 %v1799
        %v1891 = vpop.f32.mrb[0].mxu0
        %v1892 = vadd.f32 0.0, %v1891
        %v1893 = vpop.f32.mrb[0].mxu0
        %v1894 = vpop.f32.mrb[0].mxu0
        %v1895 = vadd.f32 0.0, %v1894
        %v1896 = vpop.f32.mrb[0].mxu0
        %1897 = vdwg.mxu0
        %v1898 = vpack.c.bf16 %v1839, %v1836
        %v1899 = vpack.c.bf16 %v1847, %v1844
        %v1900 = vpack.c.bf16 %v1855, %v1852
        %v1901 = vpack.c.bf16 %v1863, %v1860
        %v1902 = vpack.c.bf16 %v1871, %v1868
        %v1903 = vpack.c.bf16 %v1879, %v1876
        %v1904 = vpack.c.bf16 %v1887, %v1884
        %v1905 = vpack.c.bf16 %v1895, %v1892
        %v1922 = vunpack.c.l.b16 %v1716
        %v1923 = vunpack.c.l.b16 %v1717
        %v1924 = vunpack.c.l.b16 %v1718
        %v1925 = vunpack.c.l.b16 %v1719
        %v1926 = vunpack.c.l.b16 %v1720
        %v1927 = vunpack.c.l.b16 %v1721
        %v1928 = vunpack.c.l.b16 %v1722
        %v1929 = vunpack.c.l.b16 %v1723
        %v1930 = vunpack.c.l.b16 %v1724
        %v1931 = vunpack.c.l.b16 %v1725
        %v1932 = vunpack.c.l.b16 %v1726
        %v1933 = vunpack.c.l.b16 %v1727
        %v1934 = vunpack.c.l.b16 %v1728
        %v1935 = vunpack.c.l.b16 %v1729
        %v1936 = vunpack.c.l.b16 %v1730
        %v1937 = vunpack.c.l.b16 %v1731
        %v1938 = vpack.c.b16 %v1923, %v1922
        %v1939 = vpack.c.b16 %v1925, %v1924
        %v1940 = vpack.c.b16 %v1927, %v1926
        %v1941 = vpack.c.b16 %v1929, %v1928
        %v1942 = vpack.c.b16 %v1931, %v1930
        %v1943 = vpack.c.b16 %v1933, %v1932
        %v1944 = vpack.c.b16 %v1935, %v1934
        %v1945 = vpack.c.b16 %v1937, %v1936
        %v1954 = vmul.bf16 %v1898, %v1938
        %v1955 = vmul.bf16 %v1899, %v1939
        %v1956 = vmul.bf16 %v1900, %v1940
        %v1957 = vmul.bf16 %v1901, %v1941
        %v1958 = vmul.bf16 %v1902, %v1942
        %v1959 = vmul.bf16 %v1903, %v1943
        %v1960 = vmul.bf16 %v1904, %v1944
        %v1961 = vmul.bf16 %v1905, %v1945
        %1962 = vmatprep.subr.bf16.mxu0 0
        %1963 = vmatpush1.bf16.msra.mxu0 %v1954
        %1964 = vmatprep.subr.bf16.mxu0 0
        %1965 = vmatpush1.bf16.msra.mxu0 %v1955
        %1966 = vmatprep.subr.bf16.mxu0 0
        %1967 = vmatpush1.bf16.msra.mxu0 %v1956
        %1968 = vmatprep.subr.bf16.mxu0 0
        %1969 = vmatpush1.bf16.msra.mxu0 %v1957
        %1970 = vmatprep.subr.bf16.mxu0 0
        %1971 = vmatpush1.bf16.msra.mxu0 %v1958
        %1972 = vmatprep.subr.bf16.mxu0 0
        %1973 = vmatpush1.bf16.msra.mxu0 %v1959
        %1974 = vmatprep.subr.bf16.mxu0 0
        %1975 = vmatpush1.bf16.msra.mxu0 %v1960
        %1976 = vmatprep.subr.bf16.mxu0 0
        %1977 = vmatpush1.bf16.msra.mxu0 %v1961
        %1978 = vmatprep.subr.bf16.mxu0 0
        %1979 = vmatpush1.bf16.msra.mxu0 0
        %1980 = vmatprep.subr.bf16.mxu0 0
        %1981 = vmatpush1.bf16.msra.mxu0 0
        %1982 = vmatprep.subr.bf16.mxu0 0
        %1983 = vmatpush1.bf16.msra.mxu0 0
        %1984 = vmatprep.subr.bf16.mxu0 0
        %1985 = vmatpush1.bf16.msra.mxu0 0
        %1986 = vmatprep.subr.bf16.mxu0 0
        %1987 = vmatpush1.bf16.msra.mxu0 0
        %1988 = vmatprep.subr.bf16.mxu0 0
        %1989 = vmatpush1.bf16.msra.mxu0 0
        %1990 = vmatprep.subr.bf16.mxu0 0
        %1991 = vmatpush1.bf16.msra.mxu0 0
        %1992 = vmatprep.subr.bf16.mxu0 0
        %1993 = vmatpush1.bf16.msra.mxu0 0
        %1994 = vmatprep.mubr.bf16.mxu0 0
        %1995 = vmatmul.mubr.bf16.gmra.mrb[0].mxu0 %v1732
        %v1996 = vpop.f32.mrb[0].mxu0
        %v1997 = vadd.f32 0.0, %v1996
        %v1998 = vpop.f32.mrb[0].mxu0
        %v1999 = vpop.f32.mrb[0].mxu0
        %v2000 = vadd.f32 0.0, %v1999
        %v2001 = vpop.f32.mrb[0].mxu0
        %2002 = vdwg.mxu0
        %2003 = vxpose.xlu0.c.b16.start [1/8] %v1735, 128
        %2004 = vxpose.xlu0.c.b16.cont [2/8] 0, 128
        %2005 = vxpose.xlu0.c.b16.cont [3/8] 0, 128
        %2006 = vxpose.xlu0.c.b16.cont [4/8] 0, 128
        %2007 = vxpose.xlu0.c.b16.cont [5/8] 0, 128
        %2008 = vxpose.xlu0.c.b16.cont [6/8] 0, 128
        %2009 = vxpose.xlu0.c.b16.cont [7/8] 0, 128
        %2010 = vxpose.xlu0.c.b16.end [8/8] 0, 128
        %v2011 = vpop.trf.xlu0
        %v2012 = vpop.trf.xlu0
        %v2013 = vpop.trf.xlu0
        %v2014 = vpop.trf.xlu0
        %v2015 = vpop.trf.xlu0
        %v2016 = vpop.trf.xlu0
        %v2017 = vpop.trf.xlu0
        %v2018 = vpop.trf.xlu0
        %v2020 = vsel %vm1776, %v2011, 0
        %v2023 = vsel %vm1776, %v2012, 0
        %v2026 = vsel %vm1776, %v2013, 0
        %v2029 = vsel %vm1776, %v2014, 0
        %v2032 = vsel %vm1776, %v2015, 0
        %v2035 = vsel %vm1776, %v2016, 0
        %v2038 = vsel %vm1776, %v2017, 0
        %v2041 = vsel %vm1776, %v2018, 0
        %2043 = vmatprep.subr.bf16.mxu0 0
        %2044 = vmatpush1.bf16.msra.mxu0 %v1737
        %2045 = vmatprep.subr.bf16.mxu0 0
        %2046 = vmatpush1.bf16.msra.mxu0 0
        %2047 = vmatprep.subr.bf16.mxu0 0
        %2048 = vmatpush1.bf16.msra.mxu0 0
        %2049 = vmatprep.subr.bf16.mxu0 0
        %2050 = vmatpush1.bf16.msra.mxu0 0
        %2051 = vmatprep.subr.bf16.mxu0 0
        %2052 = vmatpush1.bf16.msra.mxu0 0
        %2053 = vmatprep.subr.bf16.mxu0 0
        %2054 = vmatpush1.bf16.msra.mxu0 0
        %2055 = vmatprep.subr.bf16.mxu0 0
        %2056 = vmatpush1.bf16.msra.mxu0 0
        %2057 = vmatprep.subr.bf16.mxu0 0
        %2058 = vmatpush1.bf16.msra.mxu0 0
        %2059 = vmatprep.subr.bf16.mxu0 0
        %2060 = vmatpush1.bf16.msra.mxu0 0
        %2061 = vmatprep.subr.bf16.mxu0 0
        %2062 = vmatpush1.bf16.msra.mxu0 0
        %2063 = vmatprep.subr.bf16.mxu0 0
        %2064 = vmatpush1.bf16.msra.mxu0 0
        %2065 = vmatprep.subr.bf16.mxu0 0
        %2066 = vmatpush1.bf16.msra.mxu0 0
        %2067 = vmatprep.subr.bf16.mxu0 0
        %2068 = vmatpush1.bf16.msra.mxu0 0
        %2069 = vmatprep.subr.bf16.mxu0 0
        %2070 = vmatpush1.bf16.msra.mxu0 0
        %2071 = vmatprep.subr.bf16.mxu0 0
        %2072 = vmatpush1.bf16.msra.mxu0 0
        %2073 = vmatprep.subr.bf16.mxu0 0
        %2074 = vmatpush1.bf16.msra.mxu0 0
        %2075 = vmatprep.mubr.bf16.mxu0 0
        %2076 = vmatmul.mubr.bf16.gmra.mrb[0].mxu0 %v2020
        %v2077 = vpop.f32.mrb[0].mxu0
        %v2078 = vadd.f32 0.0, %v2077
        %v2079 = vpop.f32.mrb[0].mxu0
        %v2080 = vpop.f32.mrb[0].mxu0
        %v2081 = vadd.f32 0.0, %v2080
        %v2082 = vpop.f32.mrb[0].mxu0
        %2083 = vmatprep.mubr.bf16.mxu0 0
        %2084 = vmatmul.mubr.bf16.gmra.mrb[0].mxu0 %v2023
        %v2085 = vpop.f32.mrb[0].mxu0
        %v2086 = vadd.f32 0.0, %v2085
        %v2087 = vpop.f32.mrb[0].mxu0
        %v2088 = vpop.f32.mrb[0].mxu0
        %v2089 = vadd.f32 0.0, %v2088
        %v2090 = vpop.f32.mrb[0].mxu0
        %2091 = vmatprep.mubr.bf16.mxu0 0
        %2092 = vmatmul.mubr.bf16.gmra.mrb[0].mxu0 %v2026
        %v2093 = vpop.f32.mrb[0].mxu0
        %v2094 = vadd.f32 0.0, %v2093
        %v2095 = vpop.f32.mrb[0].mxu0
        %v2096 = vpop.f32.mrb[0].mxu0
        %v2097 = vadd.f32 0.0, %v2096
        %v2098 = vpop.f32.mrb[0].mxu0
        %2099 = vmatprep.mubr.bf16.mxu0 0
        %2100 = vmatmul.mubr.bf16.gmra.mrb[0].mxu0 %v2029
        %v2101 = vpop.f32.mrb[0].mxu0
        %v2102 = vadd.f32 0.0, %v2101
        %v2103 = vpop.f32.mrb[0].mxu0
        %v2104 = vpop.f32.mrb[0].mxu0
        %v2105 = vadd.f32 0.0, %v2104
        %v2106 = vpop.f32.mrb[0].mxu0
        %2107 = vmatprep.mubr.bf16.mxu0 0
        %2108 = vmatmul.mubr.bf16.gmra.mrb[0].mxu0 %v2032
        %v2109 = vpop.f32.mrb[0].mxu0
        %v2110 = vadd.f32 0.0, %v2109
        %v2111 = vpop.f32.mrb[0].mxu0
        %v2112 = vpop.f32.mrb[0].mxu0
        %v2113 = vadd.f32 0.0, %v2112
        %v2114 = vpop.f32.mrb[0].mxu0
        %2115 = vmatprep.mubr.bf16.mxu0 0
        %2116 = vmatmul.mubr.bf16.gmra.mrb[0].mxu0 %v2035
        %v2117 = vpop.f32.mrb[0].mxu0
        %v2118 = vadd.f32 0.0, %v2117
        %v2119 = vpop.f32.mrb[0].mxu0
        %v2120 = vpop.f32.mrb[0].mxu0
        %v2121 = vadd.f32 0.0, %v2120
        %v2122 = vpop.f32.mrb[0].mxu0
        %2123 = vmatprep.mubr.bf16.mxu0 0
        %2124 = vmatmul.mubr.bf16.gmra.mrb[0].mxu0 %v2038
        %v2125 = vpop.f32.mrb[0].mxu0
        %v2126 = vadd.f32 0.0, %v2125
        %v2127 = vpop.f32.mrb[0].mxu0
        %v2128 = vpop.f32.mrb[0].mxu0
        %v2129 = vadd.f32 0.0, %v2128
        %v2130 = vpop.f32.mrb[0].mxu0
        %2131 = vmatprep.mubr.bf16.mxu0 0
        %2132 = vmatmul.mubr.bf16.gmra.mrb[0].mxu0 %v2041
        %v2133 = vpop.f32.mrb[0].mxu0
        %v2134 = vadd.f32 0.0, %v2133
        %v2135 = vpop.f32.mrb[0].mxu0
        %v2136 = vpop.f32.mrb[0].mxu0
        %v2137 = vadd.f32 0.0, %v2136
        %v2138 = vpop.f32.mrb[0].mxu0
        %2139 = vdwg.mxu0
        %v2140 = vpack.c.bf16 %v2081, %v2078
        %v2141 = vpack.c.bf16 %v2089, %v2086
        %v2142 = vpack.c.bf16 %v2097, %v2094
        %v2143 = vpack.c.bf16 %v2105, %v2102
        %v2144 = vpack.c.bf16 %v2113, %v2110
        %v2145 = vpack.c.bf16 %v2121, %v2118
        %v2146 = vpack.c.bf16 %v2129, %v2126
        %v2147 = vpack.c.bf16 %v2137, %v2134
        %v2148 = vmul.bf16 %v2140, %v1938
        %v2149 = vmul.bf16 %v2141, %v1939
        %v2150 = vmul.bf16 %v2142, %v1940
        %v2151 = vmul.bf16 %v2143, %v1941
        %v2152 = vmul.bf16 %v2144, %v1942
        %v2153 = vmul.bf16 %v2145, %v1943
        %v2154 = vmul.bf16 %v2146, %v1944
        %v2155 = vmul.bf16 %v2147, %v1945
        %2156 = vmatprep.subr.bf16.mxu0 0
        %2157 = vmatpush1.bf16.msra.mxu0 %v2148
        %2158 = vmatprep.subr.bf16.mxu0 0
        %2159 = vmatpush1.bf16.msra.mxu0 %v2149
        %2160 = vmatprep.subr.bf16.mxu0 0
        %2161 = vmatpush1.bf16.msra.mxu0 %v2150
        %2162 = vmatprep.subr.bf16.mxu0 0
        %2163 = vmatpush1.bf16.msra.mxu0 %v2151
        %2164 = vmatprep.subr.bf16.mxu0 0
        %2165 = vmatpush1.bf16.msra.mxu0 %v2152
        %2166 = vmatprep.subr.bf16.mxu0 0
        %2167 = vmatpush1.bf16.msra.mxu0 %v2153
        %2168 = vmatprep.subr.bf16.mxu0 0
        %2169 = vmatpush1.bf16.msra.mxu0 %v2154
        %2170 = vmatprep.subr.bf16.mxu0 0
        %2171 = vmatpush1.bf16.msra.mxu0 %v2155
        %2172 = vmatprep.subr.bf16.mxu0 0
        %2173 = vmatpush1.bf16.msra.mxu0 0
        %2174 = vmatprep.subr.bf16.mxu0 0
        %2175 = vmatpush1.bf16.msra.mxu0 0
        %2176 = vmatprep.subr.bf16.mxu0 0
        %2177 = vmatpush1.bf16.msra.mxu0 0
        %2178 = vmatprep.subr.bf16.mxu0 0
        %2179 = vmatpush1.bf16.msra.mxu0 0
        %2180 = vmatprep.subr.bf16.mxu0 0
        %2181 = vmatpush1.bf16.msra.mxu0 0
        %2182 = vmatprep.subr.bf16.mxu0 0
        %2183 = vmatpush1.bf16.msra.mxu0 0
        %2184 = vmatprep.subr.bf16.mxu0 0
        %2185 = vmatpush1.bf16.msra.mxu0 0
        %2186 = vmatprep.subr.bf16.mxu0 0
        %2187 = vmatpush1.bf16.msra.mxu0 0
        %2188 = vmatprep.mubr.bf16.mxu0 0
        %2189 = vmatmul.mubr.bf16.gmra.mrb[0].mxu0 %v1733
        %v2190 = vpop.f32.mrb[0].mxu0
        %v2191 = vadd.f32 0.0, %v2190
        %v2192 = vpop.f32.mrb[0].mxu0
        %v2193 = vpop.f32.mrb[0].mxu0
        %v2194 = vadd.f32 0.0, %v2193
        %v2195 = vpop.f32.mrb[0].mxu0
        %2196 = vdwg.mxu0
        %v2197 = vlaneseq
        %v2198 = vand.u32 %v2197, 127
        %vm2199 = vcmp.ge.s32.totalorder %v2198, 32
        %v2200 = vsel %vm2199, 1.0, 0.0
        %2201 = vmatprep.subr.bf16.mxu0 0
        %2202 = vmatpush1.bf16.msra.mxu0 %v1938
        %2203 = vmatprep.subr.bf16.mxu0 0
        %2204 = vmatpush1.bf16.msra.mxu0 %v1939
        %2205 = vmatprep.subr.bf16.mxu0 0
        %2206 = vmatpush1.bf16.msra.mxu0 %v1940
        %2207 = vmatprep.subr.bf16.mxu0 0
        %2208 = vmatpush1.bf16.msra.mxu0 %v1941
        %2209 = vmatprep.subr.bf16.mxu0 0
        %2210 = vmatpush1.bf16.msra.mxu0 %v1942
        %2211 = vmatprep.subr.bf16.mxu0 0
        %2212 = vmatpush1.bf16.msra.mxu0 %v1943
        %2213 = vmatprep.subr.bf16.mxu0 0
        %2214 = vmatpush1.bf16.msra.mxu0 %v1944
        %2215 = vmatprep.subr.bf16.mxu0 0
        %2216 = vmatpush1.bf16.msra.mxu0 %v1945
        %2217 = vmatprep.subr.bf16.mxu0 0
        %2218 = vmatpush1.bf16.msra.mxu0 0
        %2219 = vmatprep.subr.bf16.mxu0 0
        %2220 = vmatpush1.bf16.msra.mxu0 0
        %2221 = vmatprep.subr.bf16.mxu0 0
        %2222 = vmatpush1.bf16.msra.mxu0 0
        %2223 = vmatprep.subr.bf16.mxu0 0
        %2224 = vmatpush1.bf16.msra.mxu0 0
        %2225 = vmatprep.subr.bf16.mxu0 0
        %2226 = vmatpush1.bf16.msra.mxu0 0
        %2227 = vmatprep.subr.bf16.mxu0 0
        %2228 = vmatpush1.bf16.msra.mxu0 0
        %2229 = vmatprep.subr.bf16.mxu0 0
        %2230 = vmatpush1.bf16.msra.mxu0 0
        %2231 = vmatprep.subr.bf16.mxu0 0
        %2232 = vmatpush1.bf16.msra.mxu0 0
        %2233 = vmatprep.mubr.bf16.mxu0 0
        %2234 = vmatmul.mubr.bf16.gmra.mrb[0].mxu0 %v1758
        %v2235 = vpop.f32.mrb[0].mxu0
        %v2236 = vadd.f32 %v2200, %v2235
        %v2237 = vpop.f32.mrb[0].mxu0
        %v2238 = vpop.f32.mrb[0].mxu0
        %v2239 = vadd.f32 %v2200, %v2238
        %v2240 = vpop.f32.mrb[0].mxu0
        %2241 = vmatprep.mubr.bf16.mxu0 0
        %2242 = vmatmul.mubr.bf16.gmra.mrb[0].mxu0 %v1759
        %v2243 = vpop.f32.mrb[0].mxu0
        %v2244 = vadd.f32 %v2200, %v2243
        %v2245 = vpop.f32.mrb[0].mxu0
        %v2246 = vpop.f32.mrb[0].mxu0
        %v2247 = vadd.f32 %v2200, %v2246
        %v2248 = vpop.f32.mrb[0].mxu0
        %2249 = vdwg.mxu0
        %v2250 = vrcp.pop %v2236
        %v2251 = vmul.f32 %v1997, %v2250
        %v2252 = vrcp.pop %v2239
        %v2253 = vmul.f32 %v2000, %v2252
        %v2254 = vrcp.pop %v2244
        %v2255 = vmul.f32 %v2191, %v2254
        %v2256 = vrcp.pop %v2247
        %v2257 = vmul.f32 %v2194, %v2256
        %v2258 = vpack.c.bf16 %v2253, %v2251
        %v2259 = vpack.c.bf16 %v2257, %v2255
        %v2260 = vld [vmem:[%s719] sm:$0xf]
        %v2261 = vld [vmem:[%s719 + $0x4] sm:$0xf]
        %v2262 = vld [vmem:[%s719 + $0x8] sm:$0xf]
        %v2263 = vld [vmem:[%s719 + $0xc] sm:$0xf]
        %v2264 = vld [vmem:[%s719 + $0x10] sm:$0xf]
        %v2265 = vld [vmem:[%s719 + $0x14] sm:$0xf]
        %v2266 = vld [vmem:[%s719 + $0x18] sm:$0xf]
        %v2267 = vld [vmem:[%s719 + $0x1c] sm:$0xf]
        %v2268 = vld [vmem:[%s719 + $0x20] sm:$0xf]
        %v2269 = vld [vmem:[%s719 + $0x24] sm:$0xf]
        %v2270 = vld [vmem:[%s719 + $0x28] sm:$0xf]
        %v2271 = vld [vmem:[%s719 + $0x2c] sm:$0xf]
        %v2272 = vld [vmem:[%s719 + $0x30] sm:$0xf]
        %v2273 = vld [vmem:[%s719 + $0x34] sm:$0xf]
        %v2274 = vld [vmem:[%s719 + $0x38] sm:$0xf]
        %v2275 = vld [vmem:[%s719 + $0x3c] sm:$0xf]
        %v2276 = vld [vmem:[%s831] sm:$0x1]
        %v2278 = vlaneseq
        %v2279 = vshrl.u32 %v2278, 7
        %v2280 = vsub.s32 0, %v2279
        %v2281 = vrot.slane %v2276, %v2280
        %v2299 = vunpack.c.l.b16 %v2260
        %v2300 = vunpack.c.l.b16 %v2261
        %v2301 = vunpack.c.l.b16 %v2262
        %v2302 = vunpack.c.l.b16 %v2263
        %v2303 = vunpack.c.l.b16 %v2264
        %v2304 = vunpack.c.l.b16 %v2265
        %v2305 = vunpack.c.l.b16 %v2266
        %v2306 = vunpack.c.l.b16 %v2267
        %v2307 = vunpack.c.l.b16 %v2268
        %v2308 = vunpack.c.l.b16 %v2269
        %v2309 = vunpack.c.l.b16 %v2270
        %v2310 = vunpack.c.l.b16 %v2271
        %v2311 = vunpack.c.l.b16 %v2272
        %v2312 = vunpack.c.l.b16 %v2273
        %v2313 = vunpack.c.l.b16 %v2274
        %v2314 = vunpack.c.l.b16 %v2275
        %v2315 = vpack.c.b16 %v2300, %v2299
        %v2316 = vpack.c.b16 %v2302, %v2301
        %v2317 = vpack.c.b16 %v2304, %v2303
        %v2318 = vpack.c.b16 %v2306, %v2305
        %v2319 = vpack.c.b16 %v2308, %v2307
        %v2320 = vpack.c.b16 %v2310, %v2309
        %v2321 = vpack.c.b16 %v2312, %v2311
        %v2322 = vpack.c.b16 %v2314, %v2313
        %2331 = vmatprep.subr.bf16.mxu0 0
        %2332 = vmatpush1.bf16.msra.mxu0 %v2315
        %2333 = vmatprep.subr.bf16.mxu0 0
        %2334 = vmatpush1.bf16.msra.mxu0 %v2316
        %2335 = vmatprep.subr.bf16.mxu0 0
        %2336 = vmatpush1.bf16.msra.mxu0 %v2317
        %2337 = vmatprep.subr.bf16.mxu0 0
        %2338 = vmatpush1.bf16.msra.mxu0 %v2318
        %2339 = vmatprep.subr.bf16.mxu0 0
        %2340 = vmatpush1.bf16.msra.mxu0 %v2319
        %2341 = vmatprep.subr.bf16.mxu0 0
        %2342 = vmatpush1.bf16.msra.mxu0 %v2320
        %2343 = vmatprep.subr.bf16.mxu0 0
        %2344 = vmatpush1.bf16.msra.mxu0 %v2321
        %2345 = vmatprep.subr.bf16.mxu0 0
        %2346 = vmatpush1.bf16.msra.mxu0 %v2322
        %2347 = vmatprep.subr.bf16.mxu0 0
        %2348 = vmatpush1.bf16.msra.mxu0 0
        %2349 = vmatprep.subr.bf16.mxu0 0
        %2350 = vmatpush1.bf16.msra.mxu0 0
        %2351 = vmatprep.subr.bf16.mxu0 0
        %2352 = vmatpush1.bf16.msra.mxu0 0
        %2353 = vmatprep.subr.bf16.mxu0 0
        %2354 = vmatpush1.bf16.msra.mxu0 0
        %2355 = vmatprep.subr.bf16.mxu0 0
        %2356 = vmatpush1.bf16.msra.mxu0 0
        %2357 = vmatprep.subr.bf16.mxu0 0
        %2358 = vmatpush1.bf16.msra.mxu0 0
        %2359 = vmatprep.subr.bf16.mxu0 0
        %2360 = vmatpush1.bf16.msra.mxu0 0
        %2361 = vmatprep.subr.bf16.mxu0 0
        %2362 = vmatpush1.bf16.msra.mxu0 0
        %2363 = vmatprep.mubr.bf16.mxu0 0
        %2364 = vmatmul.mubr.bf16.gmra.mrb[0].mxu0 %v2258
        %v2365 = vpop.f32.mrb[0].mxu0
        %v2366 = vadd.f32 %v2281, %v2365
        %v2367 = vpop.f32.mrb[0].mxu0
        %v2368 = vpop.f32.mrb[0].mxu0
        %v2369 = vadd.f32 %v2281, %v2368
        %v2370 = vpop.f32.mrb[0].mxu0
        %2371 = vmatprep.mubr.bf16.mxu0 0
        %2372 = vmatmul.mubr.bf16.gmra.mrb[0].mxu0 %v2259
        %v2373 = vpop.f32.mrb[0].mxu0
        %v2374 = vadd.f32 %v2281, %v2373
        %v2375 = vpop.f32.mrb[0].mxu0
        %v2376 = vpop.f32.mrb[0].mxu0
        %v2377 = vadd.f32 %v2281, %v2376
        %v2378 = vpop.f32.mrb[0].mxu0
        %2379 = vdwg.mxu0
        %2381 = vset.pattern.permute.xlu0 0
        %2382 = vperm.xlu0 %2381, %v837
        %v2383 = vpop.permute.xlu0 %2382
        %2386 = vset.pattern.permute.xlu0 0
        %2387 = vperm.xlu0 %2386, %v838
        %v2388 = vpop.permute.xlu0 %2387
        %2391 = vset.pattern.permute.xlu0 0
        %2392 = vperm.xlu0 %2391, %v839
        %v2393 = vpop.permute.xlu0 %2392
        %2396 = vset.pattern.permute.xlu0 0
        %2397 = vperm.xlu0 %2396, %v840
        %v2398 = vpop.permute.xlu0 %2397
        %v2400 = vmul.f32 %v2366, %v2383
        %v2401 = vmul.f32 %v2369, %v2388
        %v2402 = vmul.f32 %v2374, %v2393
        %v2403 = vmul.f32 %v2377, %v2398
        %v2404 = vadd.f32 %v2400, %v1316
        %v2405 = vadd.f32 %v2401, %v1317
        %v2406 = vadd.f32 %v2402, %v1318
        %v2407 = vadd.f32 %v2403, %v1319
        %v2408 = vpack.c.bf16 %v2405, %v2404
        %v2409 = vpack.c.bf16 %v2407, %v2406
        %v2410 = vld [vmem:[%s728] sm:$0xf]
        %v2411 = vld [vmem:[%s728 + $0x4] sm:$0xf]
        %v2412 = vld [vmem:[%s728 + $0x8] sm:$0xf]
        %v2413 = vld [vmem:[%s728 + $0xc] sm:$0xf]
        %v2414 = vld [vmem:[%s728 + $0x10] sm:$0xf]
        %v2415 = vld [vmem:[%s728 + $0x14] sm:$0xf]
        %v2416 = vld [vmem:[%s728 + $0x18] sm:$0xf]
        %v2417 = vld [vmem:[%s728 + $0x1c] sm:$0xf]
        %v2418 = vld [vmem:[%s728 + $0x20] sm:$0xf]
        %v2419 = vld [vmem:[%s728 + $0x24] sm:$0xf]
        %v2420 = vld [vmem:[%s728 + $0x28] sm:$0xf]
        %v2421 = vld [vmem:[%s728 + $0x2c] sm:$0xf]
        %v2422 = vld [vmem:[%s728 + $0x30] sm:$0xf]
        %v2423 = vld [vmem:[%s728 + $0x34] sm:$0xf]
        %v2424 = vld [vmem:[%s728 + $0x38] sm:$0xf]
        %v2425 = vld [vmem:[%s728 + $0x3c] sm:$0xf]
        %v2426 = vld [vmem:[%s834] sm:$0x1]
        %v2428 = vlaneseq
        %v2429 = vshrl.u32 %v2428, 7
        %v2430 = vsub.s32 0, %v2429
        %v2431 = vrot.slane %v2426, %v2430
        %v2449 = vunpack.c.l.b16 %v2410
        %v2450 = vunpack.c.l.b16 %v2411
        %v2451 = vunpack.c.l.b16 %v2412
        %v2452 = vunpack.c.l.b16 %v2413
        %v2453 = vunpack.c.l.b16 %v2414
        %v2454 = vunpack.c.l.b16 %v2415
        %v2455 = vunpack.c.l.b16 %v2416
        %v2456 = vunpack.c.l.b16 %v2417
        %v2457 = vunpack.c.l.b16 %v2418
        %v2458 = vunpack.c.l.b16 %v2419
        %v2459 = vunpack.c.l.b16 %v2420
        %v2460 = vunpack.c.l.b16 %v2421
        %v2461 = vunpack.c.l.b16 %v2422
        %v2462 = vunpack.c.l.b16 %v2423
        %v2463 = vunpack.c.l.b16 %v2424
        %v2464 = vunpack.c.l.b16 %v2425
        %v2465 = vpack.c.b16 %v2450, %v2449
        %v2466 = vpack.c.b16 %v2452, %v2451
        %v2467 = vpack.c.b16 %v2454, %v2453
        %v2468 = vpack.c.b16 %v2456, %v2455
        %v2469 = vpack.c.b16 %v2458, %v2457
        %v2470 = vpack.c.b16 %v2460, %v2459
        %v2471 = vpack.c.b16 %v2462, %v2461
        %v2472 = vpack.c.b16 %v2464, %v2463
        %2481 = vmatprep.subr.bf16.mxu0 0
        %2482 = vmatpush1.bf16.msra.mxu0 %v2465
        %2483 = vmatprep.subr.bf16.mxu0 0
        %2484 = vmatpush1.bf16.msra.mxu0 %v2466
        %2485 = vmatprep.subr.bf16.mxu0 0
        %2486 = vmatpush1.bf16.msra.mxu0 %v2467
        %2487 = vmatprep.subr.bf16.mxu0 0
        %2488 = vmatpush1.bf16.msra.mxu0 %v2468
        %2489 = vmatprep.subr.bf16.mxu0 0
        %2490 = vmatpush1.bf16.msra.mxu0 %v2469
        %2491 = vmatprep.subr.bf16.mxu0 0
        %2492 = vmatpush1.bf16.msra.mxu0 %v2470
        %2493 = vmatprep.subr.bf16.mxu0 0
        %2494 = vmatpush1.bf16.msra.mxu0 %v2471
        %2495 = vmatprep.subr.bf16.mxu0 0
        %2496 = vmatpush1.bf16.msra.mxu0 %v2472
        %2497 = vmatprep.subr.bf16.mxu0 0
        %2498 = vmatpush1.bf16.msra.mxu0 0
        %2499 = vmatprep.subr.bf16.mxu0 0
        %2500 = vmatpush1.bf16.msra.mxu0 0
        %2501 = vmatprep.subr.bf16.mxu0 0
        %2502 = vmatpush1.bf16.msra.mxu0 0
        %2503 = vmatprep.subr.bf16.mxu0 0
        %2504 = vmatpush1.bf16.msra.mxu0 0
        %2505 = vmatprep.subr.bf16.mxu0 0
        %2506 = vmatpush1.bf16.msra.mxu0 0
        %2507 = vmatprep.subr.bf16.mxu0 0
        %2508 = vmatpush1.bf16.msra.mxu0 0
        %2509 = vmatprep.subr.bf16.mxu0 0
        %2510 = vmatpush1.bf16.msra.mxu0 0
        %2511 = vmatprep.subr.bf16.mxu0 0
        %2512 = vmatpush1.bf16.msra.mxu0 0
        %2513 = vmatprep.mubr.bf16.mxu0 0
        %2514 = vmatmul.mubr.bf16.gmra.mrb[0].mxu0 %v2408
        %v2515 = vpop.f32.mrb[0].mxu0
        %v2516 = vadd.f32 %v2431, %v2515
        %v2517 = vpop.f32.mrb[0].mxu0
        %v2518 = vpop.f32.mrb[0].mxu0
        %v2519 = vadd.f32 %v2431, %v2518
        %v2520 = vpop.f32.mrb[0].mxu0
        %2521 = vmatprep.mubr.bf16.mxu0 0
        %2522 = vmatmul.mubr.bf16.gmra.mrb[0].mxu0 %v2409
        %v2523 = vpop.f32.mrb[0].mxu0
        %v2524 = vadd.f32 %v2431, %v2523
        %v2525 = vpop.f32.mrb[0].mxu0
        %v2526 = vpop.f32.mrb[0].mxu0
        %v2527 = vadd.f32 %v2431, %v2526
        %v2528 = vpop.f32.mrb[0].mxu0
        %2529 = vdwg.mxu0
        %v2530 = vadd.f32 %v993, %v2516
        %v2531 = vadd.f32 %v994, %v2519
        %v2532 = vadd.f32 %v1003, %v2524
        %v2533 = vadd.f32 %v1004, %v2527
        %v2534 = vmul.f32 %v2530, %v2383
        %v2535 = vmul.f32 %v2531, %v2388
        %v2536 = vmul.f32 %v2532, %v2393
        %v2537 = vmul.f32 %v2533, %v2398
        %2538 = vst [vmem:[#allocation2 + $0x8] sm:$0xff] %v2534
        %2539 = vst [vmem:[#allocation2 + $0x10] sm:$0xff] %v2535
        %2540 = vst [vmem:[#allocation2 + $0x28] sm:$0xff] %v2536
        %2541 = vst [vmem:[#allocation2 + $0x30] sm:$0xff] %v2537
        %p2542 = scmp.eq.s32.totalorder %s45, 1
        // Predicated region
        $region117: #{decoder_forward.1} parent=91 // pred_check
          %p2543 = pneg %p2542
        $region118: #{decoder_forward.1} parent=91 // pred_check_branch
          %2545 = sbr.rel (%p2543) target = $region120
        $region119: #{decoder_forward.1} parent=91 // pred_region
          %2546 = vst [vmem:[%s19] sm:$0xff] %v2534
          %2547 = vst [vmem:[%s19 + $0x8] sm:$0xff] %v2535
          %2548 = vst [vmem:[%s19 + $0x10] sm:$0xff] %v2536
          %2549 = vst [vmem:[%s19 + $0x18] sm:$0xff] %v2537
          %v2550 = vpack.c.bf16 %v2535, %v2534
          %v2551 = vpack.c.bf16 %v2537, %v2536
          %v2552 = vld [vmem:[%s17] sm:$0xf]
          %v2553 = vld [vmem:[%s18] sm:$0xff]
          %2555 = vset.pattern.permute.xlu0 0
          %2556 = vperm.xlu0 %2555, %v2553
          %v2557 = vpop.permute.xlu0 %2556
          %2559 = vmatprep.subr.bf16.mxu0 0
          %2560 = vmatpush1.bf16.xpose.msra.mxu0 %v2550
          %2561 = vmatprep.subr.bf16.mxu0 0
          %2562 = vmatpush1.bf16.xpose.msra.mxu0 0
          %2563 = vmatprep.subr.bf16.mxu0 0
          %2564 = vmatpush1.bf16.xpose.msra.mxu0 0
          %2565 = vmatprep.subr.bf16.mxu0 0
          %2566 = vmatpush1.bf16.xpose.msra.mxu0 0
          %2567 = vmatprep.subr.bf16.mxu0 0
          %2568 = vmatpush1.bf16.xpose.msra.mxu0 0
          %2569 = vmatprep.subr.bf16.mxu0 0
          %2570 = vmatpush1.bf16.xpose.msra.mxu0 0
          %2571 = vmatprep.subr.bf16.mxu0 0
          %2572 = vmatpush1.bf16.xpose.msra.mxu0 0
          %2573 = vmatprep.subr.bf16.mxu0 0
          %2574 = vmatpush1.bf16.xpose.msra.mxu0 0
          %2575 = vmatprep.subr.bf16.mxu0 0
          %2576 = vmatpush1.bf16.xpose.msra.mxu0 0
          %2577 = vmatprep.subr.bf16.mxu0 0
          %2578 = vmatpush1.bf16.xpose.msra.mxu0 0
          %2579 = vmatprep.subr.bf16.mxu0 0
          %2580 = vmatpush1.bf16.xpose.msra.mxu0 0
          %2581 = vmatprep.subr.bf16.mxu0 0
          %2582 = vmatpush1.bf16.xpose.msra.mxu0 0
          %2583 = vmatprep.subr.bf16.mxu0 0
          %2584 = vmatpush1.bf16.xpose.msra.mxu0 0
          %2585 = vmatprep.subr.bf16.mxu0 0
          %2586 = vmatpush1.bf16.xpose.msra.mxu0 0
          %2587 = vmatprep.subr.bf16.mxu0 0
          %2588 = vmatpush1.bf16.xpose.msra.mxu0 0
          %2589 = vmatprep.subr.bf16.mxu0 0
          %2590 = vmatpush1.bf16.xpose.msra.mxu0 0
          %2591 = vmatprep.mubr.bf16.mxu0 0
          %2592 = vmatmul.mubr.bf16.gmra.mrb[0].mxu0 %v2552
          %v2593 = vpop.f32.mrb[0].mxu0
          %v2594 = vadd.f32 %v2557, %v2593
          %v2595 = vpop.f32.mrb[0].mxu0
          %v2596 = vpop.f32.mrb[0].mxu0
          %v2597 = vpop.f32.mrb[0].mxu0
          %2598 = vdwg.mxu0
          %2599 = vst.msk [vmem:[%s20] sm:$0xff] %vm1776, %v2594
          %v2600 = vld [vmem:[%s17] sm:$0xf]
          %v2601 = vld [vmem:[%s18] sm:$0xff]
          %2603 = vset.pattern.permute.xlu0 0
          %2604 = vperm.xlu0 %2603, %v2601
          %v2605 = vpop.permute.xlu0 %2604
          %2607 = vmatprep.subr.bf16.mxu0 0
          %2608 = vmatpush1.bf16.xpose.msra.mxu0 %v2551
          %2609 = vmatprep.subr.bf16.mxu0 0
          %2610 = vmatpush1.bf16.xpose.msra.mxu0 0
          %2611 = vmatprep.subr.bf16.mxu0 0
          %2612 = vmatpush1.bf16.xpose.msra.mxu0 0
          %2613 = vmatprep.subr.bf16.mxu0 0
          %2614 = vmatpush1.bf16.xpose.msra.mxu0 0
          %2615 = vmatprep.subr.bf16.mxu0 0
          %2616 = vmatpush1.bf16.xpose.msra.mxu0 0
          %2617 = vmatprep.subr.bf16.mxu0 0
          %2618 = vmatpush1.bf16.xpose.msra.mxu0 0
          %2619 = vmatprep.subr.bf16.mxu0 0
          %2620 = vmatpush1.bf16.xpose.msra.mxu0 0
          %2621 = vmatprep.subr.bf16.mxu0 0
          %2622 = vmatpush1.bf16.xpose.msra.mxu0 0
          %2623 = vmatprep.subr.bf16.mxu0 0
          %2624 = vmatpush1.bf16.xpose.msra.mxu0 0
          %2625 = vmatprep.subr.bf16.mxu0 0
          %2626 = vmatpush1.bf16.xpose.msra.mxu0 0
          %2627 = vmatprep.subr.bf16.mxu0 0
          %2628 = vmatpush1.bf16.xpose.msra.mxu0 0
          %2629 = vmatprep.subr.bf16.mxu0 0
          %2630 = vmatpush1.bf16.xpose.msra.mxu0 0
          %2631 = vmatprep.subr.bf16.mxu0 0
          %2632 = vmatpush1.bf16.xpose.msra.mxu0 0
          %2633 = vmatprep.subr.bf16.mxu0 0
          %2634 = vmatpush1.bf16.xpose.msra.mxu0 0
          %2635 = vmatprep.subr.bf16.mxu0 0
          %2636 = vmatpush1.bf16.xpose.msra.mxu0 0
          %2637 = vmatprep.subr.bf16.mxu0 0
          %2638 = vmatpush1.bf16.xpose.msra.mxu0 0
          %2639 = vmatprep.mubr.bf16.mxu0 0
          %2640 = vmatmul.mubr.bf16.gmra.mrb[0].mxu0 %v2600
          %v2641 = vpop.f32.mrb[0].mxu0
          %v2642 = vadd.f32 %v2605, %v2641
          %v2643 = vpop.f32.mrb[0].mxu0
          %v2644 = vpop.f32.mrb[0].mxu0
          %v2645 = vpop.f32.mrb[0].mxu0
          %2646 = vdwg.mxu0
          %s2647 = scalar_lea.vmem %s20, 8
          %2648 = vst.msk [vmem:[%s2647] sm:$0xff] %vm1776, %v2642
        $region120: #{decoder_forward.1} parent=91 // pred_fallthru
          _
        // Predicated region
        $region121: #{decoder_forward.1} parent=91 // pred_check
          %p2649 = pneg %p486
        $region122: #{decoder_forward.1} parent=91 // pred_check_branch
          %2651 = sbr.rel (%p2649) target = $region124
        $region123: #{decoder_forward.1} parent=91 // pred_region
          _
        $region124: #{decoder_forward.1} parent=91 // pred_fallthru
          _
        // Predicated region
        $region125: #{decoder_forward.1} parent=91 // pred_check
          %p2652 = pneg %p507
        $region126: #{decoder_forward.1} parent=91 // pred_check_branch
          %2654 = sbr.rel (%p2652) target = $region128
        $region127: #{decoder_forward.1} parent=91 // pred_region
          _
        $region128: #{decoder_forward.1} parent=91 // pred_fallthru
          _
        // Predicated region
        $region129: #{decoder_forward.1} parent=91 // pred_check
          %p2655 = pneg %p486
        $region130: #{decoder_forward.1} parent=91 // pred_check_branch
          %2657 = sbr.rel (%p2655) target = $region132
        $region131: #{decoder_forward.1} parent=91 // pred_region
          _
        $region132: #{decoder_forward.1} parent=91 // pred_fallthru
          _
        // Predicated region
        $region133: #{decoder_forward.1} parent=91 // pred_check
          %p2658 = pneg %p507
        $region134: #{decoder_forward.1} parent=91 // pred_check_branch
          %2660 = sbr.rel (%p2658) target = $region136
        $region135: #{decoder_forward.1} parent=91 // pred_region
          _
        $region136: #{decoder_forward.1} parent=91 // pred_fallthru
          _
      $region92: #{decoder_forward.1} parent=5 // pred_fallthru
        _
      %p2661 = scmp.le.s32.totalorder 2, %s40
      // Predicated region
      $region137: #{decoder_forward.1} parent=5 // pred_check
        %p2662 = pneg %p2661
      $region138: #{decoder_forward.1} parent=5 // pred_check_branch
        %2664 = sbr.rel (%p2662) target = $region140
      $region139: #{decoder_forward.1} parent=5 // pred_region
        %s2665 = ssub.s32 %s40, 2
      $region140: #{decoder_forward.1} parent=5 // pred_fallthru
        _
    $region6: #{decoder_forward.1} parent=1 // loop_footer
      %s44 = sadd.s32 1, %s40
    $region7: #{decoder_forward.1} parent=1 // loop_footer_branch
      %39 = sbr.rel target = $region3
    $region8: #{decoder_forward.1} parent=1 // loop_exit
      _
    %2666 = vsyncpa [#allocation6], 1
    %s2667 = scalar_lea.sflag [#allocation6], 1
    %2668 = vsyncpa %s2667, 1
    %2669 = vsyncpa [#allocation8], 1
    %s2670 = scalar_lea.sflag [#allocation8], 1
    %2671 = vsyncpa %s2670, 1
    %2672 = vsyncpa [#allocation11], 1
    %s2673 = scalar_lea.sflag [#allocation11], 1
    %2674 = vsyncpa %s2673, 1

</llo_original>
